<compile_context>
chip_gen: v7x
topology: tpu7x:2x2x1
jax: 0.10.0
libtpu: 0.0.40
codegen_flags: <defaults>
</compile_context>

<pallas_src>
import jax
import jax.numpy as jnp
from jax.experimental import pallas as pl
from jax.experimental.pallas import tpu as pltpu


# ----------------------------------------------------------------------------
# helpers
# ----------------------------------------------------------------------------
def _round_up(n, m):
    return ((n + m - 1) // m) * m


def _bdot(a, b):
    """MXU matmul: bf16 operands, f32 accumulation."""
    return jnp.dot(a.astype(jnp.bfloat16), b.astype(jnp.bfloat16),
                   preferred_element_type=jnp.float32)


def _const_spec(a):
    """Whole-array block with a constant block index: DMA'd once, then kept
    VMEM-resident for the whole layer grid (no per-layer re-fetch)."""
    zeros = (0,) * a.ndim
    return pl.BlockSpec(a.shape, lambda l, _z=zeros: _z)


def _layer_spec(a):
    """Per-layer slice of a [L, ...] stacked parameter."""
    tail = (0,) * (a.ndim - 1)
    return pl.BlockSpec((1,) + a.shape[1:], lambda l, _t=tail: (l,) + _t)


# ----------------------------------------------------------------------------
# fused kernel: embeddings + all GINe layers + output head
# ----------------------------------------------------------------------------
def _gine_fused_kernel(
        x_raw_ref, ea_raw_ref, tea_raw_ref,
        sel_src_ref, adj_ref, sel_ts_ref, sel_td_ref,
        wn_ref, bn_ref, we_ref, be_ref,
        cw1_ref, cb1_ref, cw2_ref, cb2_ref, gamma_ref, beta_ref,
        ew1_ref, eb1_ref, ew2_ref, eb2_ref,
        hw1_ref, hb1_ref, hw2_ref, hb2_ref, hw3_ref, hb3_ref,
        out_ref,
        x_s, ea_s, tea_s):
    l = pl.program_id(0)
    last = pl.num_programs(0) - 1

    # ---- iteration 0: embeddings into the VMEM-resident carries ------------
    @pl.when(l == 0)
    def _():
        x_s[...] = _bdot(x_raw_ref[...], wn_ref[...]) + bn_ref[...]
        ea_s[...] = _bdot(ea_raw_ref[...], we_ref[...]) + be_ref[...]
        tea_s[...] = _bdot(tea_raw_ref[...], we_ref[...]) + be_ref[...]
        out_ref[...] = jnp.zeros_like(out_ref)

    x = x_s[...]                                              # [N, Hp] f32

    # ---- GINEConv (eps=0): h = x + scatter_add(relu(x[src] + ea), dst) -----
    # gather / scatter as bf16 one-hot MXU matmuls (0/1 exact in bf16)
    x_src = _bdot(sel_src_ref[...], x)                        # [E, Hp]
    msg = jnp.maximum(x_src + ea_s[...], 0.0)                 # [E, Hp] f32
    h = x + _bdot(adj_ref[...], msg)                          # [N, Hp]

    # ---- conv nn: Linear -> ReLU -> Linear ----------------------------------
    h = jnp.maximum(_bdot(h, cw1_ref[0]) + cb1_ref[0], 0.0)
    h = _bdot(h, cw2_ref[0]) + cb2_ref[0]

    # ---- BatchNorm (training-mode batch stats over the full node set) ------
    # TODO(synk): running-stats tracking for strict eval-mode parity with
    # PyTorch BatchNorm1d is not implemented (per-call batch stats used).
    mean = jnp.mean(h, axis=0, keepdims=True)
    var = jnp.mean((h - mean) ** 2, axis=0, keepdims=True)    # biased var
    hn = (h - mean) * jax.lax.rsqrt(var + 1e-5)
    hn = hn * gamma_ref[0] + beta_ref[0]
    x_new = (x + jnp.maximum(hn, 0.0)) * 0.5                  # residual
    x_s[...] = x_new

    # ---- target-edge update: tea += emlp(cat[x[ts], x[td], tea]) / 2 -------
    tea = tea_s[...]
    x_ts = _bdot(sel_ts_ref[...], x_new)                      # [Et, Hp]
    x_td = _bdot(sel_td_ref[...], x_new)                      # [Et, Hp]
    cat = jnp.concatenate([x_ts, x_td, tea], axis=-1)         # [Et, 3*Hp]
    u = jnp.maximum(_bdot(cat, ew1_ref[0]) + eb1_ref[0], 0.0)
    u = _bdot(u, ew2_ref[0]) + eb2_ref[0]
    tea_new = tea + 0.5 * u
    tea_s[...] = tea_new

    # ---- final iteration: fused output head (reuses resident x_ts/x_td) ----
    @pl.when(l == last)
    def _():
        zcat = jnp.concatenate(
            [jnp.maximum(x_ts, 0.0), jnp.maximum(x_td, 0.0), tea_new],
            axis=-1)                                          # [Et, 3*Hp]
        z = jnp.maximum(_bdot(zcat, hw1_ref[...]) + hb1_ref[...], 0.0)
        # TODO(synk): training-mode dropout (p=final_dropout) not implemented
        # (eval-mode identity semantics).
        z = jnp.maximum(_bdot(z, hw2_ref[...]) + hb2_ref[...], 0.0)
        out_ref[...] = _bdot(z, hw3_ref[...]) + hb3_ref[...]


# ----------------------------------------------------------------------------
# forward pass wrapper (one pallas_call for the whole network)
# ----------------------------------------------------------------------------
def gine_forward(params, x, edge_index, edge_attr, edge_label_index,
                 target_edge_attr):
    N = x.shape[0]
    E = edge_attr.shape[0]
    Et = target_edge_attr.shape[0]
    L = params["conv_w1"].shape[0]
    Hp = params["node_w"].shape[1]
    C = params["head_w3"].shape[1]

    src, dst = edge_index[0], edge_index[1]
    tsrc, tdst = edge_label_index[0], edge_label_index[1]
    ar = jnp.arange(N, dtype=jnp.int32)

    # bf16 one-hot gather / scatter operators (0/1 exact in bf16), built once
    # and kept VMEM-resident across all layers.
    # TODO(synk): for production graph sizes replace the dense [N,E]/[E,N]
    # operators with scalar-prefetched index gathers / segment sums and tile
    # E/N as grid axes (dense adjacency does not fit VMEM at scale).
    adj = (ar[:, None] == dst[None, :]).astype(jnp.bfloat16)       # [N, E]
    sel_src = (src[:, None] == ar[None, :]).astype(jnp.bfloat16)   # [E, N]
    sel_ts = (tsrc[:, None] == ar[None, :]).astype(jnp.bfloat16)   # [Et, N]
    sel_td = (tdst[:, None] == ar[None, :]).astype(jnp.bfloat16)   # [Et, N]

    const_ins = [x, edge_attr, target_edge_attr,
                 sel_src, adj, sel_ts, sel_td,
                 params["node_w"], params["node_b"],
                 params["edge_w"], params["edge_b"]]
    layer_ins = [params[k] for k in
                 ("conv_w1", "conv_b1", "conv_w2", "conv_b2",
                  "bn_gamma", "bn_beta",
                  "emlp_w1", "emlp_b1", "emlp_w2", "emlp_b2")]
    head_ins = [params[k] for k in
                ("head_w1", "head_b1", "head_w2", "head_b2",
                 "head_w3", "head_b3")]
    ins = const_ins + layer_ins + head_ins
    in_specs = ([_const_spec(a) for a in const_ins]
                + [_layer_spec(a) for a in layer_ins]
                + [_const_spec(a) for a in head_ins])

    return pl.pallas_call(
        _gine_fused_kernel,
        grid=(L,),
        in_specs=in_specs,
        out_specs=pl.BlockSpec((Et, C), lambda l: (0, 0)),
        out_shape=jax.ShapeDtypeStruct((Et, C), jnp.float32),
        scratch_shapes=[pltpu.VMEM((N, Hp), jnp.float32),   # x carry
                        pltpu.VMEM((E, Hp), jnp.float32),   # edge_attr carry
                        pltpu.VMEM((Et, Hp), jnp.float32)], # target-edge carry
        compiler_params=pltpu.CompilerParams(
            dimension_semantics=("arbitrary",)),
    )(*ins)


# ----------------------------------------------------------------------------
# Parameter init (PyTorch-Linear uniform), zero-padded to lane-dense widths,
# per-layer tensors stacked along a leading layer axis.
# ----------------------------------------------------------------------------
def _init_linear(key, fan_in, fan_out, pad_in=None, pad_out=None):
    pad_in = fan_in if pad_in is None else pad_in
    pad_out = fan_out if pad_out is None else pad_out
    k1, k2 = jax.random.split(key)
    bound = 1.0 / float(fan_in) ** 0.5
    w = jax.random.uniform(k1, (fan_in, fan_out), jnp.float32, -bound, bound)
    b = jax.random.uniform(k2, (fan_out,), jnp.float32, -bound, bound)
    wp = jnp.zeros((pad_in, pad_out), jnp.float32).at[:fan_in, :fan_out].set(w)
    bp = jnp.zeros((1, pad_out), jnp.float32).at[0, :fan_out].set(b)
    return wp, bp


def _init_linear3(key, h, fan_out, hp, pad_out=None):
    """Linear(3h, fan_out) for the concat-of-three input: true rows packed at
    offsets 0, hp, 2*hp of a single [3*hp, pad_out] K-stacked weight so the
    kernel runs one deep matmul; fan_in bound uses the true 3h."""
    pad_out = fan_out if pad_out is None else pad_out
    k1, k2 = jax.random.split(key)
    bound = 1.0 / float(3 * h) ** 0.5
    w = jax.random.uniform(k1, (3 * h, fan_out), jnp.float32, -bound, bound)
    b = jax.random.uniform(k2, (fan_out,), jnp.float32, -bound, bound)
    wp = jnp.zeros((3 * hp, pad_out), jnp.float32)
    for i in range(3):
        wp = wp.at[i * hp:i * hp + h, :fan_out].set(w[i * h:(i + 1) * h])
    bp = jnp.zeros((1, pad_out), jnp.float32).at[0, :fan_out].set(b)
    return wp, bp


def init_params(key, num_features, edge_dim, n_hidden, num_layers, n_classes,
                hp):
    keys = jax.random.split(key, 2 + 4 * num_layers + 3)
    ki = iter(keys)
    node_w, node_b = _init_linear(next(ki), num_features, n_hidden, pad_out=hp)
    edge_w, edge_b = _init_linear(next(ki), edge_dim, n_hidden, pad_out=hp)

    cw1, cb1, cw2, cb2 = [], [], [], []
    ew1, eb1, ew2, eb2 = [], [], [], []
    gam, bet = [], []
    for _ in range(num_layers):
        w, b = _init_linear(next(ki), n_hidden, n_hidden, hp, hp)
        cw1.append(w); cb1.append(b)
        w, b = _init_linear(next(ki), n_hidden, n_hidden, hp, hp)
        cw2.append(w); cb2.append(b)
        w, b = _init_linear3(next(ki), n_hidden, n_hidden, hp, hp)
        ew1.append(w); eb1.append(b)
        w, b = _init_linear(next(ki), n_hidden, n_hidden, hp, hp)
        ew2.append(w); eb2.append(b)
        gam.append(jnp.ones((1, hp), jnp.float32))
        bet.append(jnp.zeros((1, hp), jnp.float32))

    p1 = _round_up(50, 128)
    p2 = _round_up(25, 128)
    hw1, hb1 = _init_linear3(next(ki), n_hidden, 50, hp, p1)
    hw2, hb2 = _init_linear(next(ki), 50, 25, p1, p2)
    hw3, hb3 = _init_linear(next(ki), 25, n_classes, p2, n_classes)

    stack = lambda xs: jnp.stack(xs, axis=0)
    return dict(
        node_w=node_w, node_b=node_b, edge_w=edge_w, edge_b=edge_b,
        conv_w1=stack(cw1), conv_b1=stack(cb1),
        conv_w2=stack(cw2), conv_b2=stack(cb2),
        bn_gamma=stack(gam), bn_beta=stack(bet),
        emlp_w1=stack(ew1), emlp_b1=stack(eb1),
        emlp_w2=stack(ew2), emlp_b2=stack(eb2),
        head_w1=hw1, head_b1=hb1, head_w2=hw2, head_b2=hb2,
        head_w3=hw3, head_b3=hb3,
    )


# ----------------------------------------------------------------------------
if __name__ == "__main__":
    key = jax.random.PRNGKey(0)
    num_features, edge_dim = 8, 6
    n_hidden, num_layers, n_classes = 32, 2, 2
    N, E, Et = 16, 24, 8
    # Lane-dense padded hidden width.
    # TODO(synk): at production scale use n_hidden >= 128 (or pack 4 row
    # groups per 128-lane vreg) so this padding is not a 4x FLOP/VMEM waste.
    Hp = _round_up(n_hidden, 128)

    kx, ke, kt, ki1, ki2, kp = jax.random.split(key, 6)
    x = jax.random.normal(kx, (N, num_features), jnp.float32)
    edge_attr = jax.random.normal(ke, (E, edge_dim), jnp.float32)
    target_edge_attr = jax.random.normal(kt, (Et, edge_dim), jnp.float32)
    edge_index = jax.random.randint(ki1, (2, E), 0, N, jnp.int32)
    edge_label_index = jax.random.randint(ki2, (2, Et), 0, N, jnp.int32)

    params = init_params(kp, num_features, edge_dim, n_hidden, num_layers,
                         n_classes, Hp)

    fwd = jax.jit(gine_forward)
    out = jax.block_until_ready(
        fwd(params, x, edge_index, edge_attr, edge_label_index,
            target_edge_attr))
    assert out.shape == (Et, n_classes), out.shape
    assert bool(jnp.all(jnp.isfinite(out)))
    print("KERNEL_OK")
</pallas_src>

<mosaic_0001>
module attributes {stable_mosaic.version = 11 : i64} {
  func.func @_gine_fused_kernel(%arg0: i32, %arg1: memref<16x8xf32, #tpu.memory_space<vmem>>, %arg2: memref<24x6xf32, #tpu.memory_space<vmem>>, %arg3: memref<8x6xf32, #tpu.memory_space<vmem>>, %arg4: memref<24x16xbf16, #tpu.memory_space<vmem>>, %arg5: memref<16x24xbf16, #tpu.memory_space<vmem>>, %arg6: memref<8x16xbf16, #tpu.memory_space<vmem>>, %arg7: memref<8x16xbf16, #tpu.memory_space<vmem>>, %arg8: memref<8x128xf32, #tpu.memory_space<vmem>>, %arg9: memref<1x128xf32, #tpu.memory_space<vmem>>, %arg10: memref<6x128xf32, #tpu.memory_space<vmem>>, %arg11: memref<1x128xf32, #tpu.memory_space<vmem>>, %arg12: memref<1x128x128xf32, #tpu.memory_space<vmem>>, %arg13: memref<1x1x128xf32, #tpu.memory_space<vmem>>, %arg14: memref<1x128x128xf32, #tpu.memory_space<vmem>>, %arg15: memref<1x1x128xf32, #tpu.memory_space<vmem>>, %arg16: memref<1x1x128xf32, #tpu.memory_space<vmem>>, %arg17: memref<1x1x128xf32, #tpu.memory_space<vmem>>, %arg18: memref<1x384x128xf32, #tpu.memory_space<vmem>>, %arg19: memref<1x1x128xf32, #tpu.memory_space<vmem>>, %arg20: memref<1x128x128xf32, #tpu.memory_space<vmem>>, %arg21: memref<1x1x128xf32, #tpu.memory_space<vmem>>, %arg22: memref<384x128xf32, #tpu.memory_space<vmem>>, %arg23: memref<1x128xf32, #tpu.memory_space<vmem>>, %arg24: memref<128x128xf32, #tpu.memory_space<vmem>>, %arg25: memref<1x128xf32, #tpu.memory_space<vmem>>, %arg26: memref<128x2xf32, #tpu.memory_space<vmem>>, %arg27: memref<1x2xf32, #tpu.memory_space<vmem>>, %arg28: memref<8x2xf32, #tpu.memory_space<vmem>>, %arg29: memref<16x128xf32, #tpu.memory_space<vmem>>, %arg30: memref<24x128xf32, #tpu.memory_space<vmem>>, %arg31: memref<8x128xf32, #tpu.memory_space<vmem>>) attributes {dimension_semantics = [#tpu.dimension_semantics<arbitrary>], iteration_bounds = array<i64: 2>, scalar_prefetch = 0 : i64, scratch_operands = 3 : i64, tpu.core_type = #tpu.core_type<tc>, window_params = [{pipeline_mode = #tpu.pipeline_mode<synchronous>, transform_indices = @transform_0, window_bounds = array<i64: 16, 8>}, {pipeline_mode = #tpu.pipeline_mode<synchronous>, transform_indices = @transform_1, window_bounds = array<i64: 24, 6>}, {pipeline_mode = #tpu.pipeline_mode<synchronous>, transform_indices = @transform_2, window_bounds = array<i64: 8, 6>}, {pipeline_mode = #tpu.pipeline_mode<synchronous>, transform_indices = @transform_3, window_bounds = array<i64: 24, 16>}, {pipeline_mode = #tpu.pipeline_mode<synchronous>, transform_indices = @transform_4, window_bounds = array<i64: 16, 24>}, {pipeline_mode = #tpu.pipeline_mode<synchronous>, transform_indices = @transform_5, window_bounds = array<i64: 8, 16>}, {pipeline_mode = #tpu.pipeline_mode<synchronous>, transform_indices = @transform_6, window_bounds = array<i64: 8, 16>}, {pipeline_mode = #tpu.pipeline_mode<synchronous>, transform_indices = @transform_7, window_bounds = array<i64: 8, 128>}, {pipeline_mode = #tpu.pipeline_mode<synchronous>, transform_indices = @transform_8, window_bounds = array<i64: 1, 128>}, {pipeline_mode = #tpu.pipeline_mode<synchronous>, transform_indices = @transform_9, window_bounds = array<i64: 6, 128>}, {pipeline_mode = #tpu.pipeline_mode<synchronous>, transform_indices = @transform_10, window_bounds = array<i64: 1, 128>}, {transform_indices = @transform_11, window_bounds = array<i64: 1, 128, 128>}, {transform_indices = @transform_12, window_bounds = array<i64: 1, 1, 128>}, {transform_indices = @transform_13, window_bounds = array<i64: 1, 128, 128>}, {transform_indices = @transform_14, window_bounds = array<i64: 1, 1, 128>}, {transform_indices = @transform_15, window_bounds = array<i64: 1, 1, 128>}, {transform_indices = @transform_16, window_bounds = array<i64: 1, 1, 128>}, {transform_indices = @transform_17, window_bounds = array<i64: 1, 384, 128>}, {transform_indices = @transform_18, window_bounds = array<i64: 1, 1, 128>}, {transform_indices = @transform_19, window_bounds = array<i64: 1, 128, 128>}, {transform_indices = @transform_20, window_bounds = array<i64: 1, 1, 128>}, {pipeline_mode = #tpu.pipeline_mode<synchronous>, transform_indices = @transform_21, window_bounds = array<i64: 384, 128>}, {pipeline_mode = #tpu.pipeline_mode<synchronous>, transform_indices = @transform_22, window_bounds = array<i64: 1, 128>}, {pipeline_mode = #tpu.pipeline_mode<synchronous>, transform_indices = @transform_23, window_bounds = array<i64: 128, 128>}, {pipeline_mode = #tpu.pipeline_mode<synchronous>, transform_indices = @transform_24, window_bounds = array<i64: 1, 128>}, {pipeline_mode = #tpu.pipeline_mode<synchronous>, transform_indices = @transform_25, window_bounds = array<i64: 128, 2>}, {pipeline_mode = #tpu.pipeline_mode<synchronous>, transform_indices = @transform_26, window_bounds = array<i64: 1, 2>}, {pipeline_mode = #tpu.pipeline_mode<synchronous>, transform_indices = @transform_27, window_bounds = array<i64: 8, 2>}]} {
    %c0_i32 = arith.constant 0 : i32
    %0 = arith.cmpi eq, %arg0, %c0_i32 : i32
    %1 = arith.extui %0 : i1 to i32
    %c0_i32_0 = arith.constant 0 : i32
    %2 = arith.cmpi ne, %1, %c0_i32_0 : i32
    scf.if %2 {
      %c0_67 = arith.constant 0 : index
      %c0_68 = arith.constant 0 : index
      %102 = vector.load %arg1[%c0_67, %c0_68] : memref<16x8xf32, #tpu.memory_space<vmem>>, vector<16x8xf32>
      %c0_69 = arith.constant 0 : index
      %c0_70 = arith.constant 0 : index
      %103 = vector.load %arg8[%c0_69, %c0_70] : memref<8x128xf32, #tpu.memory_space<vmem>>, vector<8x128xf32>
      %104 = arith.truncf %102 : vector<16x8xf32> to vector<16x8xbf16>
      %105 = arith.truncf %103 : vector<8x128xf32> to vector<8x128xbf16>
      %cst_71 = arith.constant dense<0.000000e+00> : vector<16x128xf32>
      %106 = tpu.matmul %104, %105, %cst_71 {dimension_numbers = #tpu.dot_dimension_numbers<[1], [0], [0], [1], [0, 0, 1, 1], [], []>} : vector<16x8xbf16>, vector<8x128xbf16>, vector<16x128xf32> -> vector<16x128xf32>
      %c0_72 = arith.constant 0 : index
      %c0_73 = arith.constant 0 : index
      %107 = vector.load %arg9[%c0_72, %c0_73] : memref<1x128xf32, #tpu.memory_space<vmem>>, vector<1x128xf32>
      %108 = vector.broadcast %107 : vector<1x128xf32> to vector<16x128xf32>
      %109 = arith.addf %106, %108 : vector<16x128xf32>
      %c0_74 = arith.constant 0 : index
      %c0_75 = arith.constant 0 : index
      %110 = vector.load %arg29[%c0_74, %c0_75] : memref<16x128xf32, #tpu.memory_space<vmem>>, vector<16x128xf32>
      tpu.vector_store %arg29[%c0_74, %c0_75], %109 {strides = array<i32>} : memref<16x128xf32, #tpu.memory_space<vmem>>, vector<16x128xf32>,
      %c0_76 = arith.constant 0 : index
      %c0_77 = arith.constant 0 : index
      %111 = vector.load %arg2[%c0_76, %c0_77] : memref<24x6xf32, #tpu.memory_space<vmem>>, vector<24x6xf32>
      %c0_78 = arith.constant 0 : index
      %c0_79 = arith.constant 0 : index
      %112 = vector.load %arg10[%c0_78, %c0_79] : memref<6x128xf32, #tpu.memory_space<vmem>>, vector<6x128xf32>
      %113 = arith.truncf %111 : vector<24x6xf32> to vector<24x6xbf16>
      %114 = arith.truncf %112 : vector<6x128xf32> to vector<6x128xbf16>
      %cst_80 = arith.constant dense<0.000000e+00> : vector<24x128xf32>
      %115 = tpu.matmul %113, %114, %cst_80 {dimension_numbers = #tpu.dot_dimension_numbers<[1], [0], [0], [1], [0, 0, 1, 1], [], []>} : vector<24x6xbf16>, vector<6x128xbf16>, vector<24x128xf32> -> vector<24x128xf32>
      %c0_81 = arith.constant 0 : index
      %c0_82 = arith.constant 0 : index
      %116 = vector.load %arg11[%c0_81, %c0_82] : memref<1x128xf32, #tpu.memory_space<vmem>>, vector<1x128xf32>
      %117 = vector.broadcast %116 : vector<1x128xf32> to vector<24x128xf32>
      %118 = arith.addf %115, %117 : vector<24x128xf32>
      %c0_83 = arith.constant 0 : index
      %c0_84 = arith.constant 0 : index
      %119 = vector.load %arg30[%c0_83, %c0_84] : memref<24x128xf32, #tpu.memory_space<vmem>>, vector<24x128xf32>
      tpu.vector_store %arg30[%c0_83, %c0_84], %118 {strides = array<i32>} : memref<24x128xf32, #tpu.memory_space<vmem>>, vector<24x128xf32>,
      %c0_85 = arith.constant 0 : index
      %c0_86 = arith.constant 0 : index
      %120 = vector.load %arg3[%c0_85, %c0_86] : memref<8x6xf32, #tpu.memory_space<vmem>>, vector<8x6xf32>
      %c0_87 = arith.constant 0 : index
      %c0_88 = arith.constant 0 : index
      %121 = vector.load %arg10[%c0_87, %c0_88] : memref<6x128xf32, #tpu.memory_space<vmem>>, vector<6x128xf32>
      %122 = arith.truncf %120 : vector<8x6xf32> to vector<8x6xbf16>
      %123 = arith.truncf %121 : vector<6x128xf32> to vector<6x128xbf16>
      %cst_89 = arith.constant dense<0.000000e+00> : vector<8x128xf32>
      %124 = tpu.matmul %122, %123, %cst_89 {dimension_numbers = #tpu.dot_dimension_numbers<[1], [0], [0], [1], [0, 0, 1, 1], [], []>} : vector<8x6xbf16>, vector<6x128xbf16>, vector<8x128xf32> -> vector<8x128xf32>
      %c0_90 = arith.constant 0 : index
      %c0_91 = arith.constant 0 : index
      %125 = vector.load %arg11[%c0_90, %c0_91] : memref<1x128xf32, #tpu.memory_space<vmem>>, vector<1x128xf32>
      %126 = vector.broadcast %125 : vector<1x128xf32> to vector<8x128xf32>
      %127 = arith.addf %124, %126 : vector<8x128xf32>
      %c0_92 = arith.constant 0 : index
      %c0_93 = arith.constant 0 : index
      %128 = vector.load %arg31[%c0_92, %c0_93] : memref<8x128xf32, #tpu.memory_space<vmem>>, vector<8x128xf32>
      tpu.vector_store %arg31[%c0_92, %c0_93], %127 {strides = array<i32>} : memref<8x128xf32, #tpu.memory_space<vmem>>, vector<8x128xf32>,
      %cst_94 = arith.constant 0.000000e+00 : f32
      %129 = vector.broadcast %cst_94 : f32 to vector<8x2xf32>
      %c0_95 = arith.constant 0 : index
      %c0_96 = arith.constant 0 : index
      %130 = vector.load %arg28[%c0_95, %c0_96] : memref<8x2xf32, #tpu.memory_space<vmem>>, vector<8x2xf32>
      tpu.vector_store %arg28[%c0_95, %c0_96], %129 {strides = array<i32>} : memref<8x2xf32, #tpu.memory_space<vmem>>, vector<8x2xf32>,
    } else {
    }
    %c0 = arith.constant 0 : index
    %c0_1 = arith.constant 0 : index
    %3 = vector.load %arg29[%c0, %c0_1] : memref<16x128xf32, #tpu.memory_space<vmem>>, vector<16x128xf32>
    %c0_2 = arith.constant 0 : index
    %c0_3 = arith.constant 0 : index
    %4 = vector.load %arg4[%c0_2, %c0_3] : memref<24x16xbf16, #tpu.memory_space<vmem>>, vector<24x16xbf16>
    %5 = arith.truncf %3 : vector<16x128xf32> to vector<16x128xbf16>
    %cst = arith.constant dense<0.000000e+00> : vector<24x128xf32>
    %6 = tpu.matmul %4, %5, %cst {dimension_numbers = #tpu.dot_dimension_numbers<[1], [0], [0], [1], [0, 0, 1, 1], [], []>} : vector<24x16xbf16>, vector<16x128xbf16>, vector<24x128xf32> -> vector<24x128xf32>
    %c0_4 = arith.constant 0 : index
    %c0_5 = arith.constant 0 : index
    %7 = vector.load %arg30[%c0_4, %c0_5] : memref<24x128xf32, #tpu.memory_space<vmem>>, vector<24x128xf32>
    %8 = arith.addf %6, %7 : vector<24x128xf32>
    %cst_6 = arith.constant 0.000000e+00 : f32
    %9 = vector.broadcast %cst_6 : f32 to vector<24x128xf32>
    %10 = arith.maximumf %8, %9 : vector<24x128xf32>
    %c0_7 = arith.constant 0 : index
    %c0_8 = arith.constant 0 : index
    %11 = vector.load %arg5[%c0_7, %c0_8] : memref<16x24xbf16, #tpu.memory_space<vmem>>, vector<16x24xbf16>
    %12 = arith.truncf %10 : vector<24x128xf32> to vector<24x128xbf16>
    %cst_9 = arith.constant dense<0.000000e+00> : vector<16x128xf32>
    %13 = tpu.matmul %11, %12, %cst_9 {dimension_numbers = #tpu.dot_dimension_numbers<[1], [0], [0], [1], [0, 0, 1, 1], [], []>} : vector<16x24xbf16>, vector<24x128xbf16>, vector<16x128xf32> -> vector<16x128xf32>
    %14 = arith.addf %3, %13 : vector<16x128xf32>
    %c0_10 = arith.constant 0 : index
    %c0_11 = arith.constant 0 : index
    %c0_12 = arith.constant 0 : index
    %15 = vector.load %arg12[%c0_10, %c0_11, %c0_12] : memref<1x128x128xf32, #tpu.memory_space<vmem>>, vector<1x128x128xf32>
    %16 = vector.shape_cast %15 : vector<1x128x128xf32> to vector<128x128xf32>
    %17 = arith.truncf %14 : vector<16x128xf32> to vector<16x128xbf16>
    %18 = arith.truncf %16 : vector<128x128xf32> to vector<128x128xbf16>
    %cst_13 = arith.constant dense<0.000000e+00> : vector<16x128xf32>
    %19 = tpu.matmul %17, %18, %cst_13 {dimension_numbers = #tpu.dot_dimension_numbers<[1], [0], [0], [1], [0, 0, 1, 1], [], []>} : vector<16x128xbf16>, vector<128x128xbf16>, vector<16x128xf32> -> vector<16x128xf32>
    %c0_14 = arith.constant 0 : index
    %c0_15 = arith.constant 0 : index
    %c0_16 = arith.constant 0 : index
    %20 = vector.load %arg13[%c0_14, %c0_15, %c0_16] : memref<1x1x128xf32, #tpu.memory_space<vmem>>, vector<1x1x128xf32>
    %21 = vector.shape_cast %20 : vector<1x1x128xf32> to vector<1x128xf32>
    %22 = vector.broadcast %21 : vector<1x128xf32> to vector<16x128xf32>
    %23 = arith.addf %19, %22 : vector<16x128xf32>
    %cst_17 = arith.constant 0.000000e+00 : f32
    %24 = vector.broadcast %cst_17 : f32 to vector<16x128xf32>
    %25 = arith.maximumf %23, %24 : vector<16x128xf32>
    %c0_18 = arith.constant 0 : index
    %c0_19 = arith.constant 0 : index
    %c0_20 = arith.constant 0 : index
    %26 = vector.load %arg14[%c0_18, %c0_19, %c0_20] : memref<1x128x128xf32, #tpu.memory_space<vmem>>, vector<1x128x128xf32>
    %27 = vector.shape_cast %26 : vector<1x128x128xf32> to vector<128x128xf32>
    %28 = arith.truncf %25 : vector<16x128xf32> to vector<16x128xbf16>
    %29 = arith.truncf %27 : vector<128x128xf32> to vector<128x128xbf16>
    %cst_21 = arith.constant dense<0.000000e+00> : vector<16x128xf32>
    %30 = tpu.matmul %28, %29, %cst_21 {dimension_numbers = #tpu.dot_dimension_numbers<[1], [0], [0], [1], [0, 0, 1, 1], [], []>} : vector<16x128xbf16>, vector<128x128xbf16>, vector<16x128xf32> -> vector<16x128xf32>
    %c0_22 = arith.constant 0 : index
    %c0_23 = arith.constant 0 : index
    %c0_24 = arith.constant 0 : index
    %31 = vector.load %arg15[%c0_22, %c0_23, %c0_24] : memref<1x1x128xf32, #tpu.memory_space<vmem>>, vector<1x1x128xf32>
    %32 = vector.shape_cast %31 : vector<1x1x128xf32> to vector<1x128xf32>
    %33 = vector.broadcast %32 : vector<1x128xf32> to vector<16x128xf32>
    %34 = arith.addf %30, %33 : vector<16x128xf32>
    %cst_25 = arith.constant dense<0.000000e+00> : vector<128xf32>
    %35 = vector.multi_reduction <add>, %34, %cst_25 [0] : vector<16x128xf32> to vector<128xf32>
    %36 = vector.shape_cast %35 : vector<128xf32> to vector<1x128xf32>
    %cst_26 = arith.constant 1.600000e+01 : f32
    %37 = vector.broadcast %cst_26 : f32 to vector<1x128xf32>
    %38 = arith.divf %36, %37 : vector<1x128xf32>
    %39 = vector.broadcast %38 : vector<1x128xf32> to vector<16x128xf32>
    %40 = arith.subf %34, %39 : vector<16x128xf32>
    %41 = arith.mulf %40, %40 : vector<16x128xf32>
    %cst_27 = arith.constant dense<0.000000e+00> : vector<128xf32>
    %42 = vector.multi_reduction <add>, %41, %cst_27 [0] : vector<16x128xf32> to vector<128xf32>
    %43 = vector.shape_cast %42 : vector<128xf32> to vector<1x128xf32>
    %cst_28 = arith.constant 1.600000e+01 : f32
    %44 = vector.broadcast %cst_28 : f32 to vector<1x128xf32>
    %45 = arith.divf %43, %44 : vector<1x128xf32>
    %46 = vector.broadcast %38 : vector<1x128xf32> to vector<16x128xf32>
    %47 = arith.subf %34, %46 : vector<16x128xf32>
    %cst_29 = arith.constant 9.99999974E-6 : f32
    %48 = vector.broadcast %cst_29 : f32 to vector<1x128xf32>
    %49 = arith.addf %45, %48 : vector<1x128xf32>
    %50 = math.rsqrt %49 : vector<1x128xf32>
    %51 = vector.broadcast %50 : vector<1x128xf32> to vector<16x128xf32>
    %52 = arith.mulf %47, %51 : vector<16x128xf32>
    %c0_30 = arith.constant 0 : index
    %c0_31 = arith.constant 0 : index
    %c0_32 = arith.constant 0 : index
    %53 = vector.load %arg16[%c0_30, %c0_31, %c0_32] : memref<1x1x128xf32, #tpu.memory_space<vmem>>, vector<1x1x128xf32>
    %54 = vector.shape_cast %53 : vector<1x1x128xf32> to vector<1x128xf32>
    %55 = vector.broadcast %54 : vector<1x128xf32> to vector<16x128xf32>
    %56 = arith.mulf %52, %55 : vector<16x128xf32>
    %c0_33 = arith.constant 0 : index
    %c0_34 = arith.constant 0 : index
    %c0_35 = arith.constant 0 : index
    %57 = vector.load %arg17[%c0_33, %c0_34, %c0_35] : memref<1x1x128xf32, #tpu.memory_space<vmem>>, vector<1x1x128xf32>
    %58 = vector.shape_cast %57 : vector<1x1x128xf32> to vector<1x128xf32>
    %59 = vector.broadcast %58 : vector<1x128xf32> to vector<16x128xf32>
    %60 = arith.addf %56, %59 : vector<16x128xf32>
    %cst_36 = arith.constant 0.000000e+00 : f32
    %61 = vector.broadcast %cst_36 : f32 to vector<16x128xf32>
    %62 = arith.maximumf %60, %61 : vector<16x128xf32>
    %63 = arith.addf %3, %62 : vector<16x128xf32>
    %cst_37 = arith.constant 5.000000e-01 : f32
    %64 = vector.broadcast %cst_37 : f32 to vector<16x128xf32>
    %65 = arith.mulf %63, %64 : vector<16x128xf32>
    %c0_38 = arith.constant 0 : index
    %c0_39 = arith.constant 0 : index
    %66 = vector.load %arg29[%c0_38, %c0_39] : memref<16x128xf32, #tpu.memory_space<vmem>>, vector<16x128xf32>
    tpu.vector_store %arg29[%c0_38, %c0_39], %65 {strides = array<i32>} : memref<16x128xf32, #tpu.memory_space<vmem>>, vector<16x128xf32>,
    %c0_40 = arith.constant 0 : index
    %c0_41 = arith.constant 0 : index
    %67 = vector.load %arg31[%c0_40, %c0_41] : memref<8x128xf32, #tpu.memory_space<vmem>>, vector<8x128xf32>
    %c0_42 = arith.constant 0 : index
    %c0_43 = arith.constant 0 : index
    %68 = vector.load %arg6[%c0_42, %c0_43] : memref<8x16xbf16, #tpu.memory_space<vmem>>, vector<8x16xbf16>
    %69 = arith.truncf %65 : vector<16x128xf32> to vector<16x128xbf16>
    %cst_44 = arith.constant dense<0.000000e+00> : vector<8x128xf32>
    %70 = tpu.matmul %68, %69, %cst_44 {dimension_numbers = #tpu.dot_dimension_numbers<[1], [0], [0], [1], [0, 0, 1, 1], [], []>} : vector<8x16xbf16>, vector<16x128xbf16>, vector<8x128xf32> -> vector<8x128xf32>
    %c0_45 = arith.constant 0 : index
    %c0_46 = arith.constant 0 : index
    %71 = vector.load %arg7[%c0_45, %c0_46] : memref<8x16xbf16, #tpu.memory_space<vmem>>, vector<8x16xbf16>
    %72 = arith.truncf %65 : vector<16x128xf32> to vector<16x128xbf16>
    %cst_47 = arith.constant dense<0.000000e+00> : vector<8x128xf32>
    %73 = tpu.matmul %71, %72, %cst_47 {dimension_numbers = #tpu.dot_dimension_numbers<[1], [0], [0], [1], [0, 0, 1, 1], [], []>} : vector<8x16xbf16>, vector<16x128xbf16>, vector<8x128xf32> -> vector<8x128xf32>
    %74 = tpu.concatenate %70, %73, %67 in 1 : vector<8x128xf32>, vector<8x128xf32>, vector<8x128xf32> -> vector<8x384xf32>
    %c0_48 = arith.constant 0 : index
    %c0_49 = arith.constant 0 : index
    %c0_50 = arith.constant 0 : index
    %75 = vector.load %arg18[%c0_48, %c0_49, %c0_50] : memref<1x384x128xf32, #tpu.memory_space<vmem>>, vector<1x384x128xf32>
    %76 = vector.shape_cast %75 : vector<1x384x128xf32> to vector<384x128xf32>
    %77 = arith.truncf %74 : vector<8x384xf32> to vector<8x384xbf16>
    %78 = arith.truncf %76 : vector<384x128xf32> to vector<384x128xbf16>
    %cst_51 = arith.constant dense<0.000000e+00> : vector<8x128xf32>
    %79 = tpu.matmul %77, %78, %cst_51 {dimension_numbers = #tpu.dot_dimension_numbers<[1], [0], [0], [1], [0, 0, 1, 1], [], []>} : vector<8x384xbf16>, vector<384x128xbf16>, vector<8x128xf32> -> vector<8x128xf32>
    %c0_52 = arith.constant 0 : index
    %c0_53 = arith.constant 0 : index
    %c0_54 = arith.constant 0 : index
    %80 = vector.load %arg19[%c0_52, %c0_53, %c0_54] : memref<1x1x128xf32, #tpu.memory_space<vmem>>, vector<1x1x128xf32>
    %81 = vector.shape_cast %80 : vector<1x1x128xf32> to vector<1x128xf32>
    %82 = vector.broadcast %81 : vector<1x128xf32> to vector<8x128xf32>
    %83 = arith.addf %79, %82 : vector<8x128xf32>
    %cst_55 = arith.constant 0.000000e+00 : f32
    %84 = vector.broadcast %cst_55 : f32 to vector<8x128xf32>
    %85 = arith.maximumf %83, %84 : vector<8x128xf32>
    %c0_56 = arith.constant 0 : index
    %c0_57 = arith.constant 0 : index
    %c0_58 = arith.constant 0 : index
    %86 = vector.load %arg20[%c0_56, %c0_57, %c0_58] : memref<1x128x128xf32, #tpu.memory_space<vmem>>, vector<1x128x128xf32>
    %87 = vector.shape_cast %86 : vector<1x128x128xf32> to vector<128x128xf32>
    %88 = arith.truncf %85 : vector<8x128xf32> to vector<8x128xbf16>
    %89 = arith.truncf %87 : vector<128x128xf32> to vector<128x128xbf16>
    %cst_59 = arith.constant dense<0.000000e+00> : vector<8x128xf32>
    %90 = tpu.matmul %88, %89, %cst_59 {dimension_numbers = #tpu.dot_dimension_numbers<[1], [0], [0], [1], [0, 0, 1, 1], [], []>} : vector<8x128xbf16>, vector<128x128xbf16>, vector<8x128xf32> -> vector<8x128xf32>
    %c0_60 = arith.constant 0 : index
    %c0_61 = arith.constant 0 : index
    %c0_62 = arith.constant 0 : index
    %91 = vector.load %arg21[%c0_60, %c0_61, %c0_62] : memref<1x1x128xf32, #tpu.memory_space<vmem>>, vector<1x1x128xf32>
    %92 = vector.shape_cast %91 : vector<1x1x128xf32> to vector<1x128xf32>
    %93 = vector.broadcast %92 : vector<1x128xf32> to vector<8x128xf32>
    %94 = arith.addf %90, %93 : vector<8x128xf32>
    %cst_63 = arith.constant 5.000000e-01 : f32
    %95 = vector.broadcast %cst_63 : f32 to vector<8x128xf32>
    %96 = arith.mulf %95, %94 : vector<8x128xf32>
    %97 = arith.addf %67, %96 : vector<8x128xf32>
    %c0_64 = arith.constant 0 : index
    %c0_65 = arith.constant 0 : index
    %98 = vector.load %arg31[%c0_64, %c0_65] : memref<8x128xf32, #tpu.memory_space<vmem>>, vector<8x128xf32>
    tpu.vector_store %arg31[%c0_64, %c0_65], %97 {strides = array<i32>} : memref<8x128xf32, #tpu.memory_space<vmem>>, vector<8x128xf32>,
    %c1_i32 = arith.constant 1 : i32
    %99 = arith.cmpi eq, %arg0, %c1_i32 : i32
    %100 = arith.extui %99 : i1 to i32
    %c0_i32_66 = arith.constant 0 : i32
    %101 = arith.cmpi ne, %100, %c0_i32_66 : i32
    scf.if %101 {
      %cst_67 = arith.constant 0.000000e+00 : f32
      %102 = vector.broadcast %cst_67 : f32 to vector<8x128xf32>
      %103 = arith.maximumf %70, %102 : vector<8x128xf32>
      %cst_68 = arith.constant 0.000000e+00 : f32
      %104 = vector.broadcast %cst_68 : f32 to vector<8x128xf32>
      %105 = arith.maximumf %73, %104 : vector<8x128xf32>
      %106 = tpu.concatenate %103, %105, %97 in 1 : vector<8x128xf32>, vector<8x128xf32>, vector<8x128xf32> -> vector<8x384xf32>
      %c0_69 = arith.constant 0 : index
      %c0_70 = arith.constant 0 : index
      %107 = vector.load %arg22[%c0_69, %c0_70] : memref<384x128xf32, #tpu.memory_space<vmem>>, vector<384x128xf32>
      %108 = arith.truncf %106 : vector<8x384xf32> to vector<8x384xbf16>
      %109 = arith.truncf %107 : vector<384x128xf32> to vector<384x128xbf16>
      %cst_71 = arith.constant dense<0.000000e+00> : vector<8x128xf32>
      %110 = tpu.matmul %108, %109, %cst_71 {dimension_numbers = #tpu.dot_dimension_numbers<[1], [0], [0], [1], [0, 0, 1, 1], [], []>} : vector<8x384xbf16>, vector<384x128xbf16>, vector<8x128xf32> -> vector<8x128xf32>
      %c0_72 = arith.constant 0 : index
      %c0_73 = arith.constant 0 : index
      %111 = vector.load %arg23[%c0_72, %c0_73] : memref<1x128xf32, #tpu.memory_space<vmem>>, vector<1x128xf32>
      %112 = vector.broadcast %111 : vector<1x128xf32> to vector<8x128xf32>
      %113 = arith.addf %110, %112 : vector<8x128xf32>
      %cst_74 = arith.constant 0.000000e+00 : f32
      %114 = vector.broadcast %cst_74 : f32 to vector<8x128xf32>
      %115 = arith.maximumf %113, %114 : vector<8x128xf32>
      %c0_75 = arith.constant 0 : index
      %c0_76 = arith.constant 0 : index
      %116 = vector.load %arg24[%c0_75, %c0_76] : memref<128x128xf32, #tpu.memory_space<vmem>>, vector<128x128xf32>
      %117 = arith.truncf %115 : vector<8x128xf32> to vector<8x128xbf16>
      %118 = arith.truncf %116 : vector<128x128xf32> to vector<128x128xbf16>
      %cst_77 = arith.constant dense<0.000000e+00> : vector<8x128xf32>
      %119 = tpu.matmul %117, %118, %cst_77 {dimension_numbers = #tpu.dot_dimension_numbers<[1], [0], [0], [1], [0, 0, 1, 1], [], []>} : vector<8x128xbf16>, vector<128x128xbf16>, vector<8x128xf32> -> vector<8x128xf32>
      %c0_78 = arith.constant 0 : index
      %c0_79 = arith.constant 0 : index
      %120 = vector.load %arg25[%c0_78, %c0_79] : memref<1x128xf32, #tpu.memory_space<vmem>>, vector<1x128xf32>
      %121 = vector.broadcast %120 : vector<1x128xf32> to vector<8x128xf32>
      %122 = arith.addf %119, %121 : vector<8x128xf32>
      %cst_80 = arith.constant 0.000000e+00 : f32
      %123 = vector.broadcast %cst_80 : f32 to vector<8x128xf32>
      %124 = arith.maximumf %122, %123 : vector<8x128xf32>
      %c0_81 = arith.constant 0 : index
      %c0_82 = arith.constant 0 : index
      %125 = vector.load %arg26[%c0_81, %c0_82] : memref<128x2xf32, #tpu.memory_space<vmem>>, vector<128x2xf32>
      %126 = arith.truncf %124 : vector<8x128xf32> to vector<8x128xbf16>
      %127 = arith.truncf %125 : vector<128x2xf32> to vector<128x2xbf16>
      %cst_83 = arith.constant dense<0.000000e+00> : vector<8x2xf32>
      %128 = tpu.matmul %126, %127, %cst_83 {dimension_numbers = #tpu.dot_dimension_numbers<[1], [0], [0], [1], [0, 0, 1, 1], [], []>} : vector<8x128xbf16>, vector<128x2xbf16>, vector<8x2xf32> -> vector<8x2xf32>
      %c0_84 = arith.constant 0 : index
      %c0_85 = arith.constant 0 : index
      %129 = vector.load %arg27[%c0_84, %c0_85] : memref<1x2xf32, #tpu.memory_space<vmem>>, vector<1x2xf32>
      %130 = vector.broadcast %129 : vector<1x2xf32> to vector<8x2xf32>
      %131 = arith.addf %128, %130 : vector<8x2xf32>
      %c0_86 = arith.constant 0 : index
      %c0_87 = arith.constant 0 : index
      %132 = vector.load %arg28[%c0_86, %c0_87] : memref<8x2xf32, #tpu.memory_space<vmem>>, vector<8x2xf32>
      tpu.vector_store %arg28[%c0_86, %c0_87], %131 {strides = array<i32>} : memref<8x2xf32, #tpu.memory_space<vmem>>, vector<8x2xf32>,
    } else {
    }
    return
  }
  func.func @transform_0(%arg0: i32) -> (i32, i32) {
    %c0_i32 = arith.constant 0 : i32
    %c0_i32_0 = arith.constant 0 : i32
    %c0_i32_1 = arith.constant 0 : i32
    return %c0_i32, %c0_i32_0 : i32, i32
  }
  func.func @transform_1(%arg0: i32) -> (i32, i32) {
    %c0_i32 = arith.constant 0 : i32
    %c0_i32_0 = arith.constant 0 : i32
    %c0_i32_1 = arith.constant 0 : i32
    return %c0_i32, %c0_i32_0 : i32, i32
  }
  func.func @transform_2(%arg0: i32) -> (i32, i32) {
    %c0_i32 = arith.constant 0 : i32
    %c0_i32_0 = arith.constant 0 : i32
    %c0_i32_1 = arith.constant 0 : i32
    return %c0_i32, %c0_i32_0 : i32, i32
  }
  func.func @transform_3(%arg0: i32) -> (i32, i32) {
    %c0_i32 = arith.constant 0 : i32
    %c0_i32_0 = arith.constant 0 : i32
    %c0_i32_1 = arith.constant 0 : i32
    return %c0_i32, %c0_i32_0 : i32, i32
  }
  func.func @transform_4(%arg0: i32) -> (i32, i32) {
    %c0_i32 = arith.constant 0 : i32
    %c0_i32_0 = arith.constant 0 : i32
    %c0_i32_1 = arith.constant 0 : i32
    return %c0_i32, %c0_i32_0 : i32, i32
  }
  func.func @transform_5(%arg0: i32) -> (i32, i32) {
    %c0_i32 = arith.constant 0 : i32
    %c0_i32_0 = arith.constant 0 : i32
    %c0_i32_1 = arith.constant 0 : i32
    return %c0_i32, %c0_i32_0 : i32, i32
  }
  func.func @transform_6(%arg0: i32) -> (i32, i32) {
    %c0_i32 = arith.constant 0 : i32
    %c0_i32_0 = arith.constant 0 : i32
    %c0_i32_1 = arith.constant 0 : i32
    return %c0_i32, %c0_i32_0 : i32, i32
  }
  func.func @transform_7(%arg0: i32) -> (i32, i32) {
    %c0_i32 = arith.constant 0 : i32
    %c0_i32_0 = arith.constant 0 : i32
    %c0_i32_1 = arith.constant 0 : i32
    return %c0_i32, %c0_i32_0 : i32, i32
  }
  func.func @transform_8(%arg0: i32) -> (i32, i32) {
    %c0_i32 = arith.constant 0 : i32
    %c0_i32_0 = arith.constant 0 : i32
    %c0_i32_1 = arith.constant 0 : i32
    return %c0_i32, %c0_i32_0 : i32, i32
  }
  func.func @transform_9(%arg0: i32) -> (i32, i32) {
    %c0_i32 = arith.constant 0 : i32
    %c0_i32_0 = arith.constant 0 : i32
    %c0_i32_1 = arith.constant 0 : i32
    return %c0_i32, %c0_i32_0 : i32, i32
  }
  func.func @transform_10(%arg0: i32) -> (i32, i32) {
    %c0_i32 = arith.constant 0 : i32
    %c0_i32_0 = arith.constant 0 : i32
    %c0_i32_1 = arith.constant 0 : i32
    return %c0_i32, %c0_i32_0 : i32, i32
  }
  func.func @transform_11(%arg0: i32) -> (i32, i32, i32) {
    %c0_i32 = arith.constant 0 : i32
    %c0_i32_0 = arith.constant 0 : i32
    %c0_i32_1 = arith.constant 0 : i32
    return %arg0, %c0_i32, %c0_i32_0 : i32, i32, i32
  }
  func.func @transform_12(%arg0: i32) -> (i32, i32, i32) {
    %c0_i32 = arith.constant 0 : i32
    %c0_i32_0 = arith.constant 0 : i32
    %c0_i32_1 = arith.constant 0 : i32
    return %arg0, %c0_i32, %c0_i32_0 : i32, i32, i32
  }
  func.func @transform_13(%arg0: i32) -> (i32, i32, i32) {
    %c0_i32 = arith.constant 0 : i32
    %c0_i32_0 = arith.constant 0 : i32
    %c0_i32_1 = arith.constant 0 : i32
    return %arg0, %c0_i32, %c0_i32_0 : i32, i32, i32
  }
  func.func @transform_14(%arg0: i32) -> (i32, i32, i32) {
    %c0_i32 = arith.constant 0 : i32
    %c0_i32_0 = arith.constant 0 : i32
    %c0_i32_1 = arith.constant 0 : i32
    return %arg0, %c0_i32, %c0_i32_0 : i32, i32, i32
  }
  func.func @transform_15(%arg0: i32) -> (i32, i32, i32) {
    %c0_i32 = arith.constant 0 : i32
    %c0_i32_0 = arith.constant 0 : i32
    %c0_i32_1 = arith.constant 0 : i32
    return %arg0, %c0_i32, %c0_i32_0 : i32, i32, i32
  }
  func.func @transform_16(%arg0: i32) -> (i32, i32, i32) {
    %c0_i32 = arith.constant 0 : i32
    %c0_i32_0 = arith.constant 0 : i32
    %c0_i32_1 = arith.constant 0 : i32
    return %arg0, %c0_i32, %c0_i32_0 : i32, i32, i32
  }
  func.func @transform_17(%arg0: i32) -> (i32, i32, i32) {
    %c0_i32 = arith.constant 0 : i32
    %c0_i32_0 = arith.constant 0 : i32
    %c0_i32_1 = arith.constant 0 : i32
    return %arg0, %c0_i32, %c0_i32_0 : i32, i32, i32
  }
  func.func @transform_18(%arg0: i32) -> (i32, i32, i32) {
    %c0_i32 = arith.constant 0 : i32
    %c0_i32_0 = arith.constant 0 : i32
    %c0_i32_1 = arith.constant 0 : i32
    return %arg0, %c0_i32, %c0_i32_0 : i32, i32, i32
  }
  func.func @transform_19(%arg0: i32) -> (i32, i32, i32) {
    %c0_i32 = arith.constant 0 : i32
    %c0_i32_0 = arith.constant 0 : i32
    %c0_i32_1 = arith.constant 0 : i32
    return %arg0, %c0_i32, %c0_i32_0 : i32, i32, i32
  }
  func.func @transform_20(%arg0: i32) -> (i32, i32, i32) {
    %c0_i32 = arith.constant 0 : i32
    %c0_i32_0 = arith.constant 0 : i32
    %c0_i32_1 = arith.constant 0 : i32
    return %arg0, %c0_i32, %c0_i32_0 : i32, i32, i32
  }
  func.func @transform_21(%arg0: i32) -> (i32, i32) {
    %c0_i32 = arith.constant 0 : i32
    %c0_i32_0 = arith.constant 0 : i32
    %c0_i32_1 = arith.constant 0 : i32
    return %c0_i32, %c0_i32_0 : i32, i32
  }
  func.func @transform_22(%arg0: i32) -> (i32, i32) {
    %c0_i32 = arith.constant 0 : i32
    %c0_i32_0 = arith.constant 0 : i32
    %c0_i32_1 = arith.constant 0 : i32
    return %c0_i32, %c0_i32_0 : i32, i32
  }
  func.func @transform_23(%arg0: i32) -> (i32, i32) {
    %c0_i32 = arith.constant 0 : i32
    %c0_i32_0 = arith.constant 0 : i32
    %c0_i32_1 = arith.constant 0 : i32
    return %c0_i32, %c0_i32_0 : i32, i32
  }
  func.func @transform_24(%arg0: i32) -> (i32, i32) {
    %c0_i32 = arith.constant 0 : i32
    %c0_i32_0 = arith.constant 0 : i32
    %c0_i32_1 = arith.constant 0 : i32
    return %c0_i32, %c0_i32_0 : i32, i32
  }
  func.func @transform_25(%arg0: i32) -> (i32, i32) {
    %c0_i32 = arith.constant 0 : i32
    %c0_i32_0 = arith.constant 0 : i32
    %c0_i32_1 = arith.constant 0 : i32
    return %c0_i32, %c0_i32_0 : i32, i32
  }
  func.func @transform_26(%arg0: i32) -> (i32, i32) {
    %c0_i32 = arith.constant 0 : i32
    %c0_i32_0 = arith.constant 0 : i32
    %c0_i32_1 = arith.constant 0 : i32
    return %c0_i32, %c0_i32_0 : i32, i32
  }
  func.func @transform_27(%arg0: i32) -> (i32, i32) {
    %c0_i32 = arith.constant 0 : i32
    %c0_i32_0 = arith.constant 0 : i32
    %c0_i32_1 = arith.constant 0 : i32
    return %c0_i32, %c0_i32_0 : i32, i32
  }
}

</mosaic_0001>

<llo_original>
// kernel: gine_forward.1
$region0: #{gine_forward.1}
  #allocation0 [shape = 'u32[]', space=smem, size = 0x4, offset = 0x4, fixed_abs, tag = 'smem constant byte address 0x4 - core index']
  #allocation1 [shape = 'u32[144,128]{1,0:T(1,128)}', space=vmem, size = 0x12000, scoped, tag = 'internal scratch']
  #allocation2 [shape = 'f32[16,128]{1,0:T(8,128)}', space=vmem, size = 0x2000, scoped, tag = 'scratch operand']
  #allocation3 [shape = 'f32[24,128]{1,0:T(8,128)}', space=vmem, size = 0x3000, scoped, tag = 'scratch operand']
  #allocation4 [shape = 'f32[8,128]{1,0:T(8,128)}', space=vmem, size = 0x1000, scoped, tag = 'scratch operand']
  %s0 = inlined_call_operand.vmem [shape: f32[16,8], index: 0, kind: input, shape index: {}]
  %s1 = inlined_call_operand.vmem [shape: f32[24,6], index: 1, kind: input, shape index: {}]
  %s2 = inlined_call_operand.vmem [shape: f32[8,6], index: 2, kind: input, shape index: {}]
  %s3 = inlined_call_operand.vmem [shape: bf16[24,16], index: 3, kind: input, shape index: {}]
  %s4 = inlined_call_operand.vmem [shape: bf16[16,24], index: 4, kind: input, shape index: {}]
  %s5 = inlined_call_operand.vmem [shape: bf16[8,16], index: 5, kind: input, shape index: {}]
  %s6 = inlined_call_operand.vmem [shape: bf16[8,16], index: 6, kind: input, shape index: {}]
  %s7 = inlined_call_operand.vmem [shape: f32[8,128], index: 7, kind: input, shape index: {}]
  %s8 = inlined_call_operand.vmem [shape: f32[1,128], index: 8, kind: input, shape index: {}]
  %s9 = inlined_call_operand.hbm [shape: f32[6,128], index: 9, kind: input, shape index: {}]
  %s10 = inlined_call_operand.hbm [shape: f32[1,128], index: 10, kind: input, shape index: {}]
  %s11 = inlined_call_operand.vmem [shape: f32[2,128,128], index: 11, kind: input, shape index: {}]
  %s12 = inlined_call_operand.hbm [shape: f32[2,1,128], index: 12, kind: input, shape index: {}]
  %s13 = inlined_call_operand.hbm [shape: f32[2,128,128], index: 13, kind: input, shape index: {}]
  %s14 = inlined_call_operand.hbm [shape: f32[2,1,128], index: 14, kind: input, shape index: {}]
  %s15 = inlined_call_operand.hbm [shape: f32[2,1,128], index: 15, kind: input, shape index: {}]
  %s16 = inlined_call_operand.hbm [shape: f32[2,1,128], index: 16, kind: input, shape index: {}]
  %s17 = inlined_call_operand.hbm [shape: f32[2,384,128], index: 17, kind: input, shape index: {}]
  %s18 = inlined_call_operand.hbm [shape: f32[2,1,128], index: 18, kind: input, shape index: {}]
  %s19 = inlined_call_operand.hbm [shape: f32[2,128,128], index: 19, kind: input, shape index: {}]
  %s20 = inlined_call_operand.hbm [shape: f32[2,1,128], index: 20, kind: input, shape index: {}]
  %s21 = inlined_call_operand.hbm [shape: f32[384,128], index: 21, kind: input, shape index: {}]
  %s22 = inlined_call_operand.hbm [shape: f32[1,128], index: 22, kind: input, shape index: {}]
  %s23 = inlined_call_operand.hbm [shape: f32[128,128], index: 23, kind: input, shape index: {}]
  %s24 = inlined_call_operand.vmem [shape: f32[1,128], index: 24, kind: input, shape index: {}]
  %s25 = inlined_call_operand.vmem [shape: f32[128,2], index: 25, kind: input, shape index: {}]
  %s26 = inlined_call_operand.vmem [shape: f32[1,2], index: 26, kind: input, shape index: {}]
  %s27 = inlined_call_operand.vmem [shape: f32[8,2], index: 27, kind: output, shape index: {}]
  %s28 = sld [smem:[#allocation0]]
  $region205: #{gine_forward.1} parent=0
    _
  %s30 = ssub.s32 1, %s28
  %s31 = scalar_select 0, %s30, %s28
  $region1: #{gine_forward.1} parent=0
    #allocation5 [shape = 'u8[4096]{0}', space=vmem, size = 0x1000, scoped, tag = 'input window, operand 9, single buffered']
    #allocation6 [shape = 's32[2]{0}', space=sflag, size = 0x8, scoped, tag = 'scoped memory for gine_forward.1']
    #allocation7 [shape = 'u8[512]{0}', space=vmem, size = 0x400, scoped, tag = 'input window, operand 10, single buffered']
    #allocation8 [shape = 's32[1]{0}', space=sflag, size = 0x4, scoped, tag = 'scoped memory for gine_forward.1']
    #allocation9 [shape = 'u8[1024]{0}', space=vmem, size = 0x400, scoped, tag = 'input window, operand 12']
    #allocation10 [shape = 'u8[131072]{0}', space=vmem, size = 0x20000, scoped, tag = 'input window, operand 13']
    #allocation11 [shape = 'u8[1024]{0}', space=vmem, size = 0x400, scoped, tag = 'input window, operand 14']
    #allocation12 [shape = 'u8[1024]{0}', space=vmem, size = 0x400, scoped, tag = 'input window, operand 15']
    #allocation13 [shape = 'u8[1024]{0}', space=vmem, size = 0x400, scoped, tag = 'input window, operand 16']
    #allocation14 [shape = 'u8[393216]{0}', space=vmem, size = 0x60000, scoped, tag = 'input window, operand 17']
    #allocation15 [shape = 'u8[1024]{0}', space=vmem, size = 0x400, scoped, tag = 'input window, operand 18']
    #allocation16 [shape = 'u8[131072]{0}', space=vmem, size = 0x20000, scoped, tag = 'input window, operand 19']
    #allocation17 [shape = 'u8[1024]{0}', space=vmem, size = 0x400, scoped, tag = 'input window, operand 20']
    #allocation18 [shape = 'u8[196608]{0}', space=vmem, size = 0x30000, scoped, tag = 'input window, operand 21, single buffered']
    #allocation19 [shape = 'u8[512]{0}', space=vmem, size = 0x400, scoped, tag = 'input window, operand 22, single buffered']
    #allocation20 [shape = 's32[1]{0}', space=sflag, size = 0x4, scoped, tag = 'scoped memory for gine_forward.1']
    #allocation21 [shape = 'u8[65536]{0}', space=vmem, size = 0x10000, scoped, tag = 'input window, operand 23, single buffered']
    %32 = vsyncpa [#allocation6], 0
    %33 = vsyncpa [#allocation8], 0
    %34 = vsyncpa [#allocation20], 0
    loop: start=0, step=1, limit=4
    $region2: #{gine_forward.1} parent=1 // loop_pre_header
      _
    $region3: #{gine_forward.1} parent=1 // loop_header
      %s36 = sphi 0, %s40
      %p37 = scmp.ge.s32.totalorder %s36, 4
      %s44 = sphi 0, %s44
      %s46 = sphi 0, %s44
      %s47 = sphi 0, %s46
      %s61 = sphi 0, %s47
      %s65 = sphi 0, %s65
      %s67 = sphi 0, %s65
      %s68 = sphi 0, %s67
      %s82 = sphi 0, %s68
      %s86 = sphi 0, %s86
      %s88 = sphi 0, %s86
      %s89 = sphi 0, %s88
      %s103 = sphi 0, %s89
      %s107 = sphi 0, %s107
      %s109 = sphi 0, %s107
      %s110 = sphi 0, %s109
      %s124 = sphi 0, %s110
      %s128 = sphi 0, %s128
      %s130 = sphi 0, %s128
      %s131 = sphi 0, %s130
      %s145 = sphi 0, %s131
      %s149 = sphi 0, %s149
      %s151 = sphi 0, %s149
      %s152 = sphi 0, %s151
      %s166 = sphi 0, %s152
      %s170 = sphi 0, %s170
      %s172 = sphi 0, %s170
      %s173 = sphi 0, %s172
      %s187 = sphi 0, %s173
      %s191 = sphi 0, %s191
      %s193 = sphi 0, %s191
      %s194 = sphi 0, %s193
      %s208 = sphi 0, %s194
      %s212 = sphi 0, %s212
      %s214 = sphi 0, %s212
      %s215 = sphi 0, %s214
      %s229 = sphi 0, %s215
      %s233 = sphi 0, %s233
      %s235 = sphi 0, %s233
      %s236 = sphi 0, %s235
      %s250 = sphi 0, %s236
      %s254 = sphi 0, %s254
      %s256 = sphi 0, %s254
      %s257 = sphi 0, %s256
      %s271 = sphi 0, %s257
      %s277 = sphi 0, %s279
      %s280 = sphi 0, %s277
      %s281 = sphi 0, %s280
      %s297 = sphi 0, %s281
      %s303 = sphi 0, %s305
      %s306 = sphi 0, %s303
      %s307 = sphi 0, %s306
      %s323 = sphi 0, %s307
      %s329 = sphi 0, %s331
      %s332 = sphi 0, %s329
      %s333 = sphi 0, %s332
      %s349 = sphi 0, %s333
      %s355 = sphi 0, %s357
      %s358 = sphi 0, %s355
      %s359 = sphi 0, %s358
      %s375 = sphi 0, %s359
      %s381 = sphi 0, %s383
      %s384 = sphi 0, %s381
      %s385 = sphi 0, %s384
      %s401 = sphi 0, %s385
      %s407 = sphi 0, %s409
      %s410 = sphi 0, %s407
      %s411 = sphi 0, %s410
      %s427 = sphi 0, %s411
      %s433 = sphi 0, %s435
      %s436 = sphi 0, %s433
      %s437 = sphi 0, %s436
      %s453 = sphi 0, %s437
      %s459 = sphi 0, %s461
      %s462 = sphi 0, %s459
      %s463 = sphi 0, %s462
      %s479 = sphi 0, %s463
      %s485 = sphi 0, %s487
      %s488 = sphi 0, %s485
      %s489 = sphi 0, %s488
      %s505 = sphi 0, %s489
      %s511 = sphi 0, %s513
      %s514 = sphi 0, %s511
      %s515 = sphi 0, %s514
      %s531 = sphi 0, %s515
      %s535 = sphi 0, %s535
      %s537 = sphi 0, %s535
      %s538 = sphi 0, %s537
      %s552 = sphi 0, %s538
      %s556 = sphi 0, %s556
      %s558 = sphi 0, %s556
      %s559 = sphi 0, %s558
      %s573 = sphi 0, %s559
      %s577 = sphi 0, %s577
      %s579 = sphi 0, %s577
      %s580 = sphi 0, %s579
      %s594 = sphi 0, %s580
      %s598 = sphi 0, %s598
      %s600 = sphi 0, %s598
      %s601 = sphi 0, %s600
      %s615 = sphi 0, %s601
      %s619 = sphi 0, %s619
      %s621 = sphi 0, %s619
      %s622 = sphi 0, %s621
      %s636 = sphi 0, %s622
      %s640 = sphi 0, %s640
      %s642 = sphi 0, %s640
      %s643 = sphi 0, %s642
      %s657 = sphi 0, %s643
      %s661 = sphi 0, %s661
      %s663 = sphi 0, %s661
      %s664 = sphi 0, %s663
      %s678 = sphi 0, %s664
    $region4: #{gine_forward.1} parent=1 // loop_header_branch
      %39 = sbr.rel (%p37) target = $region8
    $region5: #{gine_forward.1} parent=1 // loop_body
      %s41 = ssub.s32 %s36, 1
      %s42 = ssub.s32 %s36, 2
      %s43 = sadd.s32 %s36, 1
      %s45 = sadd.s32 %s44, 1
      %p48 = scmp.eq.s32.totalorder %s36, 1
      %p49 = scmp.ne.s32.totalorder %s44, %s46
      %p50 = scmp.eq.s32.totalorder %s36, 0
      %p51 = por %p49, %p50
      %p52 = scmp.ne.s32.totalorder %s44, %s46
      %p53 = scmp.eq.s32.totalorder %s41, 1
      %p54 = por %p52, %p53
      %p55 = scmp.ne.s32.totalorder %s46, %s47
      %p56 = scmp.eq.s32.totalorder %s41, 0
      %p57 = por %p55, %p56
      %p58 = scmp.ne.s32.totalorder %s46, %s47
      %p59 = scmp.eq.s32.totalorder %s42, 1
      %p60 = por %p58, %p59
      %p62 = scmp.ne.s32.totalorder %s47, %s61
      %p63 = scmp.eq.s32.totalorder %s42, 0
      %p64 = por %p62, %p63
      %s66 = sadd.s32 %s65, 1
      %p69 = scmp.eq.s32.totalorder %s36, 1
      %p70 = scmp.ne.s32.totalorder %s65, %s67
      %p71 = scmp.eq.s32.totalorder %s36, 0
      %p72 = por %p70, %p71
      %p73 = scmp.ne.s32.totalorder %s65, %s67
      %p74 = scmp.eq.s32.totalorder %s41, 1
      %p75 = por %p73, %p74
      %p76 = scmp.ne.s32.totalorder %s67, %s68
      %p77 = scmp.eq.s32.totalorder %s41, 0
      %p78 = por %p76, %p77
      %p79 = scmp.ne.s32.totalorder %s67, %s68
      %p80 = scmp.eq.s32.totalorder %s42, 1
      %p81 = por %p79, %p80
      %p83 = scmp.ne.s32.totalorder %s68, %s82
      %p84 = scmp.eq.s32.totalorder %s42, 0
      %p85 = por %p83, %p84
      %s87 = sadd.s32 %s86, 1
      %p90 = scmp.eq.s32.totalorder %s36, 1
      %p91 = scmp.ne.s32.totalorder %s86, %s88
      %p92 = scmp.eq.s32.totalorder %s36, 0
      %p93 = por %p91, %p92
      %p94 = scmp.ne.s32.totalorder %s86, %s88
      %p95 = scmp.eq.s32.totalorder %s41, 1
      %p96 = por %p94, %p95
      %p97 = scmp.ne.s32.totalorder %s88, %s89
      %p98 = scmp.eq.s32.totalorder %s41, 0
      %p99 = por %p97, %p98
      %p100 = scmp.ne.s32.totalorder %s88, %s89
      %p101 = scmp.eq.s32.totalorder %s42, 1
      %p102 = por %p100, %p101
      %p104 = scmp.ne.s32.totalorder %s89, %s103
      %p105 = scmp.eq.s32.totalorder %s42, 0
      %p106 = por %p104, %p105
      %s108 = sadd.s32 %s107, 1
      %p111 = scmp.eq.s32.totalorder %s36, 1
      %p112 = scmp.ne.s32.totalorder %s107, %s109
      %p113 = scmp.eq.s32.totalorder %s36, 0
      %p114 = por %p112, %p113
      %p115 = scmp.ne.s32.totalorder %s107, %s109
      %p116 = scmp.eq.s32.totalorder %s41, 1
      %p117 = por %p115, %p116
      %p118 = scmp.ne.s32.totalorder %s109, %s110
      %p119 = scmp.eq.s32.totalorder %s41, 0
      %p120 = por %p118, %p119
      %p121 = scmp.ne.s32.totalorder %s109, %s110
      %p122 = scmp.eq.s32.totalorder %s42, 1
      %p123 = por %p121, %p122
      %p125 = scmp.ne.s32.totalorder %s110, %s124
      %p126 = scmp.eq.s32.totalorder %s42, 0
      %p127 = por %p125, %p126
      %s129 = sadd.s32 %s128, 1
      %p132 = scmp.eq.s32.totalorder %s36, 1
      %p133 = scmp.ne.s32.totalorder %s128, %s130
      %p134 = scmp.eq.s32.totalorder %s36, 0
      %p135 = por %p133, %p134
      %p136 = scmp.ne.s32.totalorder %s128, %s130
      %p137 = scmp.eq.s32.totalorder %s41, 1
      %p138 = por %p136, %p137
      %p139 = scmp.ne.s32.totalorder %s130, %s131
      %p140 = scmp.eq.s32.totalorder %s41, 0
      %p141 = por %p139, %p140
      %p142 = scmp.ne.s32.totalorder %s130, %s131
      %p143 = scmp.eq.s32.totalorder %s42, 1
      %p144 = por %p142, %p143
      %p146 = scmp.ne.s32.totalorder %s131, %s145
      %p147 = scmp.eq.s32.totalorder %s42, 0
      %p148 = por %p146, %p147
      %s150 = sadd.s32 %s149, 1
      %p153 = scmp.eq.s32.totalorder %s36, 1
      %p154 = scmp.ne.s32.totalorder %s149, %s151
      %p155 = scmp.eq.s32.totalorder %s36, 0
      %p156 = por %p154, %p155
      %p157 = scmp.ne.s32.totalorder %s149, %s151
      %p158 = scmp.eq.s32.totalorder %s41, 1
      %p159 = por %p157, %p158
      %p160 = scmp.ne.s32.totalorder %s151, %s152
      %p161 = scmp.eq.s32.totalorder %s41, 0
      %p162 = por %p160, %p161
      %p163 = scmp.ne.s32.totalorder %s151, %s152
      %p164 = scmp.eq.s32.totalorder %s42, 1
      %p165 = por %p163, %p164
      %p167 = scmp.ne.s32.totalorder %s152, %s166
      %p168 = scmp.eq.s32.totalorder %s42, 0
      %p169 = por %p167, %p168
      %s171 = sadd.s32 %s170, 1
      %p174 = scmp.eq.s32.totalorder %s36, 1
      %p175 = scmp.ne.s32.totalorder %s170, %s172
      %p176 = scmp.eq.s32.totalorder %s36, 0
      %p177 = por %p175, %p176
      %p178 = scmp.ne.s32.totalorder %s170, %s172
      %p179 = scmp.eq.s32.totalorder %s41, 1
      %p180 = por %p178, %p179
      %p181 = scmp.ne.s32.totalorder %s172, %s173
      %p182 = scmp.eq.s32.totalorder %s41, 0
      %p183 = por %p181, %p182
      %p184 = scmp.ne.s32.totalorder %s172, %s173
      %p185 = scmp.eq.s32.totalorder %s42, 1
      %p186 = por %p184, %p185
      %p188 = scmp.ne.s32.totalorder %s173, %s187
      %p189 = scmp.eq.s32.totalorder %s42, 0
      %p190 = por %p188, %p189
      %s192 = sadd.s32 %s191, 1
      %p195 = scmp.eq.s32.totalorder %s36, 1
      %p196 = scmp.ne.s32.totalorder %s191, %s193
      %p197 = scmp.eq.s32.totalorder %s36, 0
      %p198 = por %p196, %p197
      %p199 = scmp.ne.s32.totalorder %s191, %s193
      %p200 = scmp.eq.s32.totalorder %s41, 1
      %p201 = por %p199, %p200
      %p202 = scmp.ne.s32.totalorder %s193, %s194
      %p203 = scmp.eq.s32.totalorder %s41, 0
      %p204 = por %p202, %p203
      %p205 = scmp.ne.s32.totalorder %s193, %s194
      %p206 = scmp.eq.s32.totalorder %s42, 1
      %p207 = por %p205, %p206
      %p209 = scmp.ne.s32.totalorder %s194, %s208
      %p210 = scmp.eq.s32.totalorder %s42, 0
      %p211 = por %p209, %p210
      %s213 = sadd.s32 %s212, 1
      %p216 = scmp.eq.s32.totalorder %s36, 1
      %p217 = scmp.ne.s32.totalorder %s212, %s214
      %p218 = scmp.eq.s32.totalorder %s36, 0
      %p219 = por %p217, %p218
      %p220 = scmp.ne.s32.totalorder %s212, %s214
      %p221 = scmp.eq.s32.totalorder %s41, 1
      %p222 = por %p220, %p221
      %p223 = scmp.ne.s32.totalorder %s214, %s215
      %p224 = scmp.eq.s32.totalorder %s41, 0
      %p225 = por %p223, %p224
      %p226 = scmp.ne.s32.totalorder %s214, %s215
      %p227 = scmp.eq.s32.totalorder %s42, 1
      %p228 = por %p226, %p227
      %p230 = scmp.ne.s32.totalorder %s215, %s229
      %p231 = scmp.eq.s32.totalorder %s42, 0
      %p232 = por %p230, %p231
      %s234 = sadd.s32 %s233, 1
      %p237 = scmp.eq.s32.totalorder %s36, 1
      %p238 = scmp.ne.s32.totalorder %s233, %s235
      %p239 = scmp.eq.s32.totalorder %s36, 0
      %p240 = por %p238, %p239
      %p241 = scmp.ne.s32.totalorder %s233, %s235
      %p242 = scmp.eq.s32.totalorder %s41, 1
      %p243 = por %p241, %p242
      %p244 = scmp.ne.s32.totalorder %s235, %s236
      %p245 = scmp.eq.s32.totalorder %s41, 0
      %p246 = por %p244, %p245
      %p247 = scmp.ne.s32.totalorder %s235, %s236
      %p248 = scmp.eq.s32.totalorder %s42, 1
      %p249 = por %p247, %p248
      %p251 = scmp.ne.s32.totalorder %s236, %s250
      %p252 = scmp.eq.s32.totalorder %s42, 0
      %p253 = por %p251, %p252
      %s255 = sadd.s32 %s254, 1
      %p258 = scmp.eq.s32.totalorder %s36, 1
      %p259 = scmp.ne.s32.totalorder %s254, %s256
      %p260 = scmp.eq.s32.totalorder %s36, 0
      %p261 = por %p259, %p260
      %p262 = scmp.ne.s32.totalorder %s254, %s256
      %p263 = scmp.eq.s32.totalorder %s41, 1
      %p264 = por %p262, %p263
      %p265 = scmp.ne.s32.totalorder %s256, %s257
      %p266 = scmp.eq.s32.totalorder %s41, 0
      %p267 = por %p265, %p266
      %p268 = scmp.ne.s32.totalorder %s256, %s257
      %p269 = scmp.eq.s32.totalorder %s42, 1
      %p270 = por %p268, %p269
      %p272 = scmp.ne.s32.totalorder %s257, %s271
      %p273 = scmp.eq.s32.totalorder %s42, 0
      %p274 = por %p272, %p273
      %s275 = ssub.s32 %s36, %s43
      %p276 = scmp.eq.s32.totalorder %s275, 0
      %s278 = sadd.s32 %s277, 1
      %s279 = scalar_select %p276, %s277, %s278
      %p282 = pneg %p276
      %p283 = scmp.eq.s32.totalorder %s36, 1
      %p284 = por %p282, %p283
      %p285 = scmp.ne.s32.totalorder %s277, %s280
      %p286 = scmp.eq.s32.totalorder %s36, 0
      %p287 = por %p285, %p286
      %p288 = scmp.ne.s32.totalorder %s277, %s280
      %p289 = scmp.eq.s32.totalorder %s41, 1
      %p290 = por %p288, %p289
      %p291 = scmp.ne.s32.totalorder %s280, %s281
      %p292 = scmp.eq.s32.totalorder %s41, 0
      %p293 = por %p291, %p292
      %p294 = scmp.ne.s32.totalorder %s280, %s281
      %p295 = scmp.eq.s32.totalorder %s42, 1
      %p296 = por %p294, %p295
      %p298 = scmp.ne.s32.totalorder %s281, %s297
      %p299 = scmp.eq.s32.totalorder %s42, 0
      %p300 = por %p298, %p299
      %s301 = ssub.s32 %s36, %s43
      %p302 = scmp.eq.s32.totalorder %s301, 0
      %s304 = sadd.s32 %s303, 1
      %s305 = scalar_select %p302, %s303, %s304
      %p308 = pneg %p302
      %p309 = scmp.eq.s32.totalorder %s36, 1
      %p310 = por %p308, %p309
      %p311 = scmp.ne.s32.totalorder %s303, %s306
      %p312 = scmp.eq.s32.totalorder %s36, 0
      %p313 = por %p311, %p312
      %p314 = scmp.ne.s32.totalorder %s303, %s306
      %p315 = scmp.eq.s32.totalorder %s41, 1
      %p316 = por %p314, %p315
      %p317 = scmp.ne.s32.totalorder %s306, %s307
      %p318 = scmp.eq.s32.totalorder %s41, 0
      %p319 = por %p317, %p318
      %p320 = scmp.ne.s32.totalorder %s306, %s307
      %p321 = scmp.eq.s32.totalorder %s42, 1
      %p322 = por %p320, %p321
      %p324 = scmp.ne.s32.totalorder %s307, %s323
      %p325 = scmp.eq.s32.totalorder %s42, 0
      %p326 = por %p324, %p325
      %s327 = ssub.s32 %s36, %s43
      %p328 = scmp.eq.s32.totalorder %s327, 0
      %s330 = sadd.s32 %s329, 1
      %s331 = scalar_select %p328, %s329, %s330
      %p334 = pneg %p328
      %p335 = scmp.eq.s32.totalorder %s36, 1
      %p336 = por %p334, %p335
      %p337 = scmp.ne.s32.totalorder %s329, %s332
      %p338 = scmp.eq.s32.totalorder %s36, 0
      %p339 = por %p337, %p338
      %p340 = scmp.ne.s32.totalorder %s329, %s332
      %p341 = scmp.eq.s32.totalorder %s41, 1
      %p342 = por %p340, %p341
      %p343 = scmp.ne.s32.totalorder %s332, %s333
      %p344 = scmp.eq.s32.totalorder %s41, 0
      %p345 = por %p343, %p344
      %p346 = scmp.ne.s32.totalorder %s332, %s333
      %p347 = scmp.eq.s32.totalorder %s42, 1
      %p348 = por %p346, %p347
      %p350 = scmp.ne.s32.totalorder %s333, %s349
      %p351 = scmp.eq.s32.totalorder %s42, 0
      %p352 = por %p350, %p351
      %s353 = ssub.s32 %s36, %s43
      %p354 = scmp.eq.s32.totalorder %s353, 0
      %s356 = sadd.s32 %s355, 1
      %s357 = scalar_select %p354, %s355, %s356
      %p360 = pneg %p354
      %p361 = scmp.eq.s32.totalorder %s36, 1
      %p362 = por %p360, %p361
      %p363 = scmp.ne.s32.totalorder %s355, %s358
      %p364 = scmp.eq.s32.totalorder %s36, 0
      %p365 = por %p363, %p364
      %p366 = scmp.ne.s32.totalorder %s355, %s358
      %p367 = scmp.eq.s32.totalorder %s41, 1
      %p368 = por %p366, %p367
      %p369 = scmp.ne.s32.totalorder %s358, %s359
      %p370 = scmp.eq.s32.totalorder %s41, 0
      %p371 = por %p369, %p370
      %p372 = scmp.ne.s32.totalorder %s358, %s359
      %p373 = scmp.eq.s32.totalorder %s42, 1
      %p374 = por %p372, %p373
      %p376 = scmp.ne.s32.totalorder %s359, %s375
      %p377 = scmp.eq.s32.totalorder %s42, 0
      %p378 = por %p376, %p377
      %s379 = ssub.s32 %s36, %s43
      %p380 = scmp.eq.s32.totalorder %s379, 0
      %s382 = sadd.s32 %s381, 1
      %s383 = scalar_select %p380, %s381, %s382
      %p386 = pneg %p380
      %p387 = scmp.eq.s32.totalorder %s36, 1
      %p388 = por %p386, %p387
      %p389 = scmp.ne.s32.totalorder %s381, %s384
      %p390 = scmp.eq.s32.totalorder %s36, 0
      %p391 = por %p389, %p390
      %p392 = scmp.ne.s32.totalorder %s381, %s384
      %p393 = scmp.eq.s32.totalorder %s41, 1
      %p394 = por %p392, %p393
      %p395 = scmp.ne.s32.totalorder %s384, %s385
      %p396 = scmp.eq.s32.totalorder %s41, 0
      %p397 = por %p395, %p396
      %p398 = scmp.ne.s32.totalorder %s384, %s385
      %p399 = scmp.eq.s32.totalorder %s42, 1
      %p400 = por %p398, %p399
      %p402 = scmp.ne.s32.totalorder %s385, %s401
      %p403 = scmp.eq.s32.totalorder %s42, 0
      %p404 = por %p402, %p403
      %s405 = ssub.s32 %s36, %s43
      %p406 = scmp.eq.s32.totalorder %s405, 0
      %s408 = sadd.s32 %s407, 1
      %s409 = scalar_select %p406, %s407, %s408
      %p412 = pneg %p406
      %p413 = scmp.eq.s32.totalorder %s36, 1
      %p414 = por %p412, %p413
      %p415 = scmp.ne.s32.totalorder %s407, %s410
      %p416 = scmp.eq.s32.totalorder %s36, 0
      %p417 = por %p415, %p416
      %p418 = scmp.ne.s32.totalorder %s407, %s410
      %p419 = scmp.eq.s32.totalorder %s41, 1
      %p420 = por %p418, %p419
      %p421 = scmp.ne.s32.totalorder %s410, %s411
      %p422 = scmp.eq.s32.totalorder %s41, 0
      %p423 = por %p421, %p422
      %p424 = scmp.ne.s32.totalorder %s410, %s411
      %p425 = scmp.eq.s32.totalorder %s42, 1
      %p426 = por %p424, %p425
      %p428 = scmp.ne.s32.totalorder %s411, %s427
      %p429 = scmp.eq.s32.totalorder %s42, 0
      %p430 = por %p428, %p429
      %s431 = ssub.s32 %s36, %s43
      %p432 = scmp.eq.s32.totalorder %s431, 0
      %s434 = sadd.s32 %s433, 1
      %s435 = scalar_select %p432, %s433, %s434
      %p438 = pneg %p432
      %p439 = scmp.eq.s32.totalorder %s36, 1
      %p440 = por %p438, %p439
      %p441 = scmp.ne.s32.totalorder %s433, %s436
      %p442 = scmp.eq.s32.totalorder %s36, 0
      %p443 = por %p441, %p442
      %p444 = scmp.ne.s32.totalorder %s433, %s436
      %p445 = scmp.eq.s32.totalorder %s41, 1
      %p446 = por %p444, %p445
      %p447 = scmp.ne.s32.totalorder %s436, %s437
      %p448 = scmp.eq.s32.totalorder %s41, 0
      %p449 = por %p447, %p448
      %p450 = scmp.ne.s32.totalorder %s436, %s437
      %p451 = scmp.eq.s32.totalorder %s42, 1
      %p452 = por %p450, %p451
      %p454 = scmp.ne.s32.totalorder %s437, %s453
      %p455 = scmp.eq.s32.totalorder %s42, 0
      %p456 = por %p454, %p455
      %s457 = ssub.s32 %s36, %s43
      %p458 = scmp.eq.s32.totalorder %s457, 0
      %s460 = sadd.s32 %s459, 1
      %s461 = scalar_select %p458, %s459, %s460
      %p464 = pneg %p458
      %p465 = scmp.eq.s32.totalorder %s36, 1
      %p466 = por %p464, %p465
      %p467 = scmp.ne.s32.totalorder %s459, %s462
      %p468 = scmp.eq.s32.totalorder %s36, 0
      %p469 = por %p467, %p468
      %p470 = scmp.ne.s32.totalorder %s459, %s462
      %p471 = scmp.eq.s32.totalorder %s41, 1
      %p472 = por %p470, %p471
      %p473 = scmp.ne.s32.totalorder %s462, %s463
      %p474 = scmp.eq.s32.totalorder %s41, 0
      %p475 = por %p473, %p474
      %p476 = scmp.ne.s32.totalorder %s462, %s463
      %p477 = scmp.eq.s32.totalorder %s42, 1
      %p478 = por %p476, %p477
      %p480 = scmp.ne.s32.totalorder %s463, %s479
      %p481 = scmp.eq.s32.totalorder %s42, 0
      %p482 = por %p480, %p481
      %s483 = ssub.s32 %s36, %s43
      %p484 = scmp.eq.s32.totalorder %s483, 0
      %s486 = sadd.s32 %s485, 1
      %s487 = scalar_select %p484, %s485, %s486
      %p490 = pneg %p484
      %p491 = scmp.eq.s32.totalorder %s36, 1
      %p492 = por %p490, %p491
      %p493 = scmp.ne.s32.totalorder %s485, %s488
      %p494 = scmp.eq.s32.totalorder %s36, 0
      %p495 = por %p493, %p494
      %p496 = scmp.ne.s32.totalorder %s485, %s488
      %p497 = scmp.eq.s32.totalorder %s41, 1
      %p498 = por %p496, %p497
      %p499 = scmp.ne.s32.totalorder %s488, %s489
      %p500 = scmp.eq.s32.totalorder %s41, 0
      %p501 = por %p499, %p500
      %p502 = scmp.ne.s32.totalorder %s488, %s489
      %p503 = scmp.eq.s32.totalorder %s42, 1
      %p504 = por %p502, %p503
      %p506 = scmp.ne.s32.totalorder %s489, %s505
      %p507 = scmp.eq.s32.totalorder %s42, 0
      %p508 = por %p506, %p507
      %s509 = ssub.s32 %s36, %s43
      %p510 = scmp.eq.s32.totalorder %s509, 0
      %s512 = sadd.s32 %s511, 1
      %s513 = scalar_select %p510, %s511, %s512
      %p516 = pneg %p510
      %p517 = scmp.eq.s32.totalorder %s36, 1
      %p518 = por %p516, %p517
      %p519 = scmp.ne.s32.totalorder %s511, %s514
      %p520 = scmp.eq.s32.totalorder %s36, 0
      %p521 = por %p519, %p520
      %p522 = scmp.ne.s32.totalorder %s511, %s514
      %p523 = scmp.eq.s32.totalorder %s41, 1
      %p524 = por %p522, %p523
      %p525 = scmp.ne.s32.totalorder %s514, %s515
      %p526 = scmp.eq.s32.totalorder %s41, 0
      %p527 = por %p525, %p526
      %p528 = scmp.ne.s32.totalorder %s514, %s515
      %p529 = scmp.eq.s32.totalorder %s42, 1
      %p530 = por %p528, %p529
      %p532 = scmp.ne.s32.totalorder %s515, %s531
      %p533 = scmp.eq.s32.totalorder %s42, 0
      %p534 = por %p532, %p533
      %s536 = sadd.s32 %s535, 1
      %p539 = scmp.eq.s32.totalorder %s36, 1
      %p540 = scmp.ne.s32.totalorder %s535, %s537
      %p541 = scmp.eq.s32.totalorder %s36, 0
      %p542 = por %p540, %p541
      %p543 = scmp.ne.s32.totalorder %s535, %s537
      %p544 = scmp.eq.s32.totalorder %s41, 1
      %p545 = por %p543, %p544
      %p546 = scmp.ne.s32.totalorder %s537, %s538
      %p547 = scmp.eq.s32.totalorder %s41, 0
      %p548 = por %p546, %p547
      %p549 = scmp.ne.s32.totalorder %s537, %s538
      %p550 = scmp.eq.s32.totalorder %s42, 1
      %p551 = por %p549, %p550
      %p553 = scmp.ne.s32.totalorder %s538, %s552
      %p554 = scmp.eq.s32.totalorder %s42, 0
      %p555 = por %p553, %p554
      %s557 = sadd.s32 %s556, 1
      %p560 = scmp.eq.s32.totalorder %s36, 1
      %p561 = scmp.ne.s32.totalorder %s556, %s558
      %p562 = scmp.eq.s32.totalorder %s36, 0
      %p563 = por %p561, %p562
      %p564 = scmp.ne.s32.totalorder %s556, %s558
      %p565 = scmp.eq.s32.totalorder %s41, 1
      %p566 = por %p564, %p565
      %p567 = scmp.ne.s32.totalorder %s558, %s559
      %p568 = scmp.eq.s32.totalorder %s41, 0
      %p569 = por %p567, %p568
      %p570 = scmp.ne.s32.totalorder %s558, %s559
      %p571 = scmp.eq.s32.totalorder %s42, 1
      %p572 = por %p570, %p571
      %p574 = scmp.ne.s32.totalorder %s559, %s573
      %p575 = scmp.eq.s32.totalorder %s42, 0
      %p576 = por %p574, %p575
      %s578 = sadd.s32 %s577, 1
      %p581 = scmp.eq.s32.totalorder %s36, 1
      %p582 = scmp.ne.s32.totalorder %s577, %s579
      %p583 = scmp.eq.s32.totalorder %s36, 0
      %p584 = por %p582, %p583
      %p585 = scmp.ne.s32.totalorder %s577, %s579
      %p586 = scmp.eq.s32.totalorder %s41, 1
      %p587 = por %p585, %p586
      %p588 = scmp.ne.s32.totalorder %s579, %s580
      %p589 = scmp.eq.s32.totalorder %s41, 0
      %p590 = por %p588, %p589
      %p591 = scmp.ne.s32.totalorder %s579, %s580
      %p592 = scmp.eq.s32.totalorder %s42, 1
      %p593 = por %p591, %p592
      %p595 = scmp.ne.s32.totalorder %s580, %s594
      %p596 = scmp.eq.s32.totalorder %s42, 0
      %p597 = por %p595, %p596
      %s599 = sadd.s32 %s598, 1
      %p602 = scmp.eq.s32.totalorder %s36, 1
      %p603 = scmp.ne.s32.totalorder %s598, %s600
      %p604 = scmp.eq.s32.totalorder %s36, 0
      %p605 = por %p603, %p604
      %p606 = scmp.ne.s32.totalorder %s598, %s600
      %p607 = scmp.eq.s32.totalorder %s41, 1
      %p608 = por %p606, %p607
      %p609 = scmp.ne.s32.totalorder %s600, %s601
      %p610 = scmp.eq.s32.totalorder %s41, 0
      %p611 = por %p609, %p610
      %p612 = scmp.ne.s32.totalorder %s600, %s601
      %p613 = scmp.eq.s32.totalorder %s42, 1
      %p614 = por %p612, %p613
      %p616 = scmp.ne.s32.totalorder %s601, %s615
      %p617 = scmp.eq.s32.totalorder %s42, 0
      %p618 = por %p616, %p617
      %s620 = sadd.s32 %s619, 1
      %p623 = scmp.eq.s32.totalorder %s36, 1
      %p624 = scmp.ne.s32.totalorder %s619, %s621
      %p625 = scmp.eq.s32.totalorder %s36, 0
      %p626 = por %p624, %p625
      %p627 = scmp.ne.s32.totalorder %s619, %s621
      %p628 = scmp.eq.s32.totalorder %s41, 1
      %p629 = por %p627, %p628
      %p630 = scmp.ne.s32.totalorder %s621, %s622
      %p631 = scmp.eq.s32.totalorder %s41, 0
      %p632 = por %p630, %p631
      %p633 = scmp.ne.s32.totalorder %s621, %s622
      %p634 = scmp.eq.s32.totalorder %s42, 1
      %p635 = por %p633, %p634
      %p637 = scmp.ne.s32.totalorder %s622, %s636
      %p638 = scmp.eq.s32.totalorder %s42, 0
      %p639 = por %p637, %p638
      %s641 = sadd.s32 %s640, 1
      %p644 = scmp.eq.s32.totalorder %s36, 1
      %p645 = scmp.ne.s32.totalorder %s640, %s642
      %p646 = scmp.eq.s32.totalorder %s36, 0
      %p647 = por %p645, %p646
      %p648 = scmp.ne.s32.totalorder %s640, %s642
      %p649 = scmp.eq.s32.totalorder %s41, 1
      %p650 = por %p648, %p649
      %p651 = scmp.ne.s32.totalorder %s642, %s643
      %p652 = scmp.eq.s32.totalorder %s41, 0
      %p653 = por %p651, %p652
      %p654 = scmp.ne.s32.totalorder %s642, %s643
      %p655 = scmp.eq.s32.totalorder %s42, 1
      %p656 = por %p654, %p655
      %p658 = scmp.ne.s32.totalorder %s643, %s657
      %p659 = scmp.eq.s32.totalorder %s42, 0
      %p660 = por %p658, %p659
      %s662 = sadd.s32 %s661, 1
      %p665 = scmp.eq.s32.totalorder %s36, 1
      %p666 = scmp.ne.s32.totalorder %s661, %s663
      %p667 = scmp.eq.s32.totalorder %s36, 0
      %p668 = por %p666, %p667
      %p669 = scmp.ne.s32.totalorder %s661, %s663
      %p670 = scmp.eq.s32.totalorder %s41, 1
      %p671 = por %p669, %p670
      %p672 = scmp.ne.s32.totalorder %s663, %s664
      %p673 = scmp.eq.s32.totalorder %s41, 0
      %p674 = por %p672, %p673
      %p675 = scmp.ne.s32.totalorder %s663, %s664
      %p676 = scmp.eq.s32.totalorder %s42, 1
      %p677 = por %p675, %p676
      %p679 = scmp.ne.s32.totalorder %s664, %s678
      %p680 = scmp.eq.s32.totalorder %s42, 0
      %p681 = por %p679, %p680
      %p682 = scmp.le.s32.totalorder 1, %s36
      %p683 = scmp.lt.s32.totalorder %s36, 3
      %p684 = pnand %p682, %p683
      %p685 = pneg %p684
      // Predicated region
      $region9: #{gine_forward.1} parent=5 // pred_check
        _
      $region10: #{gine_forward.1} parent=5 // pred_check_branch
        %687 = sbr.rel (%p684) target = $region12
      $region11: #{gine_forward.1} parent=5 // pred_region
        %s688 = ssub.s32 %s36, 1
        // Predicated region
        $region13: #{gine_forward.1} parent=11 // pred_check
          %p689 = pneg %p57
        $region14: #{gine_forward.1} parent=11 // pred_check_branch
          %691 = sbr.rel (%p689) target = $region16
        $region15: #{gine_forward.1} parent=11 // pred_region
          _
        $region16: #{gine_forward.1} parent=11 // pred_fallthru
          _
        // Predicated region
        $region17: #{gine_forward.1} parent=11 // pred_check
          %p692 = pneg %p78
        $region18: #{gine_forward.1} parent=11 // pred_check_branch
          %694 = sbr.rel (%p692) target = $region20
        $region19: #{gine_forward.1} parent=11 // pred_region
          _
        $region20: #{gine_forward.1} parent=11 // pred_fallthru
          _
        // Predicated region
        $region21: #{gine_forward.1} parent=11 // pred_check
          %p695 = pneg %p99
        $region22: #{gine_forward.1} parent=11 // pred_check_branch
          %697 = sbr.rel (%p695) target = $region24
        $region23: #{gine_forward.1} parent=11 // pred_region
          _
        $region24: #{gine_forward.1} parent=11 // pred_fallthru
          _
        // Predicated region
        $region25: #{gine_forward.1} parent=11 // pred_check
          %p698 = pneg %p120
        $region26: #{gine_forward.1} parent=11 // pred_check_branch
          %700 = sbr.rel (%p698) target = $region28
        $region27: #{gine_forward.1} parent=11 // pred_region
          _
        $region28: #{gine_forward.1} parent=11 // pred_fallthru
          _
        // Predicated region
        $region29: #{gine_forward.1} parent=11 // pred_check
          %p701 = pneg %p141
        $region30: #{gine_forward.1} parent=11 // pred_check_branch
          %703 = sbr.rel (%p701) target = $region32
        $region31: #{gine_forward.1} parent=11 // pred_region
          _
        $region32: #{gine_forward.1} parent=11 // pred_fallthru
          _
        // Predicated region
        $region33: #{gine_forward.1} parent=11 // pred_check
          %p704 = pneg %p162
        $region34: #{gine_forward.1} parent=11 // pred_check_branch
          %706 = sbr.rel (%p704) target = $region36
        $region35: #{gine_forward.1} parent=11 // pred_region
          _
        $region36: #{gine_forward.1} parent=11 // pred_fallthru
          _
        // Predicated region
        $region37: #{gine_forward.1} parent=11 // pred_check
          %p707 = pneg %p183
        $region38: #{gine_forward.1} parent=11 // pred_check_branch
          %709 = sbr.rel (%p707) target = $region40
        $region39: #{gine_forward.1} parent=11 // pred_region
          _
        $region40: #{gine_forward.1} parent=11 // pred_fallthru
          _
        // Predicated region
        $region41: #{gine_forward.1} parent=11 // pred_check
          %p710 = pneg %p204
        $region42: #{gine_forward.1} parent=11 // pred_check_branch
          %712 = sbr.rel (%p710) target = $region44
        $region43: #{gine_forward.1} parent=11 // pred_region
          _
        $region44: #{gine_forward.1} parent=11 // pred_fallthru
          _
        // Predicated region
        $region45: #{gine_forward.1} parent=11 // pred_check
          %p713 = pneg %p225
        $region46: #{gine_forward.1} parent=11 // pred_check_branch
          %715 = sbr.rel (%p713) target = $region48
        $region47: #{gine_forward.1} parent=11 // pred_region
          _
        $region48: #{gine_forward.1} parent=11 // pred_fallthru
          _
        // Predicated region
        $region49: #{gine_forward.1} parent=11 // pred_check
          %p716 = pneg %p246
        $region50: #{gine_forward.1} parent=11 // pred_check_branch
          %718 = sbr.rel (%p716) target = $region52
        $region51: #{gine_forward.1} parent=11 // pred_region
          %s720 = ssub.s32 128, 128
          %721 = vsyncadd [#allocation6], %s720
          %s723 = sshll.u32 [#allocation5], 4
          %s724 = int_to_ptr.vmem [resolvable:$true] %s723
          %726 = dma.hbm_to_vmem [thread:$0]  %s9, 128, %s724, [#allocation6]
        $region52: #{gine_forward.1} parent=11 // pred_fallthru
          _
        // Predicated region
        $region53: #{gine_forward.1} parent=11 // pred_check
          %p727 = pneg %p267
        $region54: #{gine_forward.1} parent=11 // pred_check_branch
          %729 = sbr.rel (%p727) target = $region56
        $region55: #{gine_forward.1} parent=11 // pred_region
          %s731 = ssub.s32 16, 16
          %732 = vsyncadd [#allocation8], %s731
          %s734 = sshll.u32 [#allocation7], 4
          %s735 = int_to_ptr.vmem [resolvable:$true] %s734
          %737 = dma.hbm_to_vmem [thread:$0]  %s10, 16, %s735, [#allocation8]
        $region56: #{gine_forward.1} parent=11 // pred_fallthru
          _
        // Predicated region
        $region57: #{gine_forward.1} parent=11 // pred_check
          %p738 = pneg %p548
        $region58: #{gine_forward.1} parent=11 // pred_check_branch
          %740 = sbr.rel (%p738) target = $region60
        $region59: #{gine_forward.1} parent=11 // pred_region
          %s742 = ssub.s32 6144, 6144
          %743 = vsyncadd [#allocation8], %s742
          %s744 = sshll.u32 [#allocation18], 4
          %s745 = int_to_ptr.vmem [resolvable:$true] %s744
          %750 = dma.hbm_to_vmem [thread:$0]  %s21, 6144, %s745, [#allocation8], 128, 128, 8
        $region60: #{gine_forward.1} parent=11 // pred_fallthru
          _
        // Predicated region
        $region61: #{gine_forward.1} parent=11 // pred_check
          %p751 = pneg %p569
        $region62: #{gine_forward.1} parent=11 // pred_check_branch
          %753 = sbr.rel (%p751) target = $region64
        $region63: #{gine_forward.1} parent=11 // pred_region
          %s755 = ssub.s32 16, 16
          %756 = vsyncadd [#allocation20], %s755
          %s758 = sshll.u32 [#allocation19], 4
          %s759 = int_to_ptr.vmem [resolvable:$true] %s758
          %761 = dma.hbm_to_vmem [thread:$0]  %s22, 16, %s759, [#allocation20]
        $region64: #{gine_forward.1} parent=11 // pred_fallthru
          _
        // Predicated region
        $region65: #{gine_forward.1} parent=11 // pred_check
          %p762 = pneg %p590
        $region66: #{gine_forward.1} parent=11 // pred_check_branch
          %764 = sbr.rel (%p762) target = $region68
        $region67: #{gine_forward.1} parent=11 // pred_region
          %s766 = ssub.s32 2048, 2048
          %767 = vsyncadd [#allocation20], %s766
          %s768 = sshll.u32 [#allocation21], 4
          %s769 = int_to_ptr.vmem [resolvable:$true] %s768
          %774 = dma.hbm_to_vmem [thread:$0]  %s23, 2048, %s769, [#allocation20], 128, 128, 8
        $region68: #{gine_forward.1} parent=11 // pred_fallthru
          _
        // Predicated region
        $region69: #{gine_forward.1} parent=11 // pred_check
          %p775 = pneg %p611
        $region70: #{gine_forward.1} parent=11 // pred_check_branch
          %777 = sbr.rel (%p775) target = $region72
        $region71: #{gine_forward.1} parent=11 // pred_region
          _
        $region72: #{gine_forward.1} parent=11 // pred_fallthru
          _
        // Predicated region
        $region73: #{gine_forward.1} parent=11 // pred_check
          %p778 = pneg %p632
        $region74: #{gine_forward.1} parent=11 // pred_check_branch
          %780 = sbr.rel (%p778) target = $region76
        $region75: #{gine_forward.1} parent=11 // pred_region
          _
        $region76: #{gine_forward.1} parent=11 // pred_fallthru
          _
        // Predicated region
        $region77: #{gine_forward.1} parent=11 // pred_check
          %p781 = pneg %p653
        $region78: #{gine_forward.1} parent=11 // pred_check_branch
          %783 = sbr.rel (%p781) target = $region80
        $region79: #{gine_forward.1} parent=11 // pred_region
          _
        $region80: #{gine_forward.1} parent=11 // pred_fallthru
          _
      $region12: #{gine_forward.1} parent=5 // pred_fallthru
        _
      %p784 = scmp.lt.s32.totalorder %s36, 2
      // Predicated region
      $region81: #{gine_forward.1} parent=5 // pred_check
        %p785 = pneg %p784
      $region82: #{gine_forward.1} parent=5 // pred_check_branch
        %787 = sbr.rel (%p785) target = $region84
      $region83: #{gine_forward.1} parent=5 // pred_region
        // Predicated region
        $region85: #{gine_forward.1} parent=83 // pred_check
          %p788 = pneg %p287
        $region86: #{gine_forward.1} parent=83 // pred_check_branch
          %790 = sbr.rel (%p788) target = $region88
        $region87: #{gine_forward.1} parent=83 // pred_region
          %p791 = scmp.lt.s32.totalorder %s36, 1
          %s792 = scalar_select %p791, %s36, 1
          %s793 = smul.addr %s792, 16
          %s794 = smul.addr %s793, 8
          %s795 = scalar_lea.vmem %s11, %s794
        $region88: #{gine_forward.1} parent=83 // pred_fallthru
          _
        // Predicated region
        $region89: #{gine_forward.1} parent=83 // pred_check
          %p796 = pneg %p313
        $region90: #{gine_forward.1} parent=83 // pred_check_branch
          %798 = sbr.rel (%p796) target = $region92
        $region91: #{gine_forward.1} parent=83 // pred_region
          %s799 = sand.u32 %s36, 1
          %s800 = scalar_lea.sflag [#allocation6], %s799
          %s801 = sand.u32 %s303, 1
          %s802 = scalar_lea.vmem [#allocation9], %s801
          %s804 = ssub.s32 16, 16
          %805 = vsyncadd %s800, %s804
          %s806 = smul.addr %s36, 16
          %s807 = scalar_lea.hbm %s12, %s806
          %s809 = sshll.u32 %s802, 4
          %s810 = int_to_ptr.vmem [resolvable:$true] %s809
          %812 = dma.hbm_to_vmem [thread:$0]  %s807, 16, %s810, %s800
        $region92: #{gine_forward.1} parent=83 // pred_fallthru
          _
        // Predicated region
        $region93: #{gine_forward.1} parent=83 // pred_check
          %p813 = pneg %p339
        $region94: #{gine_forward.1} parent=83 // pred_check_branch
          %815 = sbr.rel (%p813) target = $region96
        $region95: #{gine_forward.1} parent=83 // pred_region
          %s816 = sand.u32 %s36, 1
          %s817 = scalar_lea.sflag [#allocation6], %s816
          %s818 = sand.u32 %s329, 1
          %s819 = smul.addr %s818, 128
          %s820 = scalar_lea.vmem [#allocation10], %s819
          %s822 = ssub.s32 2048, 2048
          %823 = vsyncadd %s817, %s822
          %s824 = smul.addr %s36, 16
          %s825 = smul.addr %s824, 128
          %s826 = scalar_lea.hbm %s13, %s825
          %s827 = sshll.u32 %s820, 4
          %s828 = int_to_ptr.vmem [resolvable:$true] %s827
          %833 = dma.hbm_to_vmem [thread:$0]  %s826, 2048, %s828, %s817, 128, 128, 8
        $region96: #{gine_forward.1} parent=83 // pred_fallthru
          _
        // Predicated region
        $region97: #{gine_forward.1} parent=83 // pred_check
          %p834 = pneg %p365
        $region98: #{gine_forward.1} parent=83 // pred_check_branch
          %836 = sbr.rel (%p834) target = $region100
        $region99: #{gine_forward.1} parent=83 // pred_region
          %s837 = sand.u32 %s36, 1
          %s838 = scalar_lea.sflag [#allocation6], %s837
          %s839 = sand.u32 %s355, 1
          %s840 = scalar_lea.vmem [#allocation11], %s839
          %s842 = ssub.s32 16, 16
          %843 = vsyncadd %s838, %s842
          %s844 = smul.addr %s36, 16
          %s845 = scalar_lea.hbm %s14, %s844
          %s847 = sshll.u32 %s840, 4
          %s848 = int_to_ptr.vmem [resolvable:$true] %s847
          %850 = dma.hbm_to_vmem [thread:$0]  %s845, 16, %s848, %s838
        $region100: #{gine_forward.1} parent=83 // pred_fallthru
          _
        // Predicated region
        $region101: #{gine_forward.1} parent=83 // pred_check
          %p851 = pneg %p391
        $region102: #{gine_forward.1} parent=83 // pred_check_branch
          %853 = sbr.rel (%p851) target = $region104
        $region103: #{gine_forward.1} parent=83 // pred_region
          %s854 = sand.u32 %s36, 1
          %s855 = scalar_lea.sflag [#allocation6], %s854
          %s856 = sand.u32 %s381, 1
          %s857 = scalar_lea.vmem [#allocation12], %s856
          %s859 = ssub.s32 16, 16
          %860 = vsyncadd %s855, %s859
          %s861 = smul.addr %s36, 16
          %s862 = scalar_lea.hbm %s15, %s861
          %s864 = sshll.u32 %s857, 4
          %s865 = int_to_ptr.vmem [resolvable:$true] %s864
          %867 = dma.hbm_to_vmem [thread:$0]  %s862, 16, %s865, %s855
        $region104: #{gine_forward.1} parent=83 // pred_fallthru
          _
        // Predicated region
        $region105: #{gine_forward.1} parent=83 // pred_check
          %p868 = pneg %p417
        $region106: #{gine_forward.1} parent=83 // pred_check_branch
          %870 = sbr.rel (%p868) target = $region108
        $region107: #{gine_forward.1} parent=83 // pred_region
          %s871 = sand.u32 %s36, 1
          %s872 = scalar_lea.sflag [#allocation6], %s871
          %s873 = sand.u32 %s407, 1
          %s874 = scalar_lea.vmem [#allocation13], %s873
          %s876 = ssub.s32 16, 16
          %877 = vsyncadd %s872, %s876
          %s878 = smul.addr %s36, 16
          %s879 = scalar_lea.hbm %s16, %s878
          %s881 = sshll.u32 %s874, 4
          %s882 = int_to_ptr.vmem [resolvable:$true] %s881
          %884 = dma.hbm_to_vmem [thread:$0]  %s879, 16, %s882, %s872
        $region108: #{gine_forward.1} parent=83 // pred_fallthru
          _
        // Predicated region
        $region109: #{gine_forward.1} parent=83 // pred_check
          %p885 = pneg %p443
        $region110: #{gine_forward.1} parent=83 // pred_check_branch
          %887 = sbr.rel (%p885) target = $region112
        $region111: #{gine_forward.1} parent=83 // pred_region
          %s888 = sand.u32 %s36, 1
          %s889 = scalar_lea.sflag [#allocation6], %s888
          %s890 = sand.u32 %s433, 1
          %s891 = smul.addr %s890, 384
          %s892 = scalar_lea.vmem [#allocation14], %s891
          %s894 = ssub.s32 6144, 6144
          %895 = vsyncadd %s889, %s894
          %s896 = smul.addr %s36, 48
          %s897 = smul.addr %s896, 128
          %s898 = scalar_lea.hbm %s17, %s897
          %s899 = sshll.u32 %s892, 4
          %s900 = int_to_ptr.vmem [resolvable:$true] %s899
          %905 = dma.hbm_to_vmem [thread:$0]  %s898, 6144, %s900, %s889, 128, 128, 8
        $region112: #{gine_forward.1} parent=83 // pred_fallthru
          _
        // Predicated region
        $region113: #{gine_forward.1} parent=83 // pred_check
          %p906 = pneg %p469
        $region114: #{gine_forward.1} parent=83 // pred_check_branch
          %908 = sbr.rel (%p906) target = $region116
        $region115: #{gine_forward.1} parent=83 // pred_region
          %s909 = sand.u32 %s36, 1
          %s910 = scalar_lea.sflag [#allocation6], %s909
          %s911 = sand.u32 %s459, 1
          %s912 = scalar_lea.vmem [#allocation15], %s911
          %s914 = ssub.s32 16, 16
          %915 = vsyncadd %s910, %s914
          %s916 = smul.addr %s36, 16
          %s917 = scalar_lea.hbm %s18, %s916
          %s919 = sshll.u32 %s912, 4
          %s920 = int_to_ptr.vmem [resolvable:$true] %s919
          %922 = dma.hbm_to_vmem [thread:$0]  %s917, 16, %s920, %s910
        $region116: #{gine_forward.1} parent=83 // pred_fallthru
          _
        // Predicated region
        $region117: #{gine_forward.1} parent=83 // pred_check
          %p923 = pneg %p495
        $region118: #{gine_forward.1} parent=83 // pred_check_branch
          %925 = sbr.rel (%p923) target = $region120
        $region119: #{gine_forward.1} parent=83 // pred_region
          %s926 = sand.u32 %s36, 1
          %s927 = scalar_lea.sflag [#allocation6], %s926
          %s928 = sand.u32 %s485, 1
          %s929 = smul.addr %s928, 128
          %s930 = scalar_lea.vmem [#allocation16], %s929
          %s932 = ssub.s32 2048, 2048
          %933 = vsyncadd %s927, %s932
          %s934 = smul.addr %s36, 16
          %s935 = smul.addr %s934, 128
          %s936 = scalar_lea.hbm %s19, %s935
          %s937 = sshll.u32 %s930, 4
          %s938 = int_to_ptr.vmem [resolvable:$true] %s937
          %943 = dma.hbm_to_vmem [thread:$0]  %s936, 2048, %s938, %s927, 128, 128, 8
        $region120: #{gine_forward.1} parent=83 // pred_fallthru
          _
        // Predicated region
        $region121: #{gine_forward.1} parent=83 // pred_check
          %p944 = pneg %p521
        $region122: #{gine_forward.1} parent=83 // pred_check_branch
          %946 = sbr.rel (%p944) target = $region124
        $region123: #{gine_forward.1} parent=83 // pred_region
          %s947 = sand.u32 %s36, 1
          %s948 = scalar_lea.sflag [#allocation6], %s947
          %s949 = sand.u32 %s511, 1
          %s950 = scalar_lea.vmem [#allocation17], %s949
          %s952 = ssub.s32 16, 16
          %953 = vsyncadd %s948, %s952
          %s954 = smul.addr %s36, 16
          %s955 = scalar_lea.hbm %s20, %s954
          %s957 = sshll.u32 %s950, 4
          %s958 = int_to_ptr.vmem [resolvable:$true] %s957
          %960 = dma.hbm_to_vmem [thread:$0]  %s955, 16, %s958, %s948
        $region124: #{gine_forward.1} parent=83 // pred_fallthru
          _
      $region84: #{gine_forward.1} parent=5 // pred_fallthru
        _
      %p961 = scmp.le.s32.totalorder 1, %s36
      %p962 = scmp.lt.s32.totalorder %s36, 3
      %p963 = pnand %p961, %p962
      %p964 = pneg %p963
      // Predicated region
      $region125: #{gine_forward.1} parent=5 // pred_check
        _
      $region126: #{gine_forward.1} parent=5 // pred_check_branch
        %966 = sbr.rel (%p963) target = $region128
      $region127: #{gine_forward.1} parent=5 // pred_region
        %s967 = ssub.s32 %s36, 1
        // Predicated region
        $region129: #{gine_forward.1} parent=127 // pred_check
          %p968 = pneg %p246
        $region130: #{gine_forward.1} parent=127 // pred_check_branch
          %970 = sbr.rel (%p968) target = $region132
        $region131: #{gine_forward.1} parent=127 // pred_region
          %971 = dma.done [#allocation6], 128
        $region132: #{gine_forward.1} parent=127 // pred_fallthru
          _
        // Predicated region
        $region133: #{gine_forward.1} parent=127 // pred_check
          %p972 = pneg %p267
        $region134: #{gine_forward.1} parent=127 // pred_check_branch
          %974 = sbr.rel (%p972) target = $region136
        $region135: #{gine_forward.1} parent=127 // pred_region
          %975 = dma.done [#allocation8], 16
        $region136: #{gine_forward.1} parent=127 // pred_fallthru
          _
        %s976 = sand.u32 %s41, 1
        %s977 = scalar_lea.sflag [#allocation6], %s976
        %s978 = sand.u32 %s306, 1
        %s979 = scalar_lea.vmem [#allocation9], %s978
        // Predicated region
        $region137: #{gine_forward.1} parent=127 // pred_check
          %p980 = pneg %p319
        $region138: #{gine_forward.1} parent=127 // pred_check_branch
          %982 = sbr.rel (%p980) target = $region140
        $region139: #{gine_forward.1} parent=127 // pred_region
          %983 = dma.done %s977, 16
        $region140: #{gine_forward.1} parent=127 // pred_fallthru
          _
        %s984 = sand.u32 %s41, 1
        %s985 = scalar_lea.sflag [#allocation6], %s984
        %s986 = sand.u32 %s332, 1
        %s987 = smul.addr %s986, 128
        %s988 = scalar_lea.vmem [#allocation10], %s987
        // Predicated region
        $region141: #{gine_forward.1} parent=127 // pred_check
          %p989 = pneg %p345
        $region142: #{gine_forward.1} parent=127 // pred_check_branch
          %991 = sbr.rel (%p989) target = $region144
        $region143: #{gine_forward.1} parent=127 // pred_region
          %992 = dma.done %s985, 2048
        $region144: #{gine_forward.1} parent=127 // pred_fallthru
          _
        %s993 = sand.u32 %s41, 1
        %s994 = scalar_lea.sflag [#allocation6], %s993
        %s995 = sand.u32 %s358, 1
        %s996 = scalar_lea.vmem [#allocation11], %s995
        // Predicated region
        $region145: #{gine_forward.1} parent=127 // pred_check
          %p997 = pneg %p371
        $region146: #{gine_forward.1} parent=127 // pred_check_branch
          %999 = sbr.rel (%p997) target = $region148
        $region147: #{gine_forward.1} parent=127 // pred_region
          %1000 = dma.done %s994, 16
        $region148: #{gine_forward.1} parent=127 // pred_fallthru
          _
        %s1001 = sand.u32 %s41, 1
        %s1002 = scalar_lea.sflag [#allocation6], %s1001
        %s1003 = sand.u32 %s384, 1
        %s1004 = scalar_lea.vmem [#allocation12], %s1003
        // Predicated region
        $region149: #{gine_forward.1} parent=127 // pred_check
          %p1005 = pneg %p397
        $region150: #{gine_forward.1} parent=127 // pred_check_branch
          %1007 = sbr.rel (%p1005) target = $region152
        $region151: #{gine_forward.1} parent=127 // pred_region
          %1008 = dma.done %s1002, 16
        $region152: #{gine_forward.1} parent=127 // pred_fallthru
          _
        %s1009 = sand.u32 %s41, 1
        %s1010 = scalar_lea.sflag [#allocation6], %s1009
        %s1011 = sand.u32 %s410, 1
        %s1012 = scalar_lea.vmem [#allocation13], %s1011
        // Predicated region
        $region153: #{gine_forward.1} parent=127 // pred_check
          %p1013 = pneg %p423
        $region154: #{gine_forward.1} parent=127 // pred_check_branch
          %1015 = sbr.rel (%p1013) target = $region156
        $region155: #{gine_forward.1} parent=127 // pred_region
          %1016 = dma.done %s1010, 16
        $region156: #{gine_forward.1} parent=127 // pred_fallthru
          _
        %s1017 = sand.u32 %s41, 1
        %s1018 = scalar_lea.sflag [#allocation6], %s1017
        %s1019 = sand.u32 %s436, 1
        %s1020 = smul.addr %s1019, 384
        %s1021 = scalar_lea.vmem [#allocation14], %s1020
        // Predicated region
        $region157: #{gine_forward.1} parent=127 // pred_check
          %p1022 = pneg %p449
        $region158: #{gine_forward.1} parent=127 // pred_check_branch
          %1024 = sbr.rel (%p1022) target = $region160
        $region159: #{gine_forward.1} parent=127 // pred_region
          %1025 = dma.done %s1018, 6144
        $region160: #{gine_forward.1} parent=127 // pred_fallthru
          _
        %s1026 = sand.u32 %s41, 1
        %s1027 = scalar_lea.sflag [#allocation6], %s1026
        %s1028 = sand.u32 %s462, 1
        %s1029 = scalar_lea.vmem [#allocation15], %s1028
        // Predicated region
        $region161: #{gine_forward.1} parent=127 // pred_check
          %p1030 = pneg %p475
        $region162: #{gine_forward.1} parent=127 // pred_check_branch
          %1032 = sbr.rel (%p1030) target = $region164
        $region163: #{gine_forward.1} parent=127 // pred_region
          %1033 = dma.done %s1027, 16
        $region164: #{gine_forward.1} parent=127 // pred_fallthru
          _
        %s1034 = sand.u32 %s41, 1
        %s1035 = scalar_lea.sflag [#allocation6], %s1034
        %s1036 = sand.u32 %s488, 1
        %s1037 = smul.addr %s1036, 128
        %s1038 = scalar_lea.vmem [#allocation16], %s1037
        // Predicated region
        $region165: #{gine_forward.1} parent=127 // pred_check
          %p1039 = pneg %p501
        $region166: #{gine_forward.1} parent=127 // pred_check_branch
          %1041 = sbr.rel (%p1039) target = $region168
        $region167: #{gine_forward.1} parent=127 // pred_region
          %1042 = dma.done %s1035, 2048
        $region168: #{gine_forward.1} parent=127 // pred_fallthru
          _
        %s1043 = sand.u32 %s41, 1
        %s1044 = scalar_lea.sflag [#allocation6], %s1043
        %s1045 = sand.u32 %s514, 1
        %s1046 = scalar_lea.vmem [#allocation17], %s1045
        // Predicated region
        $region169: #{gine_forward.1} parent=127 // pred_check
          %p1047 = pneg %p527
        $region170: #{gine_forward.1} parent=127 // pred_check_branch
          %1049 = sbr.rel (%p1047) target = $region172
        $region171: #{gine_forward.1} parent=127 // pred_region
          %1050 = dma.done %s1044, 16
        $region172: #{gine_forward.1} parent=127 // pred_fallthru
          _
        // Predicated region
        $region173: #{gine_forward.1} parent=127 // pred_check
          %p1051 = pneg %p548
        $region174: #{gine_forward.1} parent=127 // pred_check_branch
          %1053 = sbr.rel (%p1051) target = $region176
        $region175: #{gine_forward.1} parent=127 // pred_region
          %1054 = dma.done [#allocation8], 6144
        $region176: #{gine_forward.1} parent=127 // pred_fallthru
          _
        // Predicated region
        $region177: #{gine_forward.1} parent=127 // pred_check
          %p1055 = pneg %p569
        $region178: #{gine_forward.1} parent=127 // pred_check_branch
          %1057 = sbr.rel (%p1055) target = $region180
        $region179: #{gine_forward.1} parent=127 // pred_region
          %1058 = dma.done [#allocation20], 16
        $region180: #{gine_forward.1} parent=127 // pred_fallthru
          _
        // Predicated region
        $region181: #{gine_forward.1} parent=127 // pred_check
          %p1059 = pneg %p590
        $region182: #{gine_forward.1} parent=127 // pred_check_branch
          %1061 = sbr.rel (%p1059) target = $region184
        $region183: #{gine_forward.1} parent=127 // pred_region
          %1062 = dma.done [#allocation20], 2048
        $region184: #{gine_forward.1} parent=127 // pred_fallthru
          _
        %p1063 = pneg %p57
        %p1064 = pneg %p54
        %p1065 = pneg %p78
        %p1066 = pneg %p75
        %p1067 = pneg %p99
        %p1068 = pneg %p96
        %p1069 = pneg %p120
        %p1070 = pneg %p117
        %p1071 = pneg %p141
        %p1072 = pneg %p138
        %p1073 = pneg %p162
        %p1074 = pneg %p159
        %p1075 = pneg %p183
        %p1076 = pneg %p180
        %p1077 = pneg %p204
        %p1078 = pneg %p201
        %p1079 = pneg %p225
        %p1080 = pneg %p222
        %p1081 = pneg %p246
        %p1082 = pneg %p243
        %p1083 = pneg %p267
        %p1084 = pneg %p264
        %p1085 = scmp.lt.s32.totalorder %s41, 1
        %s1086 = scalar_select %p1085, %s41, 1
        %s1087 = smul.addr %s1086, 16
        %s1088 = smul.addr %s1087, 8
        %s1089 = scalar_lea.vmem %s11, %s1088
        %p1090 = pneg %p293
        %p1091 = pneg %p290
        %s1092 = sand.u32 %s41, 1
        %s1093 = scalar_lea.sflag [#allocation6], %s1092
        %s1094 = sand.u32 %s306, 1
        %s1095 = scalar_lea.vmem [#allocation9], %s1094
        %p1096 = pneg %p319
        %p1097 = pneg %p316
        %s1098 = sand.u32 %s41, 1
        %s1099 = scalar_lea.sflag [#allocation6], %s1098
        %s1100 = sand.u32 %s332, 1
        %s1101 = smul.addr %s1100, 128
        %s1102 = scalar_lea.vmem [#allocation10], %s1101
        %p1103 = pneg %p345
        %p1104 = pneg %p342
        %s1105 = sand.u32 %s41, 1
        %s1106 = scalar_lea.sflag [#allocation6], %s1105
        %s1107 = sand.u32 %s358, 1
        %s1108 = scalar_lea.vmem [#allocation11], %s1107
        %p1109 = pneg %p371
        %p1110 = pneg %p368
        %s1111 = sand.u32 %s41, 1
        %s1112 = scalar_lea.sflag [#allocation6], %s1111
        %s1113 = sand.u32 %s384, 1
        %s1114 = scalar_lea.vmem [#allocation12], %s1113
        %p1115 = pneg %p397
        %p1116 = pneg %p394
        %s1117 = sand.u32 %s41, 1
        %s1118 = scalar_lea.sflag [#allocation6], %s1117
        %s1119 = sand.u32 %s410, 1
        %s1120 = scalar_lea.vmem [#allocation13], %s1119
        %p1121 = pneg %p423
        %p1122 = pneg %p420
        %s1123 = sand.u32 %s41, 1
        %s1124 = scalar_lea.sflag [#allocation6], %s1123
        %s1125 = sand.u32 %s436, 1
        %s1126 = smul.addr %s1125, 384
        %s1127 = scalar_lea.vmem [#allocation14], %s1126
        %p1128 = pneg %p449
        %p1129 = pneg %p446
        %s1130 = sand.u32 %s41, 1
        %s1131 = scalar_lea.sflag [#allocation6], %s1130
        %s1132 = sand.u32 %s462, 1
        %s1133 = scalar_lea.vmem [#allocation15], %s1132
        %p1134 = pneg %p475
        %p1135 = pneg %p472
        %s1136 = sand.u32 %s41, 1
        %s1137 = scalar_lea.sflag [#allocation6], %s1136
        %s1138 = sand.u32 %s488, 1
        %s1139 = smul.addr %s1138, 128
        %s1140 = scalar_lea.vmem [#allocation16], %s1139
        %p1141 = pneg %p501
        %p1142 = pneg %p498
        %s1143 = sand.u32 %s41, 1
        %s1144 = scalar_lea.sflag [#allocation6], %s1143
        %s1145 = sand.u32 %s514, 1
        %s1146 = scalar_lea.vmem [#allocation17], %s1145
        %p1147 = pneg %p527
        %p1148 = pneg %p524
        %p1149 = pneg %p548
        %p1150 = pneg %p545
        %p1151 = pneg %p569
        %p1152 = pneg %p566
        %p1153 = pneg %p590
        %p1154 = pneg %p587
        %p1155 = pneg %p611
        %p1156 = pneg %p608
        %p1157 = pneg %p632
        %p1158 = pneg %p629
        %p1159 = pneg %p653
        %p1160 = pneg %p650
        %p1161 = pneg %p674
        %p1162 = pneg %p671
        %p1163 = scmp.lt.s32.totalorder %s41, 1
        %s1164 = scalar_select %p1163, %s41, 1
        %s1165 = smul.addr %s1164, 16
        %s1166 = smul.addr %s1165, 8
        %s1167 = scalar_lea.vmem %s11, %s1166
        %p1169 = scmp.eq.s32.totalorder %s41, 0
        // Predicated region
        $region185: #{gine_forward.1} parent=127 // pred_check
          %p1170 = pneg %p1169
        $region186: #{gine_forward.1} parent=127 // pred_check_branch
          %1172 = sbr.rel (%p1170) target = $region188
        $region187: #{gine_forward.1} parent=127 // pred_region
          %v1173 = vld [vmem:[%s0] sm:$0xff]
          %v1174 = vld [vmem:[%s0 + $0x8] sm:$0xff]
          %v1175 = vld [vmem:[%s7] sm:$0xff]
          %v1176 = vpack.c.bf16 %v1174, %v1173
          %v1177 = vpack.c.bf16 %v1175, %v1175
          %v1178 = vld [vmem:[%s8] sm:$0x1]
          %v1180 = vlaneseq
          %v1181 = vshrl.u32 %v1180, 7
          %v1182 = vsub.s32 0, %v1181
          %v1183 = vrot.slane %v1178, %v1182
          %vm1185 = vcmask 64512
          %v1187 = vsel %vm1185, %v1176, 0
          %vm1189 = vcmask 1043456
          %v1191 = vsel %vm1189, %v1177, 0
          %1193 = vmatprep.subr.bf16.mxu0 0
          %1194 = vmatpush1.bf16.msra.mxu0 %v1191
          %1195 = vmatprep.subr.bf16.mxu0 0
          %1196 = vmatpush1.bf16.msra.mxu0 0
          %1197 = vmatprep.subr.bf16.mxu0 0
          %1198 = vmatpush1.bf16.msra.mxu0 0
          %1199 = vmatprep.subr.bf16.mxu0 0
          %1200 = vmatpush1.bf16.msra.mxu0 0
          %1201 = vmatprep.subr.bf16.mxu0 0
          %1202 = vmatpush1.bf16.msra.mxu0 0
          %1203 = vmatprep.subr.bf16.mxu0 0
          %1204 = vmatpush1.bf16.msra.mxu0 0
          %1205 = vmatprep.subr.bf16.mxu0 0
          %1206 = vmatpush1.bf16.msra.mxu0 0
          %1207 = vmatprep.subr.bf16.mxu0 0
          %1208 = vmatpush1.bf16.msra.mxu0 0
          %1209 = vmatprep.subr.bf16.mxu0 0
          %1210 = vmatpush1.bf16.msra.mxu0 0
          %1211 = vmatprep.subr.bf16.mxu0 0
          %1212 = vmatpush1.bf16.msra.mxu0 0
          %1213 = vmatprep.subr.bf16.mxu0 0
          %1214 = vmatpush1.bf16.msra.mxu0 0
          %1215 = vmatprep.subr.bf16.mxu0 0
          %1216 = vmatpush1.bf16.msra.mxu0 0
          %1217 = vmatprep.subr.bf16.mxu0 0
          %1218 = vmatpush1.bf16.msra.mxu0 0
          %1219 = vmatprep.subr.bf16.mxu0 0
          %1220 = vmatpush1.bf16.msra.mxu0 0
          %1221 = vmatprep.subr.bf16.mxu0 0
          %1222 = vmatpush1.bf16.msra.mxu0 0
          %1223 = vmatprep.subr.bf16.mxu0 0
          %1224 = vmatpush1.bf16.msra.mxu0 0
          %1225 = vmatprep.mubr.bf16.mxu0 0
          %1226 = vmatmul.mubr.bf16.gmra.mrb[0].mxu0 %v1187
          %v1227 = vpop.f32.mrb[0].mxu0
          %v1228 = vadd.f32 %v1183, %v1227
          %v1229 = vpop.f32.mrb[0].mxu0
          %v1230 = vpop.f32.mrb[0].mxu0
          %v1231 = vadd.f32 %v1183, %v1230
          %v1232 = vpop.f32.mrb[0].mxu0
          %1233 = vdwg.mxu0
          %1234 = vst [vmem:[#allocation2] sm:$0xff] %v1228
          %1235 = vst [vmem:[#allocation2 + $0x8] sm:$0xff] %v1231
          %v1236 = vld [vmem:[%s1] sm:$0xff]
          %v1237 = vld [vmem:[%s1 + $0x8] sm:$0xff]
          %v1238 = vld [vmem:[%s1 + $0x10] sm:$0xff]
          %v1239 = vld [vmem:[#allocation5] sm:$0x3f]
          %v1240 = vpack.c.bf16 %v1237, %v1236
          %v1241 = vpack.c.bf16 %v1238, %v1238
          %v1242 = vpack.c.bf16 %v1239, %v1239
          %v1243 = vld [vmem:[#allocation7] sm:$0x1]
          %v1245 = vlaneseq
          %v1246 = vshrl.u32 %v1245, 7
          %v1247 = vsub.s32 0, %v1246
          %v1248 = vrot.slane %v1243, %v1247
          %vm1250 = vcmask 48128
          %v1252 = vsel %vm1250, %v1240, 0
          %v1255 = vsel %vm1250, %v1241, 0
          %vm1257 = vcmask 1042432
          %v1259 = vsel %vm1257, %v1242, 0
          %1261 = vmatprep.subr.bf16.mxu0 0
          %1262 = vmatpush1.bf16.msra.mxu0 %v1259
          %1263 = vmatprep.subr.bf16.mxu0 0
          %1264 = vmatpush1.bf16.msra.mxu0 0
          %1265 = vmatprep.subr.bf16.mxu0 0
          %1266 = vmatpush1.bf16.msra.mxu0 0
          %1267 = vmatprep.subr.bf16.mxu0 0
          %1268 = vmatpush1.bf16.msra.mxu0 0
          %1269 = vmatprep.subr.bf16.mxu0 0
          %1270 = vmatpush1.bf16.msra.mxu0 0
          %1271 = vmatprep.subr.bf16.mxu0 0
          %1272 = vmatpush1.bf16.msra.mxu0 0
          %1273 = vmatprep.subr.bf16.mxu0 0
          %1274 = vmatpush1.bf16.msra.mxu0 0
          %1275 = vmatprep.subr.bf16.mxu0 0
          %1276 = vmatpush1.bf16.msra.mxu0 0
          %1277 = vmatprep.subr.bf16.mxu0 0
          %1278 = vmatpush1.bf16.msra.mxu0 0
          %1279 = vmatprep.subr.bf16.mxu0 0
          %1280 = vmatpush1.bf16.msra.mxu0 0
          %1281 = vmatprep.subr.bf16.mxu0 0
          %1282 = vmatpush1.bf16.msra.mxu0 0
          %1283 = vmatprep.subr.bf16.mxu0 0
          %1284 = vmatpush1.bf16.msra.mxu0 0
          %1285 = vmatprep.subr.bf16.mxu0 0
          %1286 = vmatpush1.bf16.msra.mxu0 0
          %1287 = vmatprep.subr.bf16.mxu0 0
          %1288 = vmatpush1.bf16.msra.mxu0 0
          %1289 = vmatprep.subr.bf16.mxu0 0
          %1290 = vmatpush1.bf16.msra.mxu0 0
          %1291 = vmatprep.subr.bf16.mxu0 0
          %1292 = vmatpush1.bf16.msra.mxu0 0
          %1293 = vmatprep.mubr.bf16.mxu0 0
          %1294 = vmatmul.mubr.bf16.gmra.mrb[0].mxu0 %v1252
          %v1295 = vpop.f32.mrb[0].mxu0
          %v1296 = vadd.f32 %v1248, %v1295
          %v1297 = vpop.f32.mrb[0].mxu0
          %v1298 = vpop.f32.mrb[0].mxu0
          %v1299 = vadd.f32 %v1248, %v1298
          %v1300 = vpop.f32.mrb[0].mxu0
          %1301 = vmatprep.mubr.bf16.mxu0 0
          %1302 = vmatmul.mubr.bf16.gmra.mrb[0].mxu0 %v1255
          %v1303 = vpop.f32.mrb[0].mxu0
          %v1304 = vadd.f32 %v1248, %v1303
          %v1305 = vpop.f32.mrb[0].mxu0
          %v1306 = vpop.f32.mrb[0].mxu0
          %v1307 = vpop.f32.mrb[0].mxu0
          %1308 = vdwg.mxu0
          %1309 = vst [vmem:[#allocation3] sm:$0xff] %v1296
          %1310 = vst [vmem:[#allocation3 + $0x8] sm:$0xff] %v1299
          %1311 = vst [vmem:[#allocation3 + $0x10] sm:$0xff] %v1304
          %v1312 = vld [vmem:[%s2] sm:$0xff]
          %v1313 = vld [vmem:[#allocation5] sm:$0x3f]
          %v1314 = vpack.c.bf16 %v1312, %v1312
          %v1315 = vpack.c.bf16 %v1313, %v1313
          %v1316 = vld [vmem:[#allocation7] sm:$0x1]
          %v1318 = vlaneseq
          %v1319 = vshrl.u32 %v1318, 7
          %v1320 = vsub.s32 0, %v1319
          %v1321 = vrot.slane %v1316, %v1320
          %v1324 = vsel %vm1250, %v1314, 0
          %v1327 = vsel %vm1257, %v1315, 0
          %1329 = vmatprep.subr.bf16.mxu0 0
          %1330 = vmatpush1.bf16.msra.mxu0 %v1327
          %1331 = vmatprep.subr.bf16.mxu0 0
          %1332 = vmatpush1.bf16.msra.mxu0 0
          %1333 = vmatprep.subr.bf16.mxu0 0
          %1334 = vmatpush1.bf16.msra.mxu0 0
          %1335 = vmatprep.subr.bf16.mxu0 0
          %1336 = vmatpush1.bf16.msra.mxu0 0
          %1337 = vmatprep.subr.bf16.mxu0 0
          %1338 = vmatpush1.bf16.msra.mxu0 0
          %1339 = vmatprep.subr.bf16.mxu0 0
          %1340 = vmatpush1.bf16.msra.mxu0 0
          %1341 = vmatprep.subr.bf16.mxu0 0
          %1342 = vmatpush1.bf16.msra.mxu0 0
          %1343 = vmatprep.subr.bf16.mxu0 0
          %1344 = vmatpush1.bf16.msra.mxu0 0
          %1345 = vmatprep.subr.bf16.mxu0 0
          %1346 = vmatpush1.bf16.msra.mxu0 0
          %1347 = vmatprep.subr.bf16.mxu0 0
          %1348 = vmatpush1.bf16.msra.mxu0 0
          %1349 = vmatprep.subr.bf16.mxu0 0
          %1350 = vmatpush1.bf16.msra.mxu0 0
          %1351 = vmatprep.subr.bf16.mxu0 0
          %1352 = vmatpush1.bf16.msra.mxu0 0
          %1353 = vmatprep.subr.bf16.mxu0 0
          %1354 = vmatpush1.bf16.msra.mxu0 0
          %1355 = vmatprep.subr.bf16.mxu0 0
          %1356 = vmatpush1.bf16.msra.mxu0 0
          %1357 = vmatprep.subr.bf16.mxu0 0
          %1358 = vmatpush1.bf16.msra.mxu0 0
          %1359 = vmatprep.subr.bf16.mxu0 0
          %1360 = vmatpush1.bf16.msra.mxu0 0
          %1361 = vmatprep.mubr.bf16.mxu0 0
          %1362 = vmatmul.mubr.bf16.gmra.mrb[0].mxu0 %v1324
          %v1363 = vpop.f32.mrb[0].mxu0
          %v1364 = vadd.f32 %v1321, %v1363
          %v1365 = vpop.f32.mrb[0].mxu0
          %v1366 = vpop.f32.mrb[0].mxu0
          %v1367 = vpop.f32.mrb[0].mxu0
          %1368 = vdwg.mxu0
          %1369 = vst [vmem:[#allocation4] sm:$0xff] %v1364
          %vm1370 = vcmask 15360
          %1371 = vst.msk [vmem:[%s27] sm:$0xff] %vm1370, 0.0
        $region188: #{gine_forward.1} parent=127 // pred_fallthru
          _
        %v1372 = vld [vmem:[#allocation2] sm:$0xff]
        %v1373 = vld [vmem:[#allocation2 + $0x8] sm:$0xff]
        %v1374 = vld [vmem:[%s3] sm:$0xf]
        %v1375 = vld [vmem:[%s3 + $0x4] sm:$0xf]
        %v1376 = vld [vmem:[%s3 + $0x8] sm:$0xf]
        %v1377 = vpack.c.bf16 %v1373, %v1372
        %v1378 = vld [vmem:[#allocation3] sm:$0xff]
        %v1379 = vld [vmem:[#allocation3 + $0x8] sm:$0xff]
        %v1380 = vld [vmem:[#allocation3 + $0x10] sm:$0xff]
        %v1384 = vunpack.c.l.b16 %v1374
        %v1385 = vunpack.c.l.b16 %v1375
        %v1386 = vunpack.c.l.b16 %v1376
        %v1387 = vpack.c.b16 %v1385, %v1384
        %v1388 = vpack.c.b16 %v1386, %v1386
        %vm1389 = vcmask 130048
        %v1391 = vsel %vm1389, %v1387, 0
        %v1394 = vsel %vm1389, %v1388, 0
        %1396 = vmatprep.subr.bf16.mxu0 0
        %1397 = vmatpush1.bf16.msra.mxu0 %v1377
        %1398 = vmatprep.subr.bf16.mxu0 0
        %1399 = vmatpush1.bf16.msra.mxu0 0
        %1400 = vmatprep.subr.bf16.mxu0 0
        %1401 = vmatpush1.bf16.msra.mxu0 0
        %1402 = vmatprep.subr.bf16.mxu0 0
        %1403 = vmatpush1.bf16.msra.mxu0 0
        %1404 = vmatprep.subr.bf16.mxu0 0
        %1405 = vmatpush1.bf16.msra.mxu0 0
        %1406 = vmatprep.subr.bf16.mxu0 0
        %1407 = vmatpush1.bf16.msra.mxu0 0
        %1408 = vmatprep.subr.bf16.mxu0 0
        %1409 = vmatpush1.bf16.msra.mxu0 0
        %1410 = vmatprep.subr.bf16.mxu0 0
        %1411 = vmatpush1.bf16.msra.mxu0 0
        %1412 = vmatprep.subr.bf16.mxu0 0
        %1413 = vmatpush1.bf16.msra.mxu0 0
        %1414 = vmatprep.subr.bf16.mxu0 0
        %1415 = vmatpush1.bf16.msra.mxu0 0
        %1416 = vmatprep.subr.bf16.mxu0 0
        %1417 = vmatpush1.bf16.msra.mxu0 0
        %1418 = vmatprep.subr.bf16.mxu0 0
        %1419 = vmatpush1.bf16.msra.mxu0 0
        %1420 = vmatprep.subr.bf16.mxu0 0
        %1421 = vmatpush1.bf16.msra.mxu0 0
        %1422 = vmatprep.subr.bf16.mxu0 0
        %1423 = vmatpush1.bf16.msra.mxu0 0
        %1424 = vmatprep.subr.bf16.mxu0 0
        %1425 = vmatpush1.bf16.msra.mxu0 0
        %1426 = vmatprep.subr.bf16.mxu0 0
        %1427 = vmatpush1.bf16.msra.mxu0 0
        %1428 = vmatprep.mubr.bf16.mxu0 0
        %1429 = vmatmul.mubr.bf16.gmra.mrb[0].mxu0 %v1391
        %v1430 = vpop.f32.mrb[0].mxu0
        %v1431 = vadd.f32 %v1378, %v1430
        %v1432 = vpop.f32.mrb[0].mxu0
        %v1433 = vpop.f32.mrb[0].mxu0
        %v1434 = vadd.f32 %v1379, %v1433
        %v1435 = vpop.f32.mrb[0].mxu0
        %1436 = vmatprep.mubr.bf16.mxu0 0
        %1437 = vmatmul.mubr.bf16.gmra.mrb[0].mxu0 %v1394
        %v1438 = vpop.f32.mrb[0].mxu0
        %v1439 = vadd.f32 %v1380, %v1438
        %v1440 = vpop.f32.mrb[0].mxu0
        %v1441 = vpop.f32.mrb[0].mxu0
        %v1442 = vpop.f32.mrb[0].mxu0
        %1443 = vdwg.mxu0
        %v1444 = vmax.f32 %v1431, 0.0
        %v1445 = vmax.f32 %v1434, 0.0
        %v1446 = vmax.f32 %v1439, 0.0
        %v1447 = vld [vmem:[%s4] sm:$0xf]
        %v1448 = vld [vmem:[%s4 + $0x4] sm:$0xf]
        %v1449 = vpack.c.bf16 %v1445, %v1444
        %v1450 = vpack.c.bf16 %v1446, %v1446
        %v1453 = vunpack.c.l.b16 %v1447
        %v1454 = vunpack.c.l.b16 %v1448
        %v1455 = vpack.c.b16 %v1454, %v1453
        %vm1456 = vcmask 195584
        %v1458 = vsel %vm1456, %v1455, 0
        %vm1460 = vcmask 1043456
        %v1462 = vsel %vm1460, %v1450, 0
        %1464 = vmatprep.subr.bf16.mxu0 0
        %1465 = vmatpush1.bf16.msra.mxu0 %v1449
        %1466 = vmatprep.subr.bf16.mxu0 0
        %1467 = vmatpush1.bf16.msra.mxu0 %v1462
        %1468 = vmatprep.subr.bf16.mxu0 0
        %1469 = vmatpush1.bf16.msra.mxu0 0
        %1470 = vmatprep.subr.bf16.mxu0 0
        %1471 = vmatpush1.bf16.msra.mxu0 0
        %1472 = vmatprep.subr.bf16.mxu0 0
        %1473 = vmatpush1.bf16.msra.mxu0 0
        %1474 = vmatprep.subr.bf16.mxu0 0
        %1475 = vmatpush1.bf16.msra.mxu0 0
        %1476 = vmatprep.subr.bf16.mxu0 0
        %1477 = vmatpush1.bf16.msra.mxu0 0
        %1478 = vmatprep.subr.bf16.mxu0 0
        %1479 = vmatpush1.bf16.msra.mxu0 0
        %1480 = vmatprep.subr.bf16.mxu0 0
        %1481 = vmatpush1.bf16.msra.mxu0 0
        %1482 = vmatprep.subr.bf16.mxu0 0
        %1483 = vmatpush1.bf16.msra.mxu0 0
        %1484 = vmatprep.subr.bf16.mxu0 0
        %1485 = vmatpush1.bf16.msra.mxu0 0
        %1486 = vmatprep.subr.bf16.mxu0 0
        %1487 = vmatpush1.bf16.msra.mxu0 0
        %1488 = vmatprep.subr.bf16.mxu0 0
        %1489 = vmatpush1.bf16.msra.mxu0 0
        %1490 = vmatprep.subr.bf16.mxu0 0
        %1491 = vmatpush1.bf16.msra.mxu0 0
        %1492 = vmatprep.subr.bf16.mxu0 0
        %1493 = vmatpush1.bf16.msra.mxu0 0
        %1494 = vmatprep.subr.bf16.mxu0 0
        %1495 = vmatpush1.bf16.msra.mxu0 0
        %1496 = vmatprep.mubr.bf16.mxu0 0
        %1497 = vmatmul.mubr.bf16.gmra.mrb[0].mxu0 %v1458
        %v1498 = vpop.f32.mrb[0].mxu0
        %v1499 = vadd.f32 0.0, %v1498
        %v1500 = vpop.f32.mrb[0].mxu0
        %v1501 = vpop.f32.mrb[0].mxu0
        %v1502 = vadd.f32 0.0, %v1501
        %v1503 = vpop.f32.mrb[0].mxu0
        %1504 = vdwg.mxu0
        %v1505 = vadd.f32 %v1372, %v1499
        %v1506 = vadd.f32 %v1373, %v1502
        %v1507 = vld [vmem:[%s1167] sm:$0xff]
        %v1508 = vld [vmem:[%s1167 + $0x8] sm:$0xff]
        %v1509 = vld [vmem:[%s1167 + $0x10] sm:$0xff]
        %v1510 = vld [vmem:[%s1167 + $0x18] sm:$0xff]
        %v1511 = vld [vmem:[%s1167 + $0x20] sm:$0xff]
        %v1512 = vld [vmem:[%s1167 + $0x28] sm:$0xff]
        %v1513 = vld [vmem:[%s1167 + $0x30] sm:$0xff]
        %v1514 = vld [vmem:[%s1167 + $0x38] sm:$0xff]
        %v1515 = vld [vmem:[%s1167 + $0x40] sm:$0xff]
        %v1516 = vld [vmem:[%s1167 + $0x48] sm:$0xff]
        %v1517 = vld [vmem:[%s1167 + $0x50] sm:$0xff]
        %v1518 = vld [vmem:[%s1167 + $0x58] sm:$0xff]
        %v1519 = vld [vmem:[%s1167 + $0x60] sm:$0xff]
        %v1520 = vld [vmem:[%s1167 + $0x68] sm:$0xff]
        %v1521 = vld [vmem:[%s1167 + $0x70] sm:$0xff]
        %v1522 = vld [vmem:[%s1167 + $0x78] sm:$0xff]
        %v1523 = vpack.c.bf16 %v1506, %v1505
        %v1524 = vpack.c.bf16 %v1508, %v1507
        %v1525 = vpack.c.bf16 %v1510, %v1509
        %v1526 = vpack.c.bf16 %v1512, %v1511
        %v1527 = vpack.c.bf16 %v1514, %v1513
        %v1528 = vpack.c.bf16 %v1516, %v1515
        %v1529 = vpack.c.bf16 %v1518, %v1517
        %v1530 = vpack.c.bf16 %v1520, %v1519
        %v1531 = vpack.c.bf16 %v1522, %v1521
        %v1532 = vld [vmem:[%s979] sm:$0x1]
        %v1534 = vlaneseq
        %v1535 = vshrl.u32 %v1534, 7
        %v1536 = vsub.s32 0, %v1535
        %v1537 = vrot.slane %v1532, %v1536
        %1539 = vmatprep.subr.bf16.mxu0 0
        %1540 = vmatpush1.bf16.msra.mxu0 %v1524
        %1541 = vmatprep.subr.bf16.mxu0 0
        %1542 = vmatpush1.bf16.msra.mxu0 %v1525
        %1543 = vmatprep.subr.bf16.mxu0 0
        %1544 = vmatpush1.bf16.msra.mxu0 %v1526
        %1545 = vmatprep.subr.bf16.mxu0 0
        %1546 = vmatpush1.bf16.msra.mxu0 %v1527
        %1547 = vmatprep.subr.bf16.mxu0 0
        %1548 = vmatpush1.bf16.msra.mxu0 %v1528
        %1549 = vmatprep.subr.bf16.mxu0 0
        %1550 = vmatpush1.bf16.msra.mxu0 %v1529
        %1551 = vmatprep.subr.bf16.mxu0 0
        %1552 = vmatpush1.bf16.msra.mxu0 %v1530
        %1553 = vmatprep.subr.bf16.mxu0 0
        %1554 = vmatpush1.bf16.msra.mxu0 %v1531
        %1555 = vmatprep.subr.bf16.mxu0 0
        %1556 = vmatpush1.bf16.msra.mxu0 0
        %1557 = vmatprep.subr.bf16.mxu0 0
        %1558 = vmatpush1.bf16.msra.mxu0 0
        %1559 = vmatprep.subr.bf16.mxu0 0
        %1560 = vmatpush1.bf16.msra.mxu0 0
        %1561 = vmatprep.subr.bf16.mxu0 0
        %1562 = vmatpush1.bf16.msra.mxu0 0
        %1563 = vmatprep.subr.bf16.mxu0 0
        %1564 = vmatpush1.bf16.msra.mxu0 0
        %1565 = vmatprep.subr.bf16.mxu0 0
        %1566 = vmatpush1.bf16.msra.mxu0 0
        %1567 = vmatprep.subr.bf16.mxu0 0
        %1568 = vmatpush1.bf16.msra.mxu0 0
        %1569 = vmatprep.subr.bf16.mxu0 0
        %1570 = vmatpush1.bf16.msra.mxu0 0
        %1571 = vmatprep.mubr.bf16.mxu0 0
        %1572 = vmatmul.mubr.bf16.gmra.mrb[0].mxu0 %v1523
        %v1573 = vpop.f32.mrb[0].mxu0
        %v1574 = vadd.f32 %v1537, %v1573
        %v1575 = vpop.f32.mrb[0].mxu0
        %v1576 = vpop.f32.mrb[0].mxu0
        %v1577 = vadd.f32 %v1537, %v1576
        %v1578 = vpop.f32.mrb[0].mxu0
        %1579 = vdwg.mxu0
        %v1580 = vmax.f32 %v1574, 0.0
        %v1581 = vmax.f32 %v1577, 0.0
        %v1582 = vld [vmem:[%s988] sm:$0xff]
        %v1583 = vld [vmem:[%s988 + $0x8] sm:$0xff]
        %v1584 = vld [vmem:[%s988 + $0x10] sm:$0xff]
        %v1585 = vld [vmem:[%s988 + $0x18] sm:$0xff]
        %v1586 = vld [vmem:[%s988 + $0x20] sm:$0xff]
        %v1587 = vld [vmem:[%s988 + $0x28] sm:$0xff]
        %v1588 = vld [vmem:[%s988 + $0x30] sm:$0xff]
        %v1589 = vld [vmem:[%s988 + $0x38] sm:$0xff]
        %v1590 = vld [vmem:[%s988 + $0x40] sm:$0xff]
        %v1591 = vld [vmem:[%s988 + $0x48] sm:$0xff]
        %v1592 = vld [vmem:[%s988 + $0x50] sm:$0xff]
        %v1593 = vld [vmem:[%s988 + $0x58] sm:$0xff]
        %v1594 = vld [vmem:[%s988 + $0x60] sm:$0xff]
        %v1595 = vld [vmem:[%s988 + $0x68] sm:$0xff]
        %v1596 = vld [vmem:[%s988 + $0x70] sm:$0xff]
        %v1597 = vld [vmem:[%s988 + $0x78] sm:$0xff]
        %v1598 = vpack.c.bf16 %v1581, %v1580
        %v1599 = vpack.c.bf16 %v1583, %v1582
        %v1600 = vpack.c.bf16 %v1585, %v1584
        %v1601 = vpack.c.bf16 %v1587, %v1586
        %v1602 = vpack.c.bf16 %v1589, %v1588
        %v1603 = vpack.c.bf16 %v1591, %v1590
        %v1604 = vpack.c.bf16 %v1593, %v1592
        %v1605 = vpack.c.bf16 %v1595, %v1594
        %v1606 = vpack.c.bf16 %v1597, %v1596
        %v1607 = vld [vmem:[%s996] sm:$0x1]
        %v1609 = vlaneseq
        %v1610 = vshrl.u32 %v1609, 7
        %v1611 = vsub.s32 0, %v1610
        %v1612 = vrot.slane %v1607, %v1611
        %1614 = vmatprep.subr.bf16.mxu0 0
        %1615 = vmatpush1.bf16.msra.mxu0 %v1599
        %1616 = vmatprep.subr.bf16.mxu0 0
        %1617 = vmatpush1.bf16.msra.mxu0 %v1600
        %1618 = vmatprep.subr.bf16.mxu0 0
        %1619 = vmatpush1.bf16.msra.mxu0 %v1601
        %1620 = vmatprep.subr.bf16.mxu0 0
        %1621 = vmatpush1.bf16.msra.mxu0 %v1602
        %1622 = vmatprep.subr.bf16.mxu0 0
        %1623 = vmatpush1.bf16.msra.mxu0 %v1603
        %1624 = vmatprep.subr.bf16.mxu0 0
        %1625 = vmatpush1.bf16.msra.mxu0 %v1604
        %1626 = vmatprep.subr.bf16.mxu0 0
        %1627 = vmatpush1.bf16.msra.mxu0 %v1605
        %1628 = vmatprep.subr.bf16.mxu0 0
        %1629 = vmatpush1.bf16.msra.mxu0 %v1606
        %1630 = vmatprep.subr.bf16.mxu0 0
        %1631 = vmatpush1.bf16.msra.mxu0 0
        %1632 = vmatprep.subr.bf16.mxu0 0
        %1633 = vmatpush1.bf16.msra.mxu0 0
        %1634 = vmatprep.subr.bf16.mxu0 0
        %1635 = vmatpush1.bf16.msra.mxu0 0
        %1636 = vmatprep.subr.bf16.mxu0 0
        %1637 = vmatpush1.bf16.msra.mxu0 0
        %1638 = vmatprep.subr.bf16.mxu0 0
        %1639 = vmatpush1.bf16.msra.mxu0 0
        %1640 = vmatprep.subr.bf16.mxu0 0
        %1641 = vmatpush1.bf16.msra.mxu0 0
        %1642 = vmatprep.subr.bf16.mxu0 0
        %1643 = vmatpush1.bf16.msra.mxu0 0
        %1644 = vmatprep.subr.bf16.mxu0 0
        %1645 = vmatpush1.bf16.msra.mxu0 0
        %1646 = vmatprep.mubr.bf16.mxu0 0
        %1647 = vmatmul.mubr.bf16.gmra.mrb[0].mxu0 %v1598
        %v1648 = vpop.f32.mrb[0].mxu0
        %v1649 = vadd.f32 %v1612, %v1648
        %v1650 = vpop.f32.mrb[0].mxu0
        %v1651 = vpop.f32.mrb[0].mxu0
        %v1652 = vadd.f32 %v1612, %v1651
        %v1653 = vpop.f32.mrb[0].mxu0
        %1654 = vdwg.mxu0
        %v1655 = vadd.f32 %v1649, %v1652
        %v1656 = vrot.slane %v1655, 4
        %v1657 = vadd.f32 %v1655, %v1656
        %v1658 = vrot.slane %v1657, 2
        %v1659 = vadd.f32 %v1657, %v1658
        %v1660 = vrot.slane %v1659, 1
        %v1661 = vadd.f32 %v1659, %v1660
        %v1662 = vrcp.pop 16.0
        %v1663 = vmul.f32 %v1661, %v1662
        %v1664 = vsub.f32 %v1649, %v1663
        %v1665 = vsub.f32 %v1652, %v1663
        %v1666 = vmul.f32 %v1664, %v1664
        %v1667 = vmul.f32 %v1665, %v1665
        %v1668 = vadd.f32 %v1666, %v1667
        %v1669 = vrot.slane %v1668, 4
        %v1670 = vadd.f32 %v1668, %v1669
        %v1671 = vrot.slane %v1670, 2
        %v1672 = vadd.f32 %v1670, %v1671
        %v1673 = vrot.slane %v1672, 1
        %v1674 = vadd.f32 %v1672, %v1673
        %v1675 = vmul.f32 %v1674, %v1662
        %v1676 = vadd.f32 %v1675, 1e-05
        %v1677 = vrsqrt.pop %v1676
        %v1678 = vmul.f32 %v1664, %v1677
        %v1679 = vmul.f32 %v1665, %v1677
        %v1680 = vld [vmem:[%s1004] sm:$0x1]
        %v1682 = vlaneseq
        %v1683 = vshrl.u32 %v1682, 7
        %v1684 = vsub.s32 0, %v1683
        %v1685 = vrot.slane %v1680, %v1684
        %v1687 = vmul.f32 %v1678, %v1685
        %v1688 = vmul.f32 %v1679, %v1685
        %v1689 = vld [vmem:[%s1012] sm:$0x1]
        %v1691 = vlaneseq
        %v1692 = vshrl.u32 %v1691, 7
        %v1693 = vsub.s32 0, %v1692
        %v1694 = vrot.slane %v1689, %v1693
        %v1696 = vadd.f32 %v1687, %v1694
        %v1697 = vadd.f32 %v1688, %v1694
        %v1698 = vmax.f32 %v1696, 0.0
        %v1699 = vmax.f32 %v1697, 0.0
        %v1700 = vadd.f32 %v1372, %v1698
        %v1701 = vadd.f32 %v1373, %v1699
        %v1702 = vmul.f32 %v1700, 0.5
        %v1703 = vmul.f32 %v1701, 0.5
        %1704 = vst [vmem:[#allocation2] sm:$0xff] %v1702
        %1705 = vst [vmem:[#allocation2 + $0x8] sm:$0xff] %v1703
        %v1706 = vld [vmem:[#allocation4] sm:$0xff]
        %v1707 = vld [vmem:[%s5] sm:$0xf]
        %v1708 = vpack.c.bf16 %v1703, %v1702
        %v1710 = vsel %vm1389, %v1707, 0
        %1712 = vmatprep.subr.bf16.mxu0 0
        %1713 = vmatpush1.bf16.msra.mxu0 %v1708
        %1714 = vmatprep.subr.bf16.mxu0 0
        %1715 = vmatpush1.bf16.msra.mxu0 0
        %1716 = vmatprep.subr.bf16.mxu0 0
        %1717 = vmatpush1.bf16.msra.mxu0 0
        %1718 = vmatprep.subr.bf16.mxu0 0
        %1719 = vmatpush1.bf16.msra.mxu0 0
        %1720 = vmatprep.subr.bf16.mxu0 0
        %1721 = vmatpush1.bf16.msra.mxu0 0
        %1722 = vmatprep.subr.bf16.mxu0 0
        %1723 = vmatpush1.bf16.msra.mxu0 0
        %1724 = vmatprep.subr.bf16.mxu0 0
        %1725 = vmatpush1.bf16.msra.mxu0 0
        %1726 = vmatprep.subr.bf16.mxu0 0
        %1727 = vmatpush1.bf16.msra.mxu0 0
        %1728 = vmatprep.subr.bf16.mxu0 0
        %1729 = vmatpush1.bf16.msra.mxu0 0
        %1730 = vmatprep.subr.bf16.mxu0 0
        %1731 = vmatpush1.bf16.msra.mxu0 0
        %1732 = vmatprep.subr.bf16.mxu0 0
        %1733 = vmatpush1.bf16.msra.mxu0 0
        %1734 = vmatprep.subr.bf16.mxu0 0
        %1735 = vmatpush1.bf16.msra.mxu0 0
        %1736 = vmatprep.subr.bf16.mxu0 0
        %1737 = vmatpush1.bf16.msra.mxu0 0
        %1738 = vmatprep.subr.bf16.mxu0 0
        %1739 = vmatpush1.bf16.msra.mxu0 0
        %1740 = vmatprep.subr.bf16.mxu0 0
        %1741 = vmatpush1.bf16.msra.mxu0 0
        %1742 = vmatprep.subr.bf16.mxu0 0
        %1743 = vmatpush1.bf16.msra.mxu0 0
        %1744 = vmatprep.mubr.bf16.mxu0 0
        %1745 = vmatmul.mubr.bf16.gmra.mrb[0].mxu0 %v1710
        %v1746 = vpop.f32.mrb[0].mxu0
        %v1747 = vadd.f32 0.0, %v1746
        %v1748 = vpop.f32.mrb[0].mxu0
        %v1749 = vpop.f32.mrb[0].mxu0
        %v1750 = vpop.f32.mrb[0].mxu0
        %1751 = vdwg.mxu0
        %v1752 = vld [vmem:[%s6] sm:$0xf]
        %v1754 = vsel %vm1389, %v1752, 0
        %1756 = vmatprep.subr.bf16.mxu0 0
        %1757 = vmatpush1.bf16.msra.mxu0 %v1708
        %1758 = vmatprep.subr.bf16.mxu0 0
        %1759 = vmatpush1.bf16.msra.mxu0 0
        %1760 = vmatprep.subr.bf16.mxu0 0
        %1761 = vmatpush1.bf16.msra.mxu0 0
        %1762 = vmatprep.subr.bf16.mxu0 0
        %1763 = vmatpush1.bf16.msra.mxu0 0
        %1764 = vmatprep.subr.bf16.mxu0 0
        %1765 = vmatpush1.bf16.msra.mxu0 0
        %1766 = vmatprep.subr.bf16.mxu0 0
        %1767 = vmatpush1.bf16.msra.mxu0 0
        %1768 = vmatprep.subr.bf16.mxu0 0
        %1769 = vmatpush1.bf16.msra.mxu0 0
        %1770 = vmatprep.subr.bf16.mxu0 0
        %1771 = vmatpush1.bf16.msra.mxu0 0
        %1772 = vmatprep.subr.bf16.mxu0 0
        %1773 = vmatpush1.bf16.msra.mxu0 0
        %1774 = vmatprep.subr.bf16.mxu0 0
        %1775 = vmatpush1.bf16.msra.mxu0 0
        %1776 = vmatprep.subr.bf16.mxu0 0
        %1777 = vmatpush1.bf16.msra.mxu0 0
        %1778 = vmatprep.subr.bf16.mxu0 0
        %1779 = vmatpush1.bf16.msra.mxu0 0
        %1780 = vmatprep.subr.bf16.mxu0 0
        %1781 = vmatpush1.bf16.msra.mxu0 0
        %1782 = vmatprep.subr.bf16.mxu0 0
        %1783 = vmatpush1.bf16.msra.mxu0 0
        %1784 = vmatprep.subr.bf16.mxu0 0
        %1785 = vmatpush1.bf16.msra.mxu0 0
        %1786 = vmatprep.subr.bf16.mxu0 0
        %1787 = vmatpush1.bf16.msra.mxu0 0
        %1788 = vmatprep.mubr.bf16.mxu0 0
        %1789 = vmatmul.mubr.bf16.gmra.mrb[0].mxu0 %v1754
        %v1790 = vpop.f32.mrb[0].mxu0
        %v1791 = vadd.f32 0.0, %v1790
        %v1792 = vpop.f32.mrb[0].mxu0
        %v1793 = vpop.f32.mrb[0].mxu0
        %v1794 = vpop.f32.mrb[0].mxu0
        %1795 = vdwg.mxu0
        %v1796 = vld [vmem:[%s1021] sm:$0xff]
        %v1797 = vld [vmem:[%s1021 + $0x8] sm:$0xff]
        %v1798 = vld [vmem:[%s1021 + $0x10] sm:$0xff]
        %v1799 = vld [vmem:[%s1021 + $0x18] sm:$0xff]
        %v1800 = vld [vmem:[%s1021 + $0x20] sm:$0xff]
        %v1801 = vld [vmem:[%s1021 + $0x28] sm:$0xff]
        %v1802 = vld [vmem:[%s1021 + $0x30] sm:$0xff]
        %v1803 = vld [vmem:[%s1021 + $0x38] sm:$0xff]
        %v1804 = vld [vmem:[%s1021 + $0x40] sm:$0xff]
        %v1805 = vld [vmem:[%s1021 + $0x48] sm:$0xff]
        %v1806 = vld [vmem:[%s1021 + $0x50] sm:$0xff]
        %v1807 = vld [vmem:[%s1021 + $0x58] sm:$0xff]
        %v1808 = vld [vmem:[%s1021 + $0x60] sm:$0xff]
        %v1809 = vld [vmem:[%s1021 + $0x68] sm:$0xff]
        %v1810 = vld [vmem:[%s1021 + $0x70] sm:$0xff]
        %v1811 = vld [vmem:[%s1021 + $0x78] sm:$0xff]
        %v1812 = vld [vmem:[%s1021 + $0x80] sm:$0xff]
        %v1813 = vld [vmem:[%s1021 + $0x88] sm:$0xff]
        %v1814 = vld [vmem:[%s1021 + $0x90] sm:$0xff]
        %v1815 = vld [vmem:[%s1021 + $0x98] sm:$0xff]
        %v1816 = vld [vmem:[%s1021 + $0xa0] sm:$0xff]
        %v1817 = vld [vmem:[%s1021 + $0xa8] sm:$0xff]
        %v1818 = vld [vmem:[%s1021 + $0xb0] sm:$0xff]
        %v1819 = vld [vmem:[%s1021 + $0xb8] sm:$0xff]
        %v1820 = vld [vmem:[%s1021 + $0xc0] sm:$0xff]
        %v1821 = vld [vmem:[%s1021 + $0xc8] sm:$0xff]
        %v1822 = vld [vmem:[%s1021 + $0xd0] sm:$0xff]
        %v1823 = vld [vmem:[%s1021 + $0xd8] sm:$0xff]
        %v1824 = vld [vmem:[%s1021 + $0xe0] sm:$0xff]
        %v1825 = vld [vmem:[%s1021 + $0xe8] sm:$0xff]
        %v1826 = vld [vmem:[%s1021 + $0xf0] sm:$0xff]
        %v1827 = vld [vmem:[%s1021 + $0xf8] sm:$0xff]
        %v1828 = vld [vmem:[%s1021 + $0x100] sm:$0xff]
        %v1829 = vld [vmem:[%s1021 + $0x108] sm:$0xff]
        %v1830 = vld [vmem:[%s1021 + $0x110] sm:$0xff]
        %v1831 = vld [vmem:[%s1021 + $0x118] sm:$0xff]
        %v1832 = vld [vmem:[%s1021 + $0x120] sm:$0xff]
        %v1833 = vld [vmem:[%s1021 + $0x128] sm:$0xff]
        %v1834 = vld [vmem:[%s1021 + $0x130] sm:$0xff]
        %v1835 = vld [vmem:[%s1021 + $0x138] sm:$0xff]
        %v1836 = vld [vmem:[%s1021 + $0x140] sm:$0xff]
        %v1837 = vld [vmem:[%s1021 + $0x148] sm:$0xff]
        %v1838 = vld [vmem:[%s1021 + $0x150] sm:$0xff]
        %v1839 = vld [vmem:[%s1021 + $0x158] sm:$0xff]
        %v1840 = vld [vmem:[%s1021 + $0x160] sm:$0xff]
        %v1841 = vld [vmem:[%s1021 + $0x168] sm:$0xff]
        %v1842 = vld [vmem:[%s1021 + $0x170] sm:$0xff]
        %v1843 = vld [vmem:[%s1021 + $0x178] sm:$0xff]
        %v1844 = vpack.c.bf16 %v1747, %v1747
        %v1845 = vpack.c.bf16 %v1791, %v1791
        %v1846 = vpack.c.bf16 %v1706, %v1706
        %v1847 = vpack.c.bf16 %v1797, %v1796
        %v1848 = vpack.c.bf16 %v1799, %v1798
        %v1849 = vpack.c.bf16 %v1801, %v1800
        %v1850 = vpack.c.bf16 %v1803, %v1802
        %v1851 = vpack.c.bf16 %v1805, %v1804
        %v1852 = vpack.c.bf16 %v1807, %v1806
        %v1853 = vpack.c.bf16 %v1809, %v1808
        %v1854 = vpack.c.bf16 %v1811, %v1810
        %v1855 = vpack.c.bf16 %v1813, %v1812
        %v1856 = vpack.c.bf16 %v1815, %v1814
        %v1857 = vpack.c.bf16 %v1817, %v1816
        %v1858 = vpack.c.bf16 %v1819, %v1818
        %v1859 = vpack.c.bf16 %v1821, %v1820
        %v1860 = vpack.c.bf16 %v1823, %v1822
        %v1861 = vpack.c.bf16 %v1825, %v1824
        %v1862 = vpack.c.bf16 %v1827, %v1826
        %v1863 = vpack.c.bf16 %v1829, %v1828
        %v1864 = vpack.c.bf16 %v1831, %v1830
        %v1865 = vpack.c.bf16 %v1833, %v1832
        %v1866 = vpack.c.bf16 %v1835, %v1834
        %v1867 = vpack.c.bf16 %v1837, %v1836
        %v1868 = vpack.c.bf16 %v1839, %v1838
        %v1869 = vpack.c.bf16 %v1841, %v1840
        %v1870 = vpack.c.bf16 %v1843, %v1842
        %v1871 = vld [vmem:[%s1029] sm:$0x1]
        %v1873 = vlaneseq
        %v1874 = vshrl.u32 %v1873, 7
        %v1875 = vsub.s32 0, %v1874
        %v1876 = vrot.slane %v1871, %v1875
        %1878 = vmatprep.subr.bf16.mxu0 0
        %1879 = vmatpush1.bf16.msra.mxu0 %v1847
        %1880 = vmatprep.subr.bf16.mxu0 0
        %1881 = vmatpush1.bf16.msra.mxu0 %v1848
        %1882 = vmatprep.subr.bf16.mxu0 0
        %1883 = vmatpush1.bf16.msra.mxu0 %v1849
        %1884 = vmatprep.subr.bf16.mxu0 0
        %1885 = vmatpush1.bf16.msra.mxu0 %v1850
        %1886 = vmatprep.subr.bf16.mxu0 0
        %1887 = vmatpush1.bf16.msra.mxu0 %v1851
        %1888 = vmatprep.subr.bf16.mxu0 0
        %1889 = vmatpush1.bf16.msra.mxu0 %v1852
        %1890 = vmatprep.subr.bf16.mxu0 0
        %1891 = vmatpush1.bf16.msra.mxu0 %v1853
        %1892 = vmatprep.subr.bf16.mxu0 0
        %1893 = vmatpush1.bf16.msra.mxu0 %v1854
        %1894 = vmatprep.subr.bf16.mxu0 0
        %1895 = vmatpush1.bf16.msra.mxu0 %v1855
        %1896 = vmatprep.subr.bf16.mxu0 0
        %1897 = vmatpush1.bf16.msra.mxu0 %v1856
        %1898 = vmatprep.subr.bf16.mxu0 0
        %1899 = vmatpush1.bf16.msra.mxu0 %v1857
        %1900 = vmatprep.subr.bf16.mxu0 0
        %1901 = vmatpush1.bf16.msra.mxu0 %v1858
        %1902 = vmatprep.subr.bf16.mxu0 0
        %1903 = vmatpush1.bf16.msra.mxu0 %v1859
        %1904 = vmatprep.subr.bf16.mxu0 0
        %1905 = vmatpush1.bf16.msra.mxu0 %v1860
        %1906 = vmatprep.subr.bf16.mxu0 0
        %1907 = vmatpush1.bf16.msra.mxu0 %v1861
        %1908 = vmatprep.subr.bf16.mxu0 0
        %1909 = vmatpush1.bf16.msra.mxu0 %v1862
        %1910 = vmatprep.mubr.bf16.mxu0 %v1845
        %1911 = vmatmul.mubr.bf16.gmra.mrb[0].mxu0 %v1844
        %v1912 = vpop.f32.mrb[0].mxu0
        %v1913 = vadd.f32 %v1876, %v1912
        %v1914 = vpop.f32.mrb[0].mxu0
        %v1915 = vpop.f32.mrb[0].mxu0
        %v1916 = vpop.f32.mrb[0].mxu0
        %1917 = vdwg.mxu0
        %1918 = vmatprep.subr.bf16.mxu0 0
        %1919 = vmatpush1.bf16.msra.mxu0 %v1863
        %1920 = vmatprep.subr.bf16.mxu0 0
        %1921 = vmatpush1.bf16.msra.mxu0 %v1864
        %1922 = vmatprep.subr.bf16.mxu0 0
        %1923 = vmatpush1.bf16.msra.mxu0 %v1865
        %1924 = vmatprep.subr.bf16.mxu0 0
        %1925 = vmatpush1.bf16.msra.mxu0 %v1866
        %1926 = vmatprep.subr.bf16.mxu0 0
        %1927 = vmatpush1.bf16.msra.mxu0 %v1867
        %1928 = vmatprep.subr.bf16.mxu0 0
        %1929 = vmatpush1.bf16.msra.mxu0 %v1868
        %1930 = vmatprep.subr.bf16.mxu0 0
        %1931 = vmatpush1.bf16.msra.mxu0 %v1869
        %1932 = vmatprep.subr.bf16.mxu0 0
        %1933 = vmatpush1.bf16.msra.mxu0 %v1870
        %1934 = vmatprep.subr.bf16.mxu0 0
        %1935 = vmatpush1.bf16.msra.mxu0 0
        %1936 = vmatprep.subr.bf16.mxu0 0
        %1937 = vmatpush1.bf16.msra.mxu0 0
        %1938 = vmatprep.subr.bf16.mxu0 0
        %1939 = vmatpush1.bf16.msra.mxu0 0
        %1940 = vmatprep.subr.bf16.mxu0 0
        %1941 = vmatpush1.bf16.msra.mxu0 0
        %1942 = vmatprep.subr.bf16.mxu0 0
        %1943 = vmatpush1.bf16.msra.mxu0 0
        %1944 = vmatprep.subr.bf16.mxu0 0
        %1945 = vmatpush1.bf16.msra.mxu0 0
        %1946 = vmatprep.subr.bf16.mxu0 0
        %1947 = vmatpush1.bf16.msra.mxu0 0
        %1948 = vmatprep.subr.bf16.mxu0 0
        %1949 = vmatpush1.bf16.msra.mxu0 0
        %1950 = vmatprep.mubr.bf16.mxu0 0
        %1951 = vmatmul.mubr.bf16.gmra.mrb[0].mxu0 %v1846
        %v1952 = vpop.f32.mrb[0].mxu0
        %v1953 = vadd.f32 %v1913, %v1952
        %v1954 = vpop.f32.mrb[0].mxu0
        %v1955 = vpop.f32.mrb[0].mxu0
        %v1956 = vpop.f32.mrb[0].mxu0
        %1957 = vdwg.mxu0
        %v1958 = vmax.f32 %v1953, 0.0
        %v1959 = vld [vmem:[%s1038] sm:$0xff]
        %v1960 = vld [vmem:[%s1038 + $0x8] sm:$0xff]
        %v1961 = vld [vmem:[%s1038 + $0x10] sm:$0xff]
        %v1962 = vld [vmem:[%s1038 + $0x18] sm:$0xff]
        %v1963 = vld [vmem:[%s1038 + $0x20] sm:$0xff]
        %v1964 = vld [vmem:[%s1038 + $0x28] sm:$0xff]
        %v1965 = vld [vmem:[%s1038 + $0x30] sm:$0xff]
        %v1966 = vld [vmem:[%s1038 + $0x38] sm:$0xff]
        %v1967 = vld [vmem:[%s1038 + $0x40] sm:$0xff]
        %v1968 = vld [vmem:[%s1038 + $0x48] sm:$0xff]
        %v1969 = vld [vmem:[%s1038 + $0x50] sm:$0xff]
        %v1970 = vld [vmem:[%s1038 + $0x58] sm:$0xff]
        %v1971 = vld [vmem:[%s1038 + $0x60] sm:$0xff]
        %v1972 = vld [vmem:[%s1038 + $0x68] sm:$0xff]
        %v1973 = vld [vmem:[%s1038 + $0x70] sm:$0xff]
        %v1974 = vld [vmem:[%s1038 + $0x78] sm:$0xff]
        %v1975 = vpack.c.bf16 %v1958, %v1958
        %v1976 = vpack.c.bf16 %v1960, %v1959
        %v1977 = vpack.c.bf16 %v1962, %v1961
        %v1978 = vpack.c.bf16 %v1964, %v1963
        %v1979 = vpack.c.bf16 %v1966, %v1965
        %v1980 = vpack.c.bf16 %v1968, %v1967
        %v1981 = vpack.c.bf16 %v1970, %v1969
        %v1982 = vpack.c.bf16 %v1972, %v1971
        %v1983 = vpack.c.bf16 %v1974, %v1973
        %v1984 = vld [vmem:[%s1046] sm:$0x1]
        %v1986 = vlaneseq
        %v1987 = vshrl.u32 %v1986, 7
        %v1988 = vsub.s32 0, %v1987
        %v1989 = vrot.slane %v1984, %v1988
        %1991 = vmatprep.subr.bf16.mxu0 0
        %1992 = vmatpush1.bf16.msra.mxu0 %v1976
        %1993 = vmatprep.subr.bf16.mxu0 0
        %1994 = vmatpush1.bf16.msra.mxu0 %v1977
        %1995 = vmatprep.subr.bf16.mxu0 0
        %1996 = vmatpush1.bf16.msra.mxu0 %v1978
        %1997 = vmatprep.subr.bf16.mxu0 0
        %1998 = vmatpush1.bf16.msra.mxu0 %v1979
        %1999 = vmatprep.subr.bf16.mxu0 0
        %2000 = vmatpush1.bf16.msra.mxu0 %v1980
        %2001 = vmatprep.subr.bf16.mxu0 0
        %2002 = vmatpush1.bf16.msra.mxu0 %v1981
        %2003 = vmatprep.subr.bf16.mxu0 0
        %2004 = vmatpush1.bf16.msra.mxu0 %v1982
        %2005 = vmatprep.subr.bf16.mxu0 0
        %2006 = vmatpush1.bf16.msra.mxu0 %v1983
        %2007 = vmatprep.subr.bf16.mxu0 0
        %2008 = vmatpush1.bf16.msra.mxu0 0
        %2009 = vmatprep.subr.bf16.mxu0 0
        %2010 = vmatpush1.bf16.msra.mxu0 0
        %2011 = vmatprep.subr.bf16.mxu0 0
        %2012 = vmatpush1.bf16.msra.mxu0 0
        %2013 = vmatprep.subr.bf16.mxu0 0
        %2014 = vmatpush1.bf16.msra.mxu0 0
        %2015 = vmatprep.subr.bf16.mxu0 0
        %2016 = vmatpush1.bf16.msra.mxu0 0
        %2017 = vmatprep.subr.bf16.mxu0 0
        %2018 = vmatpush1.bf16.msra.mxu0 0
        %2019 = vmatprep.subr.bf16.mxu0 0
        %2020 = vmatpush1.bf16.msra.mxu0 0
        %2021 = vmatprep.subr.bf16.mxu0 0
        %2022 = vmatpush1.bf16.msra.mxu0 0
        %2023 = vmatprep.mubr.bf16.mxu0 0
        %2024 = vmatmul.mubr.bf16.gmra.mrb[0].mxu0 %v1975
        %v2025 = vpop.f32.mrb[0].mxu0
        %v2026 = vadd.f32 %v1989, %v2025
        %v2027 = vpop.f32.mrb[0].mxu0
        %v2028 = vpop.f32.mrb[0].mxu0
        %v2029 = vpop.f32.mrb[0].mxu0
        %2030 = vdwg.mxu0
        %v2031 = vmul.f32 %v2026, 0.5
        %v2032 = vadd.f32 %v1706, %v2031
        %2033 = vst [vmem:[#allocation4] sm:$0xff] %v2032
        %p2034 = scmp.eq.s32.totalorder %s41, 1
        // Predicated region
        $region189: #{gine_forward.1} parent=127 // pred_check
          %p2035 = pneg %p2034
        $region190: #{gine_forward.1} parent=127 // pred_check_branch
          %2037 = sbr.rel (%p2035) target = $region192
        $region191: #{gine_forward.1} parent=127 // pred_region
          %v2038 = vmax.f32 %v1747, 0.0
          %v2039 = vmax.f32 %v1791, 0.0
          %v2040 = vld [vmem:[#allocation18] sm:$0xff]
          %v2041 = vld [vmem:[#allocation18 + $0x8] sm:$0xff]
          %v2042 = vld [vmem:[#allocation18 + $0x10] sm:$0xff]
          %v2043 = vld [vmem:[#allocation18 + $0x18] sm:$0xff]
          %v2044 = vld [vmem:[#allocation18 + $0x20] sm:$0xff]
          %v2045 = vld [vmem:[#allocation18 + $0x28] sm:$0xff]
          %v2046 = vld [vmem:[#allocation18 + $0x30] sm:$0xff]
          %v2047 = vld [vmem:[#allocation18 + $0x38] sm:$0xff]
          %v2048 = vld [vmem:[#allocation18 + $0x40] sm:$0xff]
          %v2049 = vld [vmem:[#allocation18 + $0x48] sm:$0xff]
          %v2050 = vld [vmem:[#allocation18 + $0x50] sm:$0xff]
          %v2051 = vld [vmem:[#allocation18 + $0x58] sm:$0xff]
          %v2052 = vld [vmem:[#allocation18 + $0x60] sm:$0xff]
          %v2053 = vld [vmem:[#allocation18 + $0x68] sm:$0xff]
          %v2054 = vld [vmem:[#allocation18 + $0x70] sm:$0xff]
          %v2055 = vld [vmem:[#allocation18 + $0x78] sm:$0xff]
          %v2056 = vld [vmem:[#allocation18 + $0x80] sm:$0xff]
          %v2057 = vld [vmem:[#allocation18 + $0x88] sm:$0xff]
          %v2058 = vld [vmem:[#allocation18 + $0x90] sm:$0xff]
          %v2059 = vld [vmem:[#allocation18 + $0x98] sm:$0xff]
          %v2060 = vld [vmem:[#allocation18 + $0xa0] sm:$0xff]
          %v2061 = vld [vmem:[#allocation18 + $0xa8] sm:$0xff]
          %v2062 = vld [vmem:[#allocation18 + $0xb0] sm:$0xff]
          %v2063 = vld [vmem:[#allocation18 + $0xb8] sm:$0xff]
          %v2064 = vld [vmem:[#allocation18 + $0xc0] sm:$0xff]
          %v2065 = vld [vmem:[#allocation18 + $0xc8] sm:$0xff]
          %v2066 = vld [vmem:[#allocation18 + $0xd0] sm:$0xff]
          %v2067 = vld [vmem:[#allocation18 + $0xd8] sm:$0xff]
          %v2068 = vld [vmem:[#allocation18 + $0xe0] sm:$0xff]
          %v2069 = vld [vmem:[#allocation18 + $0xe8] sm:$0xff]
          %v2070 = vld [vmem:[#allocation18 + $0xf0] sm:$0xff]
          %v2071 = vld [vmem:[#allocation18 + $0xf8] sm:$0xff]
          %v2072 = vld [vmem:[#allocation18 + $0x100] sm:$0xff]
          %v2073 = vld [vmem:[#allocation18 + $0x108] sm:$0xff]
          %v2074 = vld [vmem:[#allocation18 + $0x110] sm:$0xff]
          %v2075 = vld [vmem:[#allocation18 + $0x118] sm:$0xff]
          %v2076 = vld [vmem:[#allocation18 + $0x120] sm:$0xff]
          %v2077 = vld [vmem:[#allocation18 + $0x128] sm:$0xff]
          %v2078 = vld [vmem:[#allocation18 + $0x130] sm:$0xff]
          %v2079 = vld [vmem:[#allocation18 + $0x138] sm:$0xff]
          %v2080 = vld [vmem:[#allocation18 + $0x140] sm:$0xff]
          %v2081 = vld [vmem:[#allocation18 + $0x148] sm:$0xff]
          %v2082 = vld [vmem:[#allocation18 + $0x150] sm:$0xff]
          %v2083 = vld [vmem:[#allocation18 + $0x158] sm:$0xff]
          %v2084 = vld [vmem:[#allocation18 + $0x160] sm:$0xff]
          %v2085 = vld [vmem:[#allocation18 + $0x168] sm:$0xff]
          %v2086 = vld [vmem:[#allocation18 + $0x170] sm:$0xff]
          %v2087 = vld [vmem:[#allocation18 + $0x178] sm:$0xff]
          %v2088 = vpack.c.bf16 %v2038, %v2038
          %v2089 = vpack.c.bf16 %v2039, %v2039
          %v2090 = vpack.c.bf16 %v2032, %v2032
          %v2091 = vpack.c.bf16 %v2041, %v2040
          %v2092 = vpack.c.bf16 %v2043, %v2042
          %v2093 = vpack.c.bf16 %v2045, %v2044
          %v2094 = vpack.c.bf16 %v2047, %v2046
          %v2095 = vpack.c.bf16 %v2049, %v2048
          %v2096 = vpack.c.bf16 %v2051, %v2050
          %v2097 = vpack.c.bf16 %v2053, %v2052
          %v2098 = vpack.c.bf16 %v2055, %v2054
          %v2099 = vpack.c.bf16 %v2057, %v2056
          %v2100 = vpack.c.bf16 %v2059, %v2058
          %v2101 = vpack.c.bf16 %v2061, %v2060
          %v2102 = vpack.c.bf16 %v2063, %v2062
          %v2103 = vpack.c.bf16 %v2065, %v2064
          %v2104 = vpack.c.bf16 %v2067, %v2066
          %v2105 = vpack.c.bf16 %v2069, %v2068
          %v2106 = vpack.c.bf16 %v2071, %v2070
          %v2107 = vpack.c.bf16 %v2073, %v2072
          %v2108 = vpack.c.bf16 %v2075, %v2074
          %v2109 = vpack.c.bf16 %v2077, %v2076
          %v2110 = vpack.c.bf16 %v2079, %v2078
          %v2111 = vpack.c.bf16 %v2081, %v2080
          %v2112 = vpack.c.bf16 %v2083, %v2082
          %v2113 = vpack.c.bf16 %v2085, %v2084
          %v2114 = vpack.c.bf16 %v2087, %v2086
          %v2115 = vld [vmem:[#allocation19] sm:$0x1]
          %v2117 = vlaneseq
          %v2118 = vshrl.u32 %v2117, 7
          %v2119 = vsub.s32 0, %v2118
          %v2120 = vrot.slane %v2115, %v2119
          %2122 = vmatprep.subr.bf16.mxu0 0
          %2123 = vmatpush1.bf16.msra.mxu0 %v2091
          %2124 = vmatprep.subr.bf16.mxu0 0
          %2125 = vmatpush1.bf16.msra.mxu0 %v2092
          %2126 = vmatprep.subr.bf16.mxu0 0
          %2127 = vmatpush1.bf16.msra.mxu0 %v2093
          %2128 = vmatprep.subr.bf16.mxu0 0
          %2129 = vmatpush1.bf16.msra.mxu0 %v2094
          %2130 = vmatprep.subr.bf16.mxu0 0
          %2131 = vmatpush1.bf16.msra.mxu0 %v2095
          %2132 = vmatprep.subr.bf16.mxu0 0
          %2133 = vmatpush1.bf16.msra.mxu0 %v2096
          %2134 = vmatprep.subr.bf16.mxu0 0
          %2135 = vmatpush1.bf16.msra.mxu0 %v2097
          %2136 = vmatprep.subr.bf16.mxu0 0
          %2137 = vmatpush1.bf16.msra.mxu0 %v2098
          %2138 = vmatprep.subr.bf16.mxu0 0
          %2139 = vmatpush1.bf16.msra.mxu0 %v2099
          %2140 = vmatprep.subr.bf16.mxu0 0
          %2141 = vmatpush1.bf16.msra.mxu0 %v2100
          %2142 = vmatprep.subr.bf16.mxu0 0
          %2143 = vmatpush1.bf16.msra.mxu0 %v2101
          %2144 = vmatprep.subr.bf16.mxu0 0
          %2145 = vmatpush1.bf16.msra.mxu0 %v2102
          %2146 = vmatprep.subr.bf16.mxu0 0
          %2147 = vmatpush1.bf16.msra.mxu0 %v2103
          %2148 = vmatprep.subr.bf16.mxu0 0
          %2149 = vmatpush1.bf16.msra.mxu0 %v2104
          %2150 = vmatprep.subr.bf16.mxu0 0
          %2151 = vmatpush1.bf16.msra.mxu0 %v2105
          %2152 = vmatprep.subr.bf16.mxu0 0
          %2153 = vmatpush1.bf16.msra.mxu0 %v2106
          %2154 = vmatprep.mubr.bf16.mxu0 %v2089
          %2155 = vmatmul.mubr.bf16.gmra.mrb[0].mxu0 %v2088
          %v2156 = vpop.f32.mrb[0].mxu0
          %v2157 = vadd.f32 %v2120, %v2156
          %v2158 = vpop.f32.mrb[0].mxu0
          %v2159 = vpop.f32.mrb[0].mxu0
          %v2160 = vpop.f32.mrb[0].mxu0
          %2161 = vdwg.mxu0
          %2162 = vmatprep.subr.bf16.mxu0 0
          %2163 = vmatpush1.bf16.msra.mxu0 %v2107
          %2164 = vmatprep.subr.bf16.mxu0 0
          %2165 = vmatpush1.bf16.msra.mxu0 %v2108
          %2166 = vmatprep.subr.bf16.mxu0 0
          %2167 = vmatpush1.bf16.msra.mxu0 %v2109
          %2168 = vmatprep.subr.bf16.mxu0 0
          %2169 = vmatpush1.bf16.msra.mxu0 %v2110
          %2170 = vmatprep.subr.bf16.mxu0 0
          %2171 = vmatpush1.bf16.msra.mxu0 %v2111
          %2172 = vmatprep.subr.bf16.mxu0 0
          %2173 = vmatpush1.bf16.msra.mxu0 %v2112
          %2174 = vmatprep.subr.bf16.mxu0 0
          %2175 = vmatpush1.bf16.msra.mxu0 %v2113
          %2176 = vmatprep.subr.bf16.mxu0 0
          %2177 = vmatpush1.bf16.msra.mxu0 %v2114
          %2178 = vmatprep.subr.bf16.mxu0 0
          %2179 = vmatpush1.bf16.msra.mxu0 0
          %2180 = vmatprep.subr.bf16.mxu0 0
          %2181 = vmatpush1.bf16.msra.mxu0 0
          %2182 = vmatprep.subr.bf16.mxu0 0
          %2183 = vmatpush1.bf16.msra.mxu0 0
          %2184 = vmatprep.subr.bf16.mxu0 0
          %2185 = vmatpush1.bf16.msra.mxu0 0
          %2186 = vmatprep.subr.bf16.mxu0 0
          %2187 = vmatpush1.bf16.msra.mxu0 0
          %2188 = vmatprep.subr.bf16.mxu0 0
          %2189 = vmatpush1.bf16.msra.mxu0 0
          %2190 = vmatprep.subr.bf16.mxu0 0
          %2191 = vmatpush1.bf16.msra.mxu0 0
          %2192 = vmatprep.subr.bf16.mxu0 0
          %2193 = vmatpush1.bf16.msra.mxu0 0
          %2194 = vmatprep.mubr.bf16.mxu0 0
          %2195 = vmatmul.mubr.bf16.gmra.mrb[0].mxu0 %v2090
          %v2196 = vpop.f32.mrb[0].mxu0
          %v2197 = vadd.f32 %v2157, %v2196
          %v2198 = vpop.f32.mrb[0].mxu0
          %v2199 = vpop.f32.mrb[0].mxu0
          %v2200 = vpop.f32.mrb[0].mxu0
          %2201 = vdwg.mxu0
          %v2202 = vmax.f32 %v2197, 0.0
          %v2203 = vld [vmem:[#allocation21] sm:$0xff]
          %v2204 = vld [vmem:[#allocation21 + $0x8] sm:$0xff]
          %v2205 = vld [vmem:[#allocation21 + $0x10] sm:$0xff]
          %v2206 = vld [vmem:[#allocation21 + $0x18] sm:$0xff]
          %v2207 = vld [vmem:[#allocation21 + $0x20] sm:$0xff]
          %v2208 = vld [vmem:[#allocation21 + $0x28] sm:$0xff]
          %v2209 = vld [vmem:[#allocation21 + $0x30] sm:$0xff]
          %v2210 = vld [vmem:[#allocation21 + $0x38] sm:$0xff]
          %v2211 = vld [vmem:[#allocation21 + $0x40] sm:$0xff]
          %v2212 = vld [vmem:[#allocation21 + $0x48] sm:$0xff]
          %v2213 = vld [vmem:[#allocation21 + $0x50] sm:$0xff]
          %v2214 = vld [vmem:[#allocation21 + $0x58] sm:$0xff]
          %v2215 = vld [vmem:[#allocation21 + $0x60] sm:$0xff]
          %v2216 = vld [vmem:[#allocation21 + $0x68] sm:$0xff]
          %v2217 = vld [vmem:[#allocation21 + $0x70] sm:$0xff]
          %v2218 = vld [vmem:[#allocation21 + $0x78] sm:$0xff]
          %v2219 = vpack.c.bf16 %v2202, %v2202
          %v2220 = vpack.c.bf16 %v2204, %v2203
          %v2221 = vpack.c.bf16 %v2206, %v2205
          %v2222 = vpack.c.bf16 %v2208, %v2207
          %v2223 = vpack.c.bf16 %v2210, %v2209
          %v2224 = vpack.c.bf16 %v2212, %v2211
          %v2225 = vpack.c.bf16 %v2214, %v2213
          %v2226 = vpack.c.bf16 %v2216, %v2215
          %v2227 = vpack.c.bf16 %v2218, %v2217
          %v2228 = vld [vmem:[%s24] sm:$0x1]
          %v2230 = vlaneseq
          %v2231 = vshrl.u32 %v2230, 7
          %v2232 = vsub.s32 0, %v2231
          %v2233 = vrot.slane %v2228, %v2232
          %2235 = vmatprep.subr.bf16.mxu0 0
          %2236 = vmatpush1.bf16.msra.mxu0 %v2220
          %2237 = vmatprep.subr.bf16.mxu0 0
          %2238 = vmatpush1.bf16.msra.mxu0 %v2221
          %2239 = vmatprep.subr.bf16.mxu0 0
          %2240 = vmatpush1.bf16.msra.mxu0 %v2222
          %2241 = vmatprep.subr.bf16.mxu0 0
          %2242 = vmatpush1.bf16.msra.mxu0 %v2223
          %2243 = vmatprep.subr.bf16.mxu0 0
          %2244 = vmatpush1.bf16.msra.mxu0 %v2224
          %2245 = vmatprep.subr.bf16.mxu0 0
          %2246 = vmatpush1.bf16.msra.mxu0 %v2225
          %2247 = vmatprep.subr.bf16.mxu0 0
          %2248 = vmatpush1.bf16.msra.mxu0 %v2226
          %2249 = vmatprep.subr.bf16.mxu0 0
          %2250 = vmatpush1.bf16.msra.mxu0 %v2227
          %2251 = vmatprep.subr.bf16.mxu0 0
          %2252 = vmatpush1.bf16.msra.mxu0 0
          %2253 = vmatprep.subr.bf16.mxu0 0
          %2254 = vmatpush1.bf16.msra.mxu0 0
          %2255 = vmatprep.subr.bf16.mxu0 0
          %2256 = vmatpush1.bf16.msra.mxu0 0
          %2257 = vmatprep.subr.bf16.mxu0 0
          %2258 = vmatpush1.bf16.msra.mxu0 0
          %2259 = vmatprep.subr.bf16.mxu0 0
          %2260 = vmatpush1.bf16.msra.mxu0 0
          %2261 = vmatprep.subr.bf16.mxu0 0
          %2262 = vmatpush1.bf16.msra.mxu0 0
          %2263 = vmatprep.subr.bf16.mxu0 0
          %2264 = vmatpush1.bf16.msra.mxu0 0
          %2265 = vmatprep.subr.bf16.mxu0 0
          %2266 = vmatpush1.bf16.msra.mxu0 0
          %2267 = vmatprep.mubr.bf16.mxu0 0
          %2268 = vmatmul.mubr.bf16.gmra.mrb[0].mxu0 %v2219
          %v2269 = vpop.f32.mrb[0].mxu0
          %v2270 = vadd.f32 %v2233, %v2269
          %v2271 = vpop.f32.mrb[0].mxu0
          %v2272 = vpop.f32.mrb[0].mxu0
          %v2273 = vpop.f32.mrb[0].mxu0
          %2274 = vdwg.mxu0
          %v2275 = vmax.f32 %v2270, 0.0
          %v2276 = vld [vmem:[%s25] sm:$0xff]
          %v2277 = vld [vmem:[%s25 + $0x8] sm:$0xff]
          %v2278 = vld [vmem:[%s25 + $0x10] sm:$0xff]
          %v2279 = vld [vmem:[%s25 + $0x18] sm:$0xff]
          %v2280 = vld [vmem:[%s25 + $0x20] sm:$0xff]
          %v2281 = vld [vmem:[%s25 + $0x28] sm:$0xff]
          %v2282 = vld [vmem:[%s25 + $0x30] sm:$0xff]
          %v2283 = vld [vmem:[%s25 + $0x38] sm:$0xff]
          %v2284 = vld [vmem:[%s25 + $0x40] sm:$0xff]
          %v2285 = vld [vmem:[%s25 + $0x48] sm:$0xff]
          %v2286 = vld [vmem:[%s25 + $0x50] sm:$0xff]
          %v2287 = vld [vmem:[%s25 + $0x58] sm:$0xff]
          %v2288 = vld [vmem:[%s25 + $0x60] sm:$0xff]
          %v2289 = vld [vmem:[%s25 + $0x68] sm:$0xff]
          %v2290 = vld [vmem:[%s25 + $0x70] sm:$0xff]
          %v2291 = vld [vmem:[%s25 + $0x78] sm:$0xff]
          %v2292 = vpack.c.bf16 %v2275, %v2275
          %v2293 = vpack.c.bf16 %v2277, %v2276
          %v2294 = vpack.c.bf16 %v2279, %v2278
          %v2295 = vpack.c.bf16 %v2281, %v2280
          %v2296 = vpack.c.bf16 %v2283, %v2282
          %v2297 = vpack.c.bf16 %v2285, %v2284
          %v2298 = vpack.c.bf16 %v2287, %v2286
          %v2299 = vpack.c.bf16 %v2289, %v2288
          %v2300 = vpack.c.bf16 %v2291, %v2290
          %v2301 = vld [vmem:[%s26] sm:$0x1]
          %v2303 = vlaneseq
          %v2304 = vshrl.u32 %v2303, 7
          %v2305 = vsub.s32 0, %v2304
          %v2306 = vrot.slane %v2301, %v2305
          %2308 = vmatprep.subr.bf16.mxu0 0
          %2309 = vmatpush1.bf16.msra.mxu0 %v2293
          %2310 = vmatprep.subr.bf16.mxu0 0
          %2311 = vmatpush1.bf16.msra.mxu0 %v2294
          %2312 = vmatprep.subr.bf16.mxu0 0
          %2313 = vmatpush1.bf16.msra.mxu0 %v2295
          %2314 = vmatprep.subr.bf16.mxu0 0
          %2315 = vmatpush1.bf16.msra.mxu0 %v2296
          %2316 = vmatprep.subr.bf16.mxu0 0
          %2317 = vmatpush1.bf16.msra.mxu0 %v2297
          %2318 = vmatprep.subr.bf16.mxu0 0
          %2319 = vmatpush1.bf16.msra.mxu0 %v2298
          %2320 = vmatprep.subr.bf16.mxu0 0
          %2321 = vmatpush1.bf16.msra.mxu0 %v2299
          %2322 = vmatprep.subr.bf16.mxu0 0
          %2323 = vmatpush1.bf16.msra.mxu0 %v2300
          %2324 = vmatprep.subr.bf16.mxu0 0
          %2325 = vmatpush1.bf16.msra.mxu0 0
          %2326 = vmatprep.subr.bf16.mxu0 0
          %2327 = vmatpush1.bf16.msra.mxu0 0
          %2328 = vmatprep.subr.bf16.mxu0 0
          %2329 = vmatpush1.bf16.msra.mxu0 0
          %2330 = vmatprep.subr.bf16.mxu0 0
          %2331 = vmatpush1.bf16.msra.mxu0 0
          %2332 = vmatprep.subr.bf16.mxu0 0
          %2333 = vmatpush1.bf16.msra.mxu0 0
          %2334 = vmatprep.subr.bf16.mxu0 0
          %2335 = vmatpush1.bf16.msra.mxu0 0
          %2336 = vmatprep.subr.bf16.mxu0 0
          %2337 = vmatpush1.bf16.msra.mxu0 0
          %2338 = vmatprep.subr.bf16.mxu0 0
          %2339 = vmatpush1.bf16.msra.mxu0 0
          %2340 = vmatprep.mubr.bf16.mxu0 0
          %2341 = vmatmul.mubr.bf16.gmra.mrb[0].mxu0 %v2292
          %v2342 = vpop.f32.mrb[0].mxu0
          %v2343 = vadd.f32 %v2306, %v2342
          %v2344 = vpop.f32.mrb[0].mxu0
          %v2345 = vpop.f32.mrb[0].mxu0
          %v2346 = vpop.f32.mrb[0].mxu0
          %2347 = vdwg.mxu0
          %vm2348 = vcmask 15360
          %2349 = vst.msk [vmem:[%s27] sm:$0xff] %vm2348, %v2343
        $region192: #{gine_forward.1} parent=127 // pred_fallthru
          _
        // Predicated region
        $region193: #{gine_forward.1} parent=127 // pred_check
          %p2350 = pneg %p671
        $region194: #{gine_forward.1} parent=127 // pred_check_branch
          %2352 = sbr.rel (%p2350) target = $region196
        $region195: #{gine_forward.1} parent=127 // pred_region
          _
        $region196: #{gine_forward.1} parent=127 // pred_fallthru
          _
        // Predicated region
        $region197: #{gine_forward.1} parent=127 // pred_check
          %p2353 = pneg %p671
        $region198: #{gine_forward.1} parent=127 // pred_check_branch
          %2355 = sbr.rel (%p2353) target = $region200
        $region199: #{gine_forward.1} parent=127 // pred_region
          _
        $region200: #{gine_forward.1} parent=127 // pred_fallthru
          _
      $region128: #{gine_forward.1} parent=5 // pred_fallthru
        _
      %p2356 = scmp.le.s32.totalorder 2, %s36
      // Predicated region
      $region201: #{gine_forward.1} parent=5 // pred_check
        %p2357 = pneg %p2356
      $region202: #{gine_forward.1} parent=5 // pred_check_branch
        %2359 = sbr.rel (%p2357) target = $region204
      $region203: #{gine_forward.1} parent=5 // pred_region
        %s2360 = ssub.s32 %s36, 2
      $region204: #{gine_forward.1} parent=5 // pred_fallthru
        _
    $region6: #{gine_forward.1} parent=1 // loop_footer
      %s40 = sadd.s32 1, %s36
    $region7: #{gine_forward.1} parent=1 // loop_footer_branch
      %35 = sbr.rel target = $region3
    $region8: #{gine_forward.1} parent=1 // loop_exit
      _
    %2361 = vsyncpa [#allocation6], 1
    %s2362 = scalar_lea.sflag [#allocation6], 1
    %2363 = vsyncpa %s2362, 1
    %2364 = vsyncpa [#allocation8], 1
    %2365 = vsyncpa [#allocation20], 1

</llo_original>
